<compile_context>
chip_gen: v6e
topology: v6e:2x2x1
jax: 0.10.0
libtpu: 0.0.40
codegen_flags: <defaults>
</compile_context>

<pallas_src>
import jax
import jax.numpy as jnp
from jax.experimental import pallas as pl
from jax.experimental.pallas import tpu as pltpu

EMB = 1024
LANE = 128


def _round_up(x, m):
    return (x + m - 1) // m * m


def _pick_row_tile(rpad):
    # Largest row tile that divides rpad; big tiles amortize the ~0.35us/step
    # overhead and hit the >=85% HBM-roofline regime, while a bf16
    # (tr, Kpad<=1024) block double-buffered stays < 4 MiB on every generation.
    if rpad <= 1024:
        return rpad
    for t in (1024, 512, 256, 128, 64, 32, 16, 8):
        if rpad % t == 0:
            return t
    return rpad


def _pick_k_tile(kpad):
    if kpad <= 1024:
        return kpad            # single reduction step: no acc init/finalize loop
    for t in (1024, 512, 256, 128):
        if kpad % t == 0:
            return t
    return kpad


# --------------- fused stem conv (7x7/s2/p3) + adaptive avg-pool ---------------

def _stem_pool_kernel(a_ref, w_ref, o_ref):
    """One grid step: (tr, tk) bf16 patches @ (tk, 128) bf16 weights on the MXU
    with an f32 accumulate, then a sublane (XLU) row-sum accumulated into the
    per-batch pooled output, which stays resident in VMEM across the i/k axes."""
    @pl.when(jnp.logical_and(pl.program_id(1) == 0, pl.program_id(2) == 0))
    def _():
        o_ref[...] = jnp.zeros_like(o_ref)

    partial = jnp.dot(a_ref[...], w_ref[...],
                      preferred_element_type=jnp.float32)      # (tr, 128) f32
    o_ref[...] += jnp.sum(partial, axis=0, keepdims=True)      # (1, 128) f32


def stem_conv_pool(patches, w_mat):
    """(B, Rpad, Kpad) bf16 patches, (Kpad, 128) bf16 weights -> (B, 1, 128) f32
    per-batch pooled *sums* over the real conv output rows (padded rows are
    zero, hence inert).  Divide by OH*OW downstream to get the mean."""
    B, Rpad, Kpad = patches.shape
    tr = _pick_row_tile(Rpad)
    tk = _pick_k_tile(Kpad)
    flops = 2 * B * Rpad * Kpad * LANE
    bytes_accessed = int(patches.size) * 2 + int(w_mat.size) * 2 + B * LANE * 4
    return pl.pallas_call(
        _stem_pool_kernel,
        out_shape=jax.ShapeDtypeStruct((B, 1, LANE), jnp.float32),
        grid_spec=pltpu.PrefetchScalarGridSpec(
            num_scalar_prefetch=0,
            grid=(B, Rpad // tr, Kpad // tk),
            in_specs=[pl.BlockSpec((None, tr, tk), lambda b, i, k: (b, i, k)),
                      pl.BlockSpec((tk, LANE), lambda b, i, k: (k, 0))],
            out_specs=pl.BlockSpec((None, 1, LANE), lambda b, i, k: (b, 0, 0))),
        compiler_params=pltpu.CompilerParams(
            dimension_semantics=("parallel", "arbitrary", "arbitrary")),
        cost_estimate=pl.CostEstimate(flops=flops, transcendentals=0,
                                      bytes_accessed=bytes_accessed),
    )(patches, w_mat)


def _im2col_7x7_s2_p3(x_nchw):
    """NHWC im2col for Conv2d(C->64, 7x7, stride=2, pad=3, bias=False) with
    (kh, kw, c) feature order, bf16 output, per-batch rows padded to a multiple
    of 8 and the feature dim zero-padded to a lane multiple.

    TODO(synk): at production image sizes this HBM materialization (~12x the
    input) should move inside the Pallas kernel as strided / manual-DMA patch
    gathers per output-row tile instead of an XLA-side concat."""
    B, C, H, W = x_nchw.shape
    K, S, P = 7, 2, 3
    OH = (H + 2 * P - K) // S + 1
    OW = (W + 2 * P - K) // S + 1
    x = jnp.transpose(x_nchw, (0, 2, 3, 1))                        # NHWC
    xp = jnp.pad(x, ((0, 0), (P, P), (P, P), (0, 0)))
    cols = [xp[:, kh:kh + S * OH:S, kw:kw + S * OW:S, :]
            for kh in range(K) for kw in range(K)]                 # each (B,OH,OW,C)
    patches = jnp.concatenate(cols, axis=-1).reshape(B, OH * OW, K * K * C)
    rpad = _round_up(OH * OW, 8)
    kpad = _round_up(K * K * C, LANE)
    patches = jnp.pad(patches, ((0, 0), (0, rpad - OH * OW), (0, kpad - K * K * C)))
    return patches.astype(jnp.bfloat16), OH, OW


# ----------- fused head: pool finalize -> linear(s) -> L2 normalize -----------

def _make_head_kernel(inv_ohw, num_linear):
    inv_ohw = float(inv_ohw)   # Python float -> jaxpr literal, never a captured const

    def l2norm(h):
        # F.normalize(p=2, dim=1, eps=1e-12): x * rsqrt(max(||x||^2, eps^2)).
        ss = jnp.sum(h * h, axis=-1, keepdims=True)
        return h * jax.lax.rsqrt(jnp.maximum(ss, 1e-24))

    if num_linear == 2:
        def kernel(p_ref, w1_ref, b1_ref, w2_ref, b2_ref, o_ref):
            h = p_ref[...] * inv_ohw                               # avg-pool finalize
            h = jnp.dot(h.astype(jnp.bfloat16), w1_ref[...],
                        preferred_element_type=jnp.float32) + b1_ref[...]
            h = jnp.dot(h.astype(jnp.bfloat16), w2_ref[...],
                        preferred_element_type=jnp.float32) + b2_ref[...]
            o_ref[...] = l2norm(h)
    else:
        def kernel(p_ref, w1_ref, b1_ref, o_ref):
            h = p_ref[...] * inv_ohw
            h = jnp.dot(h.astype(jnp.bfloat16), w1_ref[...],
                        preferred_element_type=jnp.float32) + b1_ref[...]
            o_ref[...] = l2norm(h)
    return kernel


def pallas_head(pooled, linears, ohw):
    """One fused pallas_call on the (B, 128) pooled sums: scale by 1/ohw,
    apply the bf16 linear layer(s) with f32 accumulate/biases, L2-normalize."""
    B, _ = pooled.shape
    emb = linears[-1][0].shape[1]
    kernel = _make_head_kernel(1.0 / float(ohw), len(linears))
    args = [pooled]
    in_specs = [pl.BlockSpec(pooled.shape, lambda i: (0, 0))]
    flops = 0
    bytes_accessed = int(pooled.size) * 4 + B * emb * 4
    for w, b in linears:
        args += [w, b]
        in_specs += [pl.BlockSpec(w.shape, lambda i: (0, 0)),
                     pl.BlockSpec(b.shape, lambda i: (0, 0))]
        flops += 2 * B * int(w.shape[0]) * int(w.shape[1])
        bytes_accessed += int(w.size) * 2 + int(b.size) * 4
    return pl.pallas_call(
        kernel,
        out_shape=jax.ShapeDtypeStruct((B, emb), jnp.float32),
        grid=(1,),
        in_specs=in_specs,
        out_specs=pl.BlockSpec((B, emb), lambda i: (0, 0)),
        cost_estimate=pl.CostEstimate(flops=flops, transcendentals=B,
                                      bytes_accessed=bytes_accessed),
    )(*args)


# ------------------------------- parameters ----------------------------------

def _conv_weight_to_matmul(w):
    """PyTorch (O, C, KH, KW) -> ((KH*KW*C)->pad128, O->pad128) bf16, (kh,kw,c)
    row order (matches the im2col feature order)."""
    O, C, KH, KW = w.shape
    wt = jnp.transpose(w, (2, 3, 1, 0)).reshape(KH * KW * C, O)
    kpad = _round_up(KH * KW * C, LANE)
    opad = _round_up(O, LANE)
    wt = jnp.pad(wt, ((0, kpad - KH * KW * C), (0, opad - O)))
    return wt.astype(jnp.bfloat16)


def _linear_to_matmul(w, b, in_pad=None):
    """PyTorch Linear (Cout, Cin), (Cout,) -> ((Cin[->in_pad]), Cout) bf16,
    (1, Cout) f32 bias.  Converted once; forward pays no transposes/pads."""
    cout, cin = w.shape
    wt = jnp.transpose(w)
    if in_pad is not None and in_pad > cin:
        wt = jnp.pad(wt, ((0, in_pad - cin), (0, 0)))
    return wt.astype(jnp.bfloat16), b.reshape(1, cout).astype(jnp.float32)


def init_params(key):
    ks = jax.random.split(key, 8)
    # Synthetic weights in PyTorch layouts, converted ONCE to matmul-ready
    # (pre-transposed, lane-padded, bf16) form.
    face_stem_w = 0.05 * jax.random.normal(ks[0], (64, 15, 7, 7), jnp.float32)
    audio_stem_w = 0.05 * jax.random.normal(ks[1], (64, 1, 7, 7), jnp.float32)
    # facenet.last_linear = Linear(in_features, 1024)
    # TODO(synk): real in_features is 1792 after the InceptionResnetV1 body;
    # surrogate in_features = 64 (stem channels) since the body is untranslated.
    face_last_w = 0.05 * jax.random.normal(ks[2], (EMB, 64), jnp.float32)
    face_last_b = 0.01 * jax.random.normal(ks[3], (EMB,), jnp.float32)
    # fc_face: referenced in forward() but never defined in the original
    # __init__; implemented here as Linear(1024, 1024).
    fc_face_w = 0.05 * jax.random.normal(ks[4], (EMB, EMB), jnp.float32)
    fc_face_b = 0.01 * jax.random.normal(ks[5], (EMB,), jnp.float32)
    # fc_audio = Linear(resnet152.fc.in_features, 1024)
    # TODO(synk): real in_features is 2048 after the resnet152 body; surrogate 64.
    fc_audio_w = 0.05 * jax.random.normal(ks[6], (EMB, 64), jnp.float32)
    fc_audio_b = 0.01 * jax.random.normal(ks[7], (EMB,), jnp.float32)

    p = {}
    p["face_stem_wm"] = _conv_weight_to_matmul(face_stem_w)      # (768, 128) bf16
    p["audio_stem_wm"] = _conv_weight_to_matmul(audio_stem_w)    # (128, 128) bf16
    p["face_last_wm"], p["face_last_b"] = _linear_to_matmul(face_last_w, face_last_b, in_pad=LANE)
    p["fc_face_wm"], p["fc_face_b"] = _linear_to_matmul(fc_face_w, fc_face_b)
    p["fc_audio_wm"], p["fc_audio_b"] = _linear_to_matmul(fc_audio_w, fc_audio_b, in_pad=LANE)
    return p


# --------------------------------- forward -----------------------------------

def forward(params, audio_sequences, face_sequences):
    # ---- face branch: face_encoder -> view -> fc_face -> F.normalize ----
    f_patches, OHf, OWf = _im2col_7x7_s2_p3(face_sequences)
    f_pooled = stem_conv_pool(f_patches, params["face_stem_wm"]).reshape(-1, LANE)
    # TODO(synk): InceptionResnetV1(pretrained='vggface2') backbone body is
    # untranslated; only its global pooling + replaced last_linear are modeled.
    face_embedding = pallas_head(
        f_pooled,
        [(params["face_last_wm"], params["face_last_b"]),
         (params["fc_face_wm"], params["fc_face_b"])],
        ohw=OHf * OWf)

    # ---- audio branch: audio_encoder -> view -> fc_audio -> F.normalize ----
    a_patches, OHa, OWa = _im2col_7x7_s2_p3(audio_sequences)
    a_pooled = stem_conv_pool(a_patches, params["audio_stem_wm"]).reshape(-1, LANE)
    # TODO(synk): torchvision resnet152 body (children()[1:-2]) is untranslated;
    # only stem conv + AdaptiveAvgPool2d((1,1)) + fc_audio are modeled.
    audio_embedding = pallas_head(
        a_pooled,
        [(params["fc_audio_wm"], params["fc_audio_b"])],
        ohw=OHa * OWa)

    return audio_embedding, face_embedding


# ----------------------------------- main -------------------------------------

if __name__ == "__main__":
    key = jax.random.PRNGKey(0)
    k_params, k_face, k_audio = jax.random.split(key, 3)

    params = init_params(k_params)

    B, H, W = 2, 16, 16
    face_sequences = jax.random.normal(k_face, (B, 15, H, W), jnp.float32)   # NCHW
    audio_sequences = jax.random.normal(k_audio, (B, 1, H, W), jnp.float32)  # NCHW

    audio_embedding, face_embedding = jax.jit(forward)(
        params, audio_sequences, face_sequences)
    jax.block_until_ready((audio_embedding, face_embedding))

    assert audio_embedding.shape == (B, 1024)
    assert face_embedding.shape == (B, 1024)
    # embeddings are L2-normalized rows
    assert jnp.allclose(jnp.linalg.norm(audio_embedding, axis=1), 1.0, atol=1e-4)
    assert jnp.allclose(jnp.linalg.norm(face_embedding, axis=1), 1.0, atol=1e-4)

    print("KERNEL_OK")
</pallas_src>

<mosaic_0001>
module attributes {stable_mosaic.version = 11 : i64} {
  func.func @_stem_pool_kernel(%arg0: i32, %arg1: i32, %arg2: i32, %arg3: memref<1x64x768xbf16, #tpu.memory_space<vmem>>, %arg4: memref<768x128xbf16, #tpu.memory_space<vmem>>, %arg5: memref<1x1x128xf32, #tpu.memory_space<vmem>>) attributes {dimension_semantics = [#tpu.dimension_semantics<parallel>, #tpu.dimension_semantics<arbitrary>, #tpu.dimension_semantics<arbitrary>], iteration_bounds = array<i64: 2, 1, 1>, scalar_prefetch = 0 : i64, scratch_operands = 0 : i64, tpu.core_type = #tpu.core_type<tc>, window_params = [{transform_indices = @transform_0, window_bounds = array<i64: 1, 64, 768>}, {transform_indices = @transform_1, window_bounds = array<i64: 768, 128>}, {transform_indices = @transform_2, window_bounds = array<i64: 1, 1, 128>}]} {
    %c0_i32 = arith.constant 0 : i32
    %0 = arith.cmpi eq, %arg1, %c0_i32 : i32
    %c0_i32_0 = arith.constant 0 : i32
    %1 = arith.cmpi eq, %arg2, %c0_i32_0 : i32
    %2 = arith.andi %0, %1 : i1
    %3 = arith.extui %2 : i1 to i32
    %c0_i32_1 = arith.constant 0 : i32
    %4 = arith.cmpi ne, %3, %c0_i32_1 : i32
    scf.if %4 {
      %cst_13 = arith.constant 0.000000e+00 : f32
      %17 = vector.broadcast %cst_13 : f32 to vector<1x128xf32>
      %c0_14 = arith.constant 0 : index
      %c0_15 = arith.constant 0 : index
      %c0_16 = arith.constant 0 : index
      %18 = vector.load %arg5[%c0_14, %c0_15, %c0_16] : memref<1x1x128xf32, #tpu.memory_space<vmem>>, vector<1x1x128xf32>
      %19 = vector.shape_cast %18 : vector<1x1x128xf32> to vector<1x128xf32>
      %20 = vector.shape_cast %17 : vector<1x128xf32> to vector<1x1x128xf32>
      tpu.vector_store %arg5[%c0_14, %c0_15, %c0_16], %20 {strides = array<i32>} : memref<1x1x128xf32, #tpu.memory_space<vmem>>, vector<1x1x128xf32>,
    } else {
    }
    %c0 = arith.constant 0 : index
    %c0_2 = arith.constant 0 : index
    %c0_3 = arith.constant 0 : index
    %5 = vector.load %arg3[%c0, %c0_2, %c0_3] : memref<1x64x768xbf16, #tpu.memory_space<vmem>>, vector<1x64x768xbf16>
    %6 = vector.shape_cast %5 : vector<1x64x768xbf16> to vector<64x768xbf16>
    %c0_4 = arith.constant 0 : index
    %c0_5 = arith.constant 0 : index
    %7 = vector.load %arg4[%c0_4, %c0_5] : memref<768x128xbf16, #tpu.memory_space<vmem>>, vector<768x128xbf16>
    %cst = arith.constant dense<0.000000e+00> : vector<64x128xf32>
    %8 = tpu.matmul %6, %7, %cst {dimension_numbers = #tpu.dot_dimension_numbers<[1], [0], [0], [1], [0, 0, 1, 1], [], []>} : vector<64x768xbf16>, vector<768x128xbf16>, vector<64x128xf32> -> vector<64x128xf32>
    %c0_6 = arith.constant 0 : index
    %c0_7 = arith.constant 0 : index
    %c0_8 = arith.constant 0 : index
    %9 = vector.load %arg5[%c0_6, %c0_7, %c0_8] : memref<1x1x128xf32, #tpu.memory_space<vmem>>, vector<1x1x128xf32>
    %10 = vector.shape_cast %9 : vector<1x1x128xf32> to vector<1x128xf32>
    %cst_9 = arith.constant dense<0.000000e+00> : vector<128xf32>
    %11 = vector.multi_reduction <add>, %8, %cst_9 [0] : vector<64x128xf32> to vector<128xf32>
    %12 = vector.shape_cast %11 : vector<128xf32> to vector<1x128xf32>
    %13 = arith.addf %10, %12 : vector<1x128xf32>
    %c0_10 = arith.constant 0 : index
    %c0_11 = arith.constant 0 : index
    %c0_12 = arith.constant 0 : index
    %14 = vector.load %arg5[%c0_10, %c0_11, %c0_12] : memref<1x1x128xf32, #tpu.memory_space<vmem>>, vector<1x1x128xf32>
    %15 = vector.shape_cast %14 : vector<1x1x128xf32> to vector<1x128xf32>
    %16 = vector.shape_cast %13 : vector<1x128xf32> to vector<1x1x128xf32>
    tpu.vector_store %arg5[%c0_10, %c0_11, %c0_12], %16 {strides = array<i32>} : memref<1x1x128xf32, #tpu.memory_space<vmem>>, vector<1x1x128xf32>,
    return
  }
  func.func @transform_0(%arg0: i32, %arg1: i32, %arg2: i32) -> (i32, i32, i32) {
    %c0_i32 = arith.constant 0 : i32
    return %arg0, %arg1, %arg2 : i32, i32, i32
  }
  func.func @transform_1(%arg0: i32, %arg1: i32, %arg2: i32) -> (i32, i32) {
    %c0_i32 = arith.constant 0 : i32
    %c0_i32_0 = arith.constant 0 : i32
    return %arg2, %c0_i32 : i32, i32
  }
  func.func @transform_2(%arg0: i32, %arg1: i32, %arg2: i32) -> (i32, i32, i32) {
    %c0_i32 = arith.constant 0 : i32
    %c0_i32_0 = arith.constant 0 : i32
    %c0_i32_1 = arith.constant 0 : i32
    return %arg0, %c0_i32, %c0_i32_0 : i32, i32, i32
  }
}

module attributes {stable_mosaic.version = 11 : i64} {
  func.func @kernel(%arg0: i32, %arg1: memref<2x128xf32, #tpu.memory_space<vmem>>, %arg2: memref<128x1024xbf16, #tpu.memory_space<vmem>>, %arg3: memref<1x1024xf32, #tpu.memory_space<vmem>>, %arg4: memref<1024x1024xbf16, #tpu.memory_space<vmem>>, %arg5: memref<1x1024xf32, #tpu.memory_space<vmem>>, %arg6: memref<2x1024xf32, #tpu.memory_space<vmem>>) attributes {dimension_semantics = [#tpu.dimension_semantics<arbitrary>], iteration_bounds = array<i64: 1>, scalar_prefetch = 0 : i64, scratch_operands = 0 : i64, tpu.core_type = #tpu.core_type<tc>, window_params = [{pipeline_mode = #tpu.pipeline_mode<synchronous>, transform_indices = @transform_0, window_bounds = array<i64: 2, 128>}, {pipeline_mode = #tpu.pipeline_mode<synchronous>, transform_indices = @transform_1, window_bounds = array<i64: 128, 1024>}, {pipeline_mode = #tpu.pipeline_mode<synchronous>, transform_indices = @transform_2, window_bounds = array<i64: 1, 1024>}, {pipeline_mode = #tpu.pipeline_mode<synchronous>, transform_indices = @transform_3, window_bounds = array<i64: 1024, 1024>}, {pipeline_mode = #tpu.pipeline_mode<synchronous>, transform_indices = @transform_4, window_bounds = array<i64: 1, 1024>}, {pipeline_mode = #tpu.pipeline_mode<synchronous>, transform_indices = @transform_5, window_bounds = array<i64: 2, 1024>}]} {
    %c0 = arith.constant 0 : index
    %c0_0 = arith.constant 0 : index
    %0 = vector.load %arg1[%c0, %c0_0] : memref<2x128xf32, #tpu.memory_space<vmem>>, vector<2x128xf32>
    %cst = arith.constant 1.562500e-02 : f32
    %1 = vector.broadcast %cst : f32 to vector<2x128xf32>
    %2 = arith.mulf %0, %1 : vector<2x128xf32>
    %3 = arith.truncf %2 : vector<2x128xf32> to vector<2x128xbf16>
    %c0_1 = arith.constant 0 : index
    %c0_2 = arith.constant 0 : index
    %4 = vector.load %arg2[%c0_1, %c0_2] : memref<128x1024xbf16, #tpu.memory_space<vmem>>, vector<128x1024xbf16>
    %cst_3 = arith.constant dense<0.000000e+00> : vector<2x1024xf32>
    %5 = tpu.matmul %3, %4, %cst_3 {dimension_numbers = #tpu.dot_dimension_numbers<[1], [0], [0], [1], [0, 0, 1, 1], [], []>} : vector<2x128xbf16>, vector<128x1024xbf16>, vector<2x1024xf32> -> vector<2x1024xf32>
    %c0_4 = arith.constant 0 : index
    %c0_5 = arith.constant 0 : index
    %6 = vector.load %arg3[%c0_4, %c0_5] : memref<1x1024xf32, #tpu.memory_space<vmem>>, vector<1x1024xf32>
    %7 = vector.broadcast %6 : vector<1x1024xf32> to vector<2x1024xf32>
    %8 = arith.addf %5, %7 : vector<2x1024xf32>
    %9 = arith.truncf %8 : vector<2x1024xf32> to vector<2x1024xbf16>
    %c0_6 = arith.constant 0 : index
    %c0_7 = arith.constant 0 : index
    %10 = vector.load %arg4[%c0_6, %c0_7] : memref<1024x1024xbf16, #tpu.memory_space<vmem>>, vector<1024x1024xbf16>
    %cst_8 = arith.constant dense<0.000000e+00> : vector<2x1024xf32>
    %11 = tpu.matmul %9, %10, %cst_8 {dimension_numbers = #tpu.dot_dimension_numbers<[1], [0], [0], [1], [0, 0, 1, 1], [], []>} : vector<2x1024xbf16>, vector<1024x1024xbf16>, vector<2x1024xf32> -> vector<2x1024xf32>
    %c0_9 = arith.constant 0 : index
    %c0_10 = arith.constant 0 : index
    %12 = vector.load %arg5[%c0_9, %c0_10] : memref<1x1024xf32, #tpu.memory_space<vmem>>, vector<1x1024xf32>
    %13 = vector.broadcast %12 : vector<1x1024xf32> to vector<2x1024xf32>
    %14 = arith.addf %11, %13 : vector<2x1024xf32>
    %15 = arith.mulf %14, %14 : vector<2x1024xf32>
    %cst_11 = arith.constant dense<0.000000e+00> : vector<2xf32>
    %16 = vector.multi_reduction <add>, %15, %cst_11 [1] : vector<2x1024xf32> to vector<2xf32>
    %17 = vector.shape_cast %16 : vector<2xf32> to vector<2x1xf32>
    %cst_12 = arith.constant 1.000000e-24 : f32
    %18 = vector.broadcast %cst_12 : f32 to vector<2x1xf32>
    %19 = arith.maximumf %17, %18 : vector<2x1xf32>
    %20 = math.rsqrt %19 : vector<2x1xf32>
    %21 = vector.broadcast %20 : vector<2x1xf32> to vector<2x1024xf32>
    %22 = arith.mulf %14, %21 : vector<2x1024xf32>
    %c0_13 = arith.constant 0 : index
    %c0_14 = arith.constant 0 : index
    %23 = vector.load %arg6[%c0_13, %c0_14] : memref<2x1024xf32, #tpu.memory_space<vmem>>, vector<2x1024xf32>
    tpu.vector_store %arg6[%c0_13, %c0_14], %22 {strides = array<i32>} : memref<2x1024xf32, #tpu.memory_space<vmem>>, vector<2x1024xf32>,
    return
  }
  func.func @transform_0(%arg0: i32) -> (i32, i32) {
    %c0_i32 = arith.constant 0 : i32
    %c0_i32_0 = arith.constant 0 : i32
    %c0_i32_1 = arith.constant 0 : i32
    return %c0_i32, %c0_i32_0 : i32, i32
  }
  func.func @transform_1(%arg0: i32) -> (i32, i32) {
    %c0_i32 = arith.constant 0 : i32
    %c0_i32_0 = arith.constant 0 : i32
    %c0_i32_1 = arith.constant 0 : i32
    return %c0_i32, %c0_i32_0 : i32, i32
  }
  func.func @transform_2(%arg0: i32) -> (i32, i32) {
    %c0_i32 = arith.constant 0 : i32
    %c0_i32_0 = arith.constant 0 : i32
    %c0_i32_1 = arith.constant 0 : i32
    return %c0_i32, %c0_i32_0 : i32, i32
  }
  func.func @transform_3(%arg0: i32) -> (i32, i32) {
    %c0_i32 = arith.constant 0 : i32
    %c0_i32_0 = arith.constant 0 : i32
    %c0_i32_1 = arith.constant 0 : i32
    return %c0_i32, %c0_i32_0 : i32, i32
  }
  func.func @transform_4(%arg0: i32) -> (i32, i32) {
    %c0_i32 = arith.constant 0 : i32
    %c0_i32_0 = arith.constant 0 : i32
    %c0_i32_1 = arith.constant 0 : i32
    return %c0_i32, %c0_i32_0 : i32, i32
  }
  func.func @transform_5(%arg0: i32) -> (i32, i32) {
    %c0_i32 = arith.constant 0 : i32
    %c0_i32_0 = arith.constant 0 : i32
    %c0_i32_1 = arith.constant 0 : i32
    return %c0_i32, %c0_i32_0 : i32, i32
  }
}

module attributes {stable_mosaic.version = 11 : i64} {
  func.func @_stem_pool_kernel(%arg0: i32, %arg1: i32, %arg2: i32, %arg3: memref<1x64x128xbf16, #tpu.memory_space<vmem>>, %arg4: memref<128x128xbf16, #tpu.memory_space<vmem>>, %arg5: memref<1x1x128xf32, #tpu.memory_space<vmem>>) attributes {dimension_semantics = [#tpu.dimension_semantics<parallel>, #tpu.dimension_semantics<arbitrary>, #tpu.dimension_semantics<arbitrary>], iteration_bounds = array<i64: 2, 1, 1>, scalar_prefetch = 0 : i64, scratch_operands = 0 : i64, tpu.core_type = #tpu.core_type<tc>, window_params = [{transform_indices = @transform_0, window_bounds = array<i64: 1, 64, 128>}, {transform_indices = @transform_1, window_bounds = array<i64: 128, 128>}, {transform_indices = @transform_2, window_bounds = array<i64: 1, 1, 128>}]} {
    %c0_i32 = arith.constant 0 : i32
    %0 = arith.cmpi eq, %arg1, %c0_i32 : i32
    %c0_i32_0 = arith.constant 0 : i32
    %1 = arith.cmpi eq, %arg2, %c0_i32_0 : i32
    %2 = arith.andi %0, %1 : i1
    %3 = arith.extui %2 : i1 to i32
    %c0_i32_1 = arith.constant 0 : i32
    %4 = arith.cmpi ne, %3, %c0_i32_1 : i32
    scf.if %4 {
      %cst_13 = arith.constant 0.000000e+00 : f32
      %17 = vector.broadcast %cst_13 : f32 to vector<1x128xf32>
      %c0_14 = arith.constant 0 : index
      %c0_15 = arith.constant 0 : index
      %c0_16 = arith.constant 0 : index
      %18 = vector.load %arg5[%c0_14, %c0_15, %c0_16] : memref<1x1x128xf32, #tpu.memory_space<vmem>>, vector<1x1x128xf32>
      %19 = vector.shape_cast %18 : vector<1x1x128xf32> to vector<1x128xf32>
      %20 = vector.shape_cast %17 : vector<1x128xf32> to vector<1x1x128xf32>
      tpu.vector_store %arg5[%c0_14, %c0_15, %c0_16], %20 {strides = array<i32>} : memref<1x1x128xf32, #tpu.memory_space<vmem>>, vector<1x1x128xf32>,
    } else {
    }
    %c0 = arith.constant 0 : index
    %c0_2 = arith.constant 0 : index
    %c0_3 = arith.constant 0 : index
    %5 = vector.load %arg3[%c0, %c0_2, %c0_3] : memref<1x64x128xbf16, #tpu.memory_space<vmem>>, vector<1x64x128xbf16>
    %6 = vector.shape_cast %5 : vector<1x64x128xbf16> to vector<64x128xbf16>
    %c0_4 = arith.constant 0 : index
    %c0_5 = arith.constant 0 : index
    %7 = vector.load %arg4[%c0_4, %c0_5] : memref<128x128xbf16, #tpu.memory_space<vmem>>, vector<128x128xbf16>
    %cst = arith.constant dense<0.000000e+00> : vector<64x128xf32>
    %8 = tpu.matmul %6, %7, %cst {dimension_numbers = #tpu.dot_dimension_numbers<[1], [0], [0], [1], [0, 0, 1, 1], [], []>} : vector<64x128xbf16>, vector<128x128xbf16>, vector<64x128xf32> -> vector<64x128xf32>
    %c0_6 = arith.constant 0 : index
    %c0_7 = arith.constant 0 : index
    %c0_8 = arith.constant 0 : index
    %9 = vector.load %arg5[%c0_6, %c0_7, %c0_8] : memref<1x1x128xf32, #tpu.memory_space<vmem>>, vector<1x1x128xf32>
    %10 = vector.shape_cast %9 : vector<1x1x128xf32> to vector<1x128xf32>
    %cst_9 = arith.constant dense<0.000000e+00> : vector<128xf32>
    %11 = vector.multi_reduction <add>, %8, %cst_9 [0] : vector<64x128xf32> to vector<128xf32>
    %12 = vector.shape_cast %11 : vector<128xf32> to vector<1x128xf32>
    %13 = arith.addf %10, %12 : vector<1x128xf32>
    %c0_10 = arith.constant 0 : index
    %c0_11 = arith.constant 0 : index
    %c0_12 = arith.constant 0 : index
    %14 = vector.load %arg5[%c0_10, %c0_11, %c0_12] : memref<1x1x128xf32, #tpu.memory_space<vmem>>, vector<1x1x128xf32>
    %15 = vector.shape_cast %14 : vector<1x1x128xf32> to vector<1x128xf32>
    %16 = vector.shape_cast %13 : vector<1x128xf32> to vector<1x1x128xf32>
    tpu.vector_store %arg5[%c0_10, %c0_11, %c0_12], %16 {strides = array<i32>} : memref<1x1x128xf32, #tpu.memory_space<vmem>>, vector<1x1x128xf32>,
    return
  }
  func.func @transform_0(%arg0: i32, %arg1: i32, %arg2: i32) -> (i32, i32, i32) {
    %c0_i32 = arith.constant 0 : i32
    return %arg0, %arg1, %arg2 : i32, i32, i32
  }
  func.func @transform_1(%arg0: i32, %arg1: i32, %arg2: i32) -> (i32, i32) {
    %c0_i32 = arith.constant 0 : i32
    %c0_i32_0 = arith.constant 0 : i32
    return %arg2, %c0_i32 : i32, i32
  }
  func.func @transform_2(%arg0: i32, %arg1: i32, %arg2: i32) -> (i32, i32, i32) {
    %c0_i32 = arith.constant 0 : i32
    %c0_i32_0 = arith.constant 0 : i32
    %c0_i32_1 = arith.constant 0 : i32
    return %arg0, %c0_i32, %c0_i32_0 : i32, i32, i32
  }
}

module attributes {stable_mosaic.version = 11 : i64} {
  func.func @kernel(%arg0: i32, %arg1: memref<2x128xf32, #tpu.memory_space<vmem>>, %arg2: memref<128x1024xbf16, #tpu.memory_space<vmem>>, %arg3: memref<1x1024xf32, #tpu.memory_space<vmem>>, %arg4: memref<2x1024xf32, #tpu.memory_space<vmem>>) attributes {dimension_semantics = [#tpu.dimension_semantics<arbitrary>], iteration_bounds = array<i64: 1>, scalar_prefetch = 0 : i64, scratch_operands = 0 : i64, tpu.core_type = #tpu.core_type<tc>, window_params = [{pipeline_mode = #tpu.pipeline_mode<synchronous>, transform_indices = @transform_0, window_bounds = array<i64: 2, 128>}, {pipeline_mode = #tpu.pipeline_mode<synchronous>, transform_indices = @transform_1, window_bounds = array<i64: 128, 1024>}, {pipeline_mode = #tpu.pipeline_mode<synchronous>, transform_indices = @transform_2, window_bounds = array<i64: 1, 1024>}, {pipeline_mode = #tpu.pipeline_mode<synchronous>, transform_indices = @transform_3, window_bounds = array<i64: 2, 1024>}]} {
    %c0 = arith.constant 0 : index
    %c0_0 = arith.constant 0 : index
    %0 = vector.load %arg1[%c0, %c0_0] : memref<2x128xf32, #tpu.memory_space<vmem>>, vector<2x128xf32>
    %cst = arith.constant 1.562500e-02 : f32
    %1 = vector.broadcast %cst : f32 to vector<2x128xf32>
    %2 = arith.mulf %0, %1 : vector<2x128xf32>
    %3 = arith.truncf %2 : vector<2x128xf32> to vector<2x128xbf16>
    %c0_1 = arith.constant 0 : index
    %c0_2 = arith.constant 0 : index
    %4 = vector.load %arg2[%c0_1, %c0_2] : memref<128x1024xbf16, #tpu.memory_space<vmem>>, vector<128x1024xbf16>
    %cst_3 = arith.constant dense<0.000000e+00> : vector<2x1024xf32>
    %5 = tpu.matmul %3, %4, %cst_3 {dimension_numbers = #tpu.dot_dimension_numbers<[1], [0], [0], [1], [0, 0, 1, 1], [], []>} : vector<2x128xbf16>, vector<128x1024xbf16>, vector<2x1024xf32> -> vector<2x1024xf32>
    %c0_4 = arith.constant 0 : index
    %c0_5 = arith.constant 0 : index
    %6 = vector.load %arg3[%c0_4, %c0_5] : memref<1x1024xf32, #tpu.memory_space<vmem>>, vector<1x1024xf32>
    %7 = vector.broadcast %6 : vector<1x1024xf32> to vector<2x1024xf32>
    %8 = arith.addf %5, %7 : vector<2x1024xf32>
    %9 = arith.mulf %8, %8 : vector<2x1024xf32>
    %cst_6 = arith.constant dense<0.000000e+00> : vector<2xf32>
    %10 = vector.multi_reduction <add>, %9, %cst_6 [1] : vector<2x1024xf32> to vector<2xf32>
    %11 = vector.shape_cast %10 : vector<2xf32> to vector<2x1xf32>
    %cst_7 = arith.constant 1.000000e-24 : f32
    %12 = vector.broadcast %cst_7 : f32 to vector<2x1xf32>
    %13 = arith.maximumf %11, %12 : vector<2x1xf32>
    %14 = math.rsqrt %13 : vector<2x1xf32>
    %15 = vector.broadcast %14 : vector<2x1xf32> to vector<2x1024xf32>
    %16 = arith.mulf %8, %15 : vector<2x1024xf32>
    %c0_8 = arith.constant 0 : index
    %c0_9 = arith.constant 0 : index
    %17 = vector.load %arg4[%c0_8, %c0_9] : memref<2x1024xf32, #tpu.memory_space<vmem>>, vector<2x1024xf32>
    tpu.vector_store %arg4[%c0_8, %c0_9], %16 {strides = array<i32>} : memref<2x1024xf32, #tpu.memory_space<vmem>>, vector<2x1024xf32>,
    return
  }
  func.func @transform_0(%arg0: i32) -> (i32, i32) {
    %c0_i32 = arith.constant 0 : i32
    %c0_i32_0 = arith.constant 0 : i32
    %c0_i32_1 = arith.constant 0 : i32
    return %c0_i32, %c0_i32_0 : i32, i32
  }
  func.func @transform_1(%arg0: i32) -> (i32, i32) {
    %c0_i32 = arith.constant 0 : i32
    %c0_i32_0 = arith.constant 0 : i32
    %c0_i32_1 = arith.constant 0 : i32
    return %c0_i32, %c0_i32_0 : i32, i32
  }
  func.func @transform_2(%arg0: i32) -> (i32, i32) {
    %c0_i32 = arith.constant 0 : i32
    %c0_i32_0 = arith.constant 0 : i32
    %c0_i32_1 = arith.constant 0 : i32
    return %c0_i32, %c0_i32_0 : i32, i32
  }
  func.func @transform_3(%arg0: i32) -> (i32, i32) {
    %c0_i32 = arith.constant 0 : i32
    %c0_i32_0 = arith.constant 0 : i32
    %c0_i32_1 = arith.constant 0 : i32
    return %c0_i32, %c0_i32_0 : i32, i32
  }
}

</mosaic_0001>

<llo_original>
// kernel: forward.4
$region0: #{forward.4}
  #allocation0 [shape = 'u32[]', space=smem, size = 0x4, offset = 0x4, fixed_abs, tag = 'smem constant byte address 0x4 - core index']
  #allocation1 [shape = 'u32[144,128]{1,0:T(1,128)}', space=vmem, size = 0x12000, scoped, tag = 'internal scratch']
  %s0 = inlined_call_operand.vmem [shape: bf16[2,64,768], index: 0, kind: input, shape index: {}]
  %s1 = inlined_call_operand.vmem [shape: bf16[768,128], index: 1, kind: input, shape index: {}]
  %s2 = inlined_call_operand.vmem [shape: f32[2,1,128], index: 2, kind: output, shape index: {}]
  %s3 = sld [smem:[#allocation0]]
  $region45: #{forward.4} parent=0
    _
  %s5 = ssub.s32 1, %s3
  %s6 = scalar_select 0, %s5, %s3
  loop: start=0, step=1, limit=4
  $region2: #{forward.4} parent=0 // loop_pre_header
    _
  $region3: #{forward.4} parent=0 // loop_header
    %s8 = sphi 0, %s12
    %p9 = scmp.ge.s32.totalorder %s8, 4
    %s15 = sphi 0, %s34
    %s16 = sphi 0, %s30
    %s17 = sphi 0, %s26
    %s18 = sphi 0, %s15
    %s19 = sphi 0, %s16
    %s20 = sphi 0, %s17
    %s21 = sphi 0, %s18
    %s22 = sphi 0, %s19
    %s23 = sphi 0, %s20
    %s41 = sphi 0, %s43
    %s44 = sphi 0, %s41
    %s45 = sphi 0, %s44
    %s61 = sphi 0, %s45
    %s67 = sphi 0, %s69
    %s70 = sphi 0, %s67
    %s71 = sphi 0, %s70
    %s87 = sphi 0, %s71
    %s93 = sphi 0, %s95
    %s96 = sphi 0, %s93
    %s97 = sphi 0, %s96
    %s113 = sphi 0, %s97
  $region4: #{forward.4} parent=0 // loop_header_branch
    %11 = sbr.rel (%p9) target = $region8
  $region5: #{forward.4} parent=0 // loop_body
    %s13 = ssub.s32 %s8, 1
    %s14 = ssub.s32 %s8, 2
    %s24 = sadd.s32 1, %s17
    %p25 = scmp.ge.s32.totalorder %s24, 1
    %s26 = scalar_select %p25, 0, %s24
    %s27 = sadd.s32 1, %s16
    %s28 = scalar_select %p25, %s27, %s16
    %p29 = scmp.ge.s32.totalorder %s28, 1
    %s30 = scalar_select %p29, 0, %s28
    %s31 = sadd.s32 1, %s15
    %s32 = scalar_select %p29, %s31, %s15
    %p33 = scmp.ge.s32.totalorder %s32, 2
    %s34 = scalar_select %p33, 0, %s32
    %s35 = ssub.s32 %s15, %s34
    %s36 = ssub.s32 %s16, %s30
    %s37 = sor.u32 %s35, %s36
    %s38 = ssub.s32 %s17, %s26
    %s39 = sor.u32 %s37, %s38
    %p40 = scmp.eq.s32.totalorder %s39, 0
    %s42 = sadd.s32 %s41, 1
    %s43 = scalar_select %p40, %s41, %s42
    %p46 = pneg %p40
    %p47 = scmp.eq.s32.totalorder %s8, 1
    %p48 = por %p46, %p47
    %p49 = scmp.ne.s32.totalorder %s41, %s44
    %p50 = scmp.eq.s32.totalorder %s8, 0
    %p51 = por %p49, %p50
    %p52 = scmp.ne.s32.totalorder %s41, %s44
    %p53 = scmp.eq.s32.totalorder %s13, 1
    %p54 = por %p52, %p53
    %p55 = scmp.ne.s32.totalorder %s44, %s45
    %p56 = scmp.eq.s32.totalorder %s13, 0
    %p57 = por %p55, %p56
    %p58 = scmp.ne.s32.totalorder %s44, %s45
    %p59 = scmp.eq.s32.totalorder %s14, 1
    %p60 = por %p58, %p59
    %p62 = scmp.ne.s32.totalorder %s45, %s61
    %p63 = scmp.eq.s32.totalorder %s14, 0
    %p64 = por %p62, %p63
    %s65 = ssub.s32 %s17, %s26
    %p66 = scmp.eq.s32.totalorder %s65, 0
    %s68 = sadd.s32 %s67, 1
    %s69 = scalar_select %p66, %s67, %s68
    %p72 = pneg %p66
    %p73 = scmp.eq.s32.totalorder %s8, 1
    %p74 = por %p72, %p73
    %p75 = scmp.ne.s32.totalorder %s67, %s70
    %p76 = scmp.eq.s32.totalorder %s8, 0
    %p77 = por %p75, %p76
    %p78 = scmp.ne.s32.totalorder %s67, %s70
    %p79 = scmp.eq.s32.totalorder %s13, 1
    %p80 = por %p78, %p79
    %p81 = scmp.ne.s32.totalorder %s70, %s71
    %p82 = scmp.eq.s32.totalorder %s13, 0
    %p83 = por %p81, %p82
    %p84 = scmp.ne.s32.totalorder %s70, %s71
    %p85 = scmp.eq.s32.totalorder %s14, 1
    %p86 = por %p84, %p85
    %p88 = scmp.ne.s32.totalorder %s71, %s87
    %p89 = scmp.eq.s32.totalorder %s14, 0
    %p90 = por %p88, %p89
    %s91 = ssub.s32 %s15, %s34
    %p92 = scmp.eq.s32.totalorder %s91, 0
    %s94 = sadd.s32 %s93, 1
    %s95 = scalar_select %p92, %s93, %s94
    %p98 = pneg %p92
    %p99 = scmp.eq.s32.totalorder %s8, 1
    %p100 = por %p98, %p99
    %p101 = scmp.ne.s32.totalorder %s93, %s96
    %p102 = scmp.eq.s32.totalorder %s8, 0
    %p103 = por %p101, %p102
    %p104 = scmp.ne.s32.totalorder %s93, %s96
    %p105 = scmp.eq.s32.totalorder %s13, 1
    %p106 = por %p104, %p105
    %p107 = scmp.ne.s32.totalorder %s96, %s97
    %p108 = scmp.eq.s32.totalorder %s13, 0
    %p109 = por %p107, %p108
    %p110 = scmp.ne.s32.totalorder %s96, %s97
    %p111 = scmp.eq.s32.totalorder %s14, 1
    %p112 = por %p110, %p111
    %p114 = scmp.ne.s32.totalorder %s97, %s113
    %p115 = scmp.eq.s32.totalorder %s14, 0
    %p116 = por %p114, %p115
    %p117 = scmp.le.s32.totalorder 1, %s8
    %p118 = scmp.lt.s32.totalorder %s8, 3
    %p119 = pnand %p117, %p118
    %p120 = pneg %p119
    // Predicated region
    $region9: #{forward.4} parent=5 // pred_check
      _
    $region10: #{forward.4} parent=5 // pred_check_branch
      %122 = sbr.rel (%p119) target = $region12
    $region11: #{forward.4} parent=5 // pred_region
      %s123 = ssub.s32 %s8, 1
      // Predicated region
      $region13: #{forward.4} parent=11 // pred_check
        %p124 = pneg %p83
      $region14: #{forward.4} parent=11 // pred_check_branch
        %126 = sbr.rel (%p124) target = $region16
      $region15: #{forward.4} parent=11 // pred_region
        %s127 = smul.u32 96, %s20
        %p128 = scmp.lt.s32.totalorder %s127, 95
        %s129 = scalar_select %p128, %s127, 95
        %s130 = smul.addr %s129, 4
        %s131 = scalar_lea.vmem %s1, %s130
        %s132 = smul.u32 96, %s20
      $region16: #{forward.4} parent=11 // pred_fallthru
        _
    $region12: #{forward.4} parent=5 // pred_fallthru
      _
    %p133 = scmp.lt.s32.totalorder %s8, 2
    // Predicated region
    $region17: #{forward.4} parent=5 // pred_check
      %p134 = pneg %p133
    $region18: #{forward.4} parent=5 // pred_check_branch
      %136 = sbr.rel (%p134) target = $region20
    $region19: #{forward.4} parent=5 // pred_region
      // Predicated region
      $region21: #{forward.4} parent=19 // pred_check
        %p137 = pneg %p51
      $region22: #{forward.4} parent=19 // pred_check_branch
        %139 = sbr.rel (%p137) target = $region24
      $region23: #{forward.4} parent=19 // pred_region
        %s140 = smul.u32 8, %s16
        %s141 = smul.u32 6, %s17
        %p142 = scmp.lt.s32.totalorder %s15, 1
        %s143 = scalar_select %p142, %s15, 1
        %p144 = scmp.lt.s32.totalorder %s140, 7
        %s145 = scalar_select %p144, %s140, 7
        %p146 = scmp.lt.s32.totalorder %s141, 5
        %s147 = scalar_select %p146, %s141, 5
        %s148 = smul.addr %s145, 6
        %s149 = sadd.s32 %s147, %s148
        %s150 = smul.addr %s143, 48
        %s151 = sadd.s32 %s149, %s150
        %s152 = smul.addr %s151, 4
        %s153 = scalar_lea.vmem %s0, %s152
        %s154 = smul.u32 8, %s16
        %s155 = smul.u32 6, %s17
      $region24: #{forward.4} parent=19 // pred_fallthru
        _
    $region20: #{forward.4} parent=5 // pred_fallthru
      _
    %p156 = scmp.le.s32.totalorder 1, %s8
    %p157 = scmp.lt.s32.totalorder %s8, 3
    %p158 = pnand %p156, %p157
    %p159 = pneg %p158
    // Predicated region
    $region25: #{forward.4} parent=5 // pred_check
      _
    $region26: #{forward.4} parent=5 // pred_check_branch
      %161 = sbr.rel (%p158) target = $region28
    $region27: #{forward.4} parent=5 // pred_region
      %s162 = ssub.s32 %s8, 1
      %s163 = smul.u32 8, %s19
      %s164 = smul.u32 6, %s20
      %p165 = scmp.lt.s32.totalorder %s18, 1
      %s166 = scalar_select %p165, %s18, 1
      %p167 = scmp.lt.s32.totalorder %s163, 7
      %s168 = scalar_select %p167, %s163, 7
      %p169 = scmp.lt.s32.totalorder %s164, 5
      %s170 = scalar_select %p169, %s164, 5
      %s171 = smul.addr %s168, 6
      %s172 = sadd.s32 %s170, %s171
      %s173 = smul.addr %s166, 48
      %s174 = sadd.s32 %s172, %s173
      %s175 = smul.addr %s174, 4
      %s176 = scalar_lea.vmem %s0, %s175
      %p177 = pneg %p57
      %p178 = pneg %p54
      %s179 = smul.u32 96, %s20
      %p180 = scmp.lt.s32.totalorder %s179, 95
      %s181 = scalar_select %p180, %s179, 95
      %s182 = smul.addr %s181, 4
      %s183 = scalar_lea.vmem %s1, %s182
      %p184 = pneg %p83
      %p185 = pneg %p80
      %p186 = pneg %p109
      %p187 = pneg %p106
      %p188 = scmp.lt.s32.totalorder %s18, 1
      %s189 = scalar_select %p188, %s18, 1
      %s190 = scalar_lea.vmem %s2, %s189
      %s191 = smul.u32 8, %s19
      %s192 = smul.u32 6, %s20
      %p193 = scmp.lt.s32.totalorder %s18, 1
      %s194 = scalar_select %p193, %s18, 1
      %p195 = scmp.lt.s32.totalorder %s191, 7
      %s196 = scalar_select %p195, %s191, 7
      %p197 = scmp.lt.s32.totalorder %s192, 5
      %s198 = scalar_select %p197, %s192, 5
      %s199 = smul.addr %s196, 6
      %s200 = sadd.s32 %s198, %s199
      %s201 = smul.addr %s194, 48
      %s202 = sadd.s32 %s200, %s201
      %s203 = smul.addr %s202, 4
      %s204 = scalar_lea.vmem %s0, %s203
      %s205 = smul.u32 8, %s19
      %s206 = smul.u32 6, %s20
      %s207 = smul.u32 96, %s20
      %p208 = scmp.lt.s32.totalorder %s207, 95
      %s209 = scalar_select %p208, %s207, 95
      %s210 = smul.addr %s209, 4
      %s211 = scalar_lea.vmem %s1, %s210
      %s212 = smul.u32 96, %s20
      %p213 = scmp.lt.s32.totalorder %s18, 1
      %s214 = scalar_select %p213, %s18, 1
      %s215 = scalar_lea.vmem %s2, %s214
      %p217 = scmp.eq.s32.totalorder %s19, 0
      %p218 = scmp.eq.s32.totalorder %s20, 0
      %p219 = pnand %p217, %p218
      %p220 = pneg %p219
      // Predicated region
      $region29: #{forward.4} parent=27 // pred_check
        _
      $region30: #{forward.4} parent=27 // pred_check_branch
        %222 = sbr.rel (%p219) target = $region32
      $region31: #{forward.4} parent=27 // pred_region
        %223 = vst [vmem:[%s215] sm:$0x1] 0.0
      $region32: #{forward.4} parent=27 // pred_fallthru
        _
      %v224 = vld [vmem:[%s204] sm:$0xff]
      %v225 = vld [vmem:[%s204 + $0x8] sm:$0xff]
      %v226 = vld [vmem:[%s204 + $0x10] sm:$0xff]
      %v227 = vld [vmem:[%s204 + $0x18] sm:$0xff]
      %v228 = vld [vmem:[%s204 + $0x20] sm:$0xff]
      %v229 = vld [vmem:[%s204 + $0x28] sm:$0xff]
      %v230 = vld [vmem:[%s204 + $0x30] sm:$0xff]
      %v231 = vld [vmem:[%s204 + $0x38] sm:$0xff]
      %v232 = vld [vmem:[%s204 + $0x40] sm:$0xff]
      %v233 = vld [vmem:[%s204 + $0x48] sm:$0xff]
      %v234 = vld [vmem:[%s204 + $0x50] sm:$0xff]
      %v235 = vld [vmem:[%s204 + $0x58] sm:$0xff]
      %v236 = vld [vmem:[%s204 + $0x60] sm:$0xff]
      %v237 = vld [vmem:[%s204 + $0x68] sm:$0xff]
      %v238 = vld [vmem:[%s204 + $0x70] sm:$0xff]
      %v239 = vld [vmem:[%s204 + $0x78] sm:$0xff]
      %v240 = vld [vmem:[%s204 + $0x80] sm:$0xff]
      %v241 = vld [vmem:[%s204 + $0x88] sm:$0xff]
      %v242 = vld [vmem:[%s204 + $0x90] sm:$0xff]
      %v243 = vld [vmem:[%s204 + $0x98] sm:$0xff]
      %v244 = vld [vmem:[%s204 + $0xa0] sm:$0xff]
      %v245 = vld [vmem:[%s204 + $0xa8] sm:$0xff]
      %v246 = vld [vmem:[%s204 + $0xb0] sm:$0xff]
      %v247 = vld [vmem:[%s204 + $0xb8] sm:$0xff]
      %v248 = vld [vmem:[%s211] sm:$0xf]
      %v249 = vld [vmem:[%s211 + $0x4] sm:$0xf]
      %v250 = vld [vmem:[%s211 + $0x8] sm:$0xf]
      %v251 = vld [vmem:[%s211 + $0xc] sm:$0xf]
      %v252 = vld [vmem:[%s211 + $0x10] sm:$0xf]
      %v253 = vld [vmem:[%s211 + $0x14] sm:$0xf]
      %v254 = vld [vmem:[%s211 + $0x18] sm:$0xf]
      %v255 = vld [vmem:[%s211 + $0x1c] sm:$0xf]
      %v256 = vld [vmem:[%s211 + $0x20] sm:$0xf]
      %v257 = vld [vmem:[%s211 + $0x24] sm:$0xf]
      %v258 = vld [vmem:[%s211 + $0x28] sm:$0xf]
      %v259 = vld [vmem:[%s211 + $0x2c] sm:$0xf]
      %v260 = vld [vmem:[%s211 + $0x30] sm:$0xf]
      %v261 = vld [vmem:[%s211 + $0x34] sm:$0xf]
      %v262 = vld [vmem:[%s211 + $0x38] sm:$0xf]
      %v263 = vld [vmem:[%s211 + $0x3c] sm:$0xf]
      %v264 = vld [vmem:[%s211 + $0x40] sm:$0xf]
      %v265 = vld [vmem:[%s211 + $0x44] sm:$0xf]
      %v266 = vld [vmem:[%s211 + $0x48] sm:$0xf]
      %v267 = vld [vmem:[%s211 + $0x4c] sm:$0xf]
      %v268 = vld [vmem:[%s211 + $0x50] sm:$0xf]
      %v269 = vld [vmem:[%s211 + $0x54] sm:$0xf]
      %v270 = vld [vmem:[%s211 + $0x58] sm:$0xf]
      %v271 = vld [vmem:[%s211 + $0x5c] sm:$0xf]
      %v272 = vld [vmem:[%s211 + $0x60] sm:$0xf]
      %v273 = vld [vmem:[%s211 + $0x64] sm:$0xf]
      %v274 = vld [vmem:[%s211 + $0x68] sm:$0xf]
      %v275 = vld [vmem:[%s211 + $0x6c] sm:$0xf]
      %v276 = vld [vmem:[%s211 + $0x70] sm:$0xf]
      %v277 = vld [vmem:[%s211 + $0x74] sm:$0xf]
      %v278 = vld [vmem:[%s211 + $0x78] sm:$0xf]
      %v279 = vld [vmem:[%s211 + $0x7c] sm:$0xf]
      %v280 = vld [vmem:[%s211 + $0x80] sm:$0xf]
      %v281 = vld [vmem:[%s211 + $0x84] sm:$0xf]
      %v282 = vld [vmem:[%s211 + $0x88] sm:$0xf]
      %v283 = vld [vmem:[%s211 + $0x8c] sm:$0xf]
      %v284 = vld [vmem:[%s211 + $0x90] sm:$0xf]
      %v285 = vld [vmem:[%s211 + $0x94] sm:$0xf]
      %v286 = vld [vmem:[%s211 + $0x98] sm:$0xf]
      %v287 = vld [vmem:[%s211 + $0x9c] sm:$0xf]
      %v288 = vld [vmem:[%s211 + $0xa0] sm:$0xf]
      %v289 = vld [vmem:[%s211 + $0xa4] sm:$0xf]
      %v290 = vld [vmem:[%s211 + $0xa8] sm:$0xf]
      %v291 = vld [vmem:[%s211 + $0xac] sm:$0xf]
      %v292 = vld [vmem:[%s211 + $0xb0] sm:$0xf]
      %v293 = vld [vmem:[%s211 + $0xb4] sm:$0xf]
      %v294 = vld [vmem:[%s211 + $0xb8] sm:$0xf]
      %v295 = vld [vmem:[%s211 + $0xbc] sm:$0xf]
      %v296 = vld [vmem:[%s211 + $0xc0] sm:$0xf]
      %v297 = vld [vmem:[%s211 + $0xc4] sm:$0xf]
      %v298 = vld [vmem:[%s211 + $0xc8] sm:$0xf]
      %v299 = vld [vmem:[%s211 + $0xcc] sm:$0xf]
      %v300 = vld [vmem:[%s211 + $0xd0] sm:$0xf]
      %v301 = vld [vmem:[%s211 + $0xd4] sm:$0xf]
      %v302 = vld [vmem:[%s211 + $0xd8] sm:$0xf]
      %v303 = vld [vmem:[%s211 + $0xdc] sm:$0xf]
      %v304 = vld [vmem:[%s211 + $0xe0] sm:$0xf]
      %v305 = vld [vmem:[%s211 + $0xe4] sm:$0xf]
      %v306 = vld [vmem:[%s211 + $0xe8] sm:$0xf]
      %v307 = vld [vmem:[%s211 + $0xec] sm:$0xf]
      %v308 = vld [vmem:[%s211 + $0xf0] sm:$0xf]
      %v309 = vld [vmem:[%s211 + $0xf4] sm:$0xf]
      %v310 = vld [vmem:[%s211 + $0xf8] sm:$0xf]
      %v311 = vld [vmem:[%s211 + $0xfc] sm:$0xf]
      %v312 = vld [vmem:[%s211 + $0x100] sm:$0xf]
      %v313 = vld [vmem:[%s211 + $0x104] sm:$0xf]
      %v314 = vld [vmem:[%s211 + $0x108] sm:$0xf]
      %v315 = vld [vmem:[%s211 + $0x10c] sm:$0xf]
      %v316 = vld [vmem:[%s211 + $0x110] sm:$0xf]
      %v317 = vld [vmem:[%s211 + $0x114] sm:$0xf]
      %v318 = vld [vmem:[%s211 + $0x118] sm:$0xf]
      %v319 = vld [vmem:[%s211 + $0x11c] sm:$0xf]
      %v320 = vld [vmem:[%s211 + $0x120] sm:$0xf]
      %v321 = vld [vmem:[%s211 + $0x124] sm:$0xf]
      %v322 = vld [vmem:[%s211 + $0x128] sm:$0xf]
      %v323 = vld [vmem:[%s211 + $0x12c] sm:$0xf]
      %v324 = vld [vmem:[%s211 + $0x130] sm:$0xf]
      %v325 = vld [vmem:[%s211 + $0x134] sm:$0xf]
      %v326 = vld [vmem:[%s211 + $0x138] sm:$0xf]
      %v327 = vld [vmem:[%s211 + $0x13c] sm:$0xf]
      %v328 = vld [vmem:[%s211 + $0x140] sm:$0xf]
      %v329 = vld [vmem:[%s211 + $0x144] sm:$0xf]
      %v330 = vld [vmem:[%s211 + $0x148] sm:$0xf]
      %v331 = vld [vmem:[%s211 + $0x14c] sm:$0xf]
      %v332 = vld [vmem:[%s211 + $0x150] sm:$0xf]
      %v333 = vld [vmem:[%s211 + $0x154] sm:$0xf]
      %v334 = vld [vmem:[%s211 + $0x158] sm:$0xf]
      %v335 = vld [vmem:[%s211 + $0x15c] sm:$0xf]
      %v336 = vld [vmem:[%s211 + $0x160] sm:$0xf]
      %v337 = vld [vmem:[%s211 + $0x164] sm:$0xf]
      %v338 = vld [vmem:[%s211 + $0x168] sm:$0xf]
      %v339 = vld [vmem:[%s211 + $0x16c] sm:$0xf]
      %v340 = vld [vmem:[%s211 + $0x170] sm:$0xf]
      %v341 = vld [vmem:[%s211 + $0x174] sm:$0xf]
      %v342 = vld [vmem:[%s211 + $0x178] sm:$0xf]
      %v343 = vld [vmem:[%s211 + $0x17c] sm:$0xf]
      %v368 = vunpack.c.l.b16 %v224
      %v369 = vunpack.c.h.b16 %v224
      %v370 = vunpack.c.l.b16 %v225
      %v371 = vunpack.c.h.b16 %v225
      %v372 = vunpack.c.l.b16 %v226
      %v373 = vunpack.c.h.b16 %v226
      %v374 = vunpack.c.l.b16 %v227
      %v375 = vunpack.c.h.b16 %v227
      %v376 = vunpack.c.l.b16 %v228
      %v377 = vunpack.c.h.b16 %v228
      %v378 = vunpack.c.l.b16 %v229
      %v379 = vunpack.c.h.b16 %v229
      %v380 = vunpack.c.l.b16 %v230
      %v381 = vunpack.c.h.b16 %v230
      %v382 = vunpack.c.l.b16 %v231
      %v383 = vunpack.c.h.b16 %v231
      %v384 = vunpack.c.l.b16 %v232
      %v385 = vunpack.c.h.b16 %v232
      %v386 = vunpack.c.l.b16 %v233
      %v387 = vunpack.c.h.b16 %v233
      %v388 = vunpack.c.l.b16 %v234
      %v389 = vunpack.c.h.b16 %v234
      %v390 = vunpack.c.l.b16 %v235
      %v391 = vunpack.c.h.b16 %v235
      %v392 = vunpack.c.l.b16 %v236
      %v393 = vunpack.c.h.b16 %v236
      %v394 = vunpack.c.l.b16 %v237
      %v395 = vunpack.c.h.b16 %v237
      %v396 = vunpack.c.l.b16 %v238
      %v397 = vunpack.c.h.b16 %v238
      %v398 = vunpack.c.l.b16 %v239
      %v399 = vunpack.c.h.b16 %v239
      %v400 = vunpack.c.l.b16 %v240
      %v401 = vunpack.c.h.b16 %v240
      %v402 = vunpack.c.l.b16 %v241
      %v403 = vunpack.c.h.b16 %v241
      %v404 = vunpack.c.l.b16 %v242
      %v405 = vunpack.c.h.b16 %v242
      %v406 = vunpack.c.l.b16 %v243
      %v407 = vunpack.c.h.b16 %v243
      %v408 = vunpack.c.l.b16 %v244
      %v409 = vunpack.c.h.b16 %v244
      %v410 = vunpack.c.l.b16 %v245
      %v411 = vunpack.c.h.b16 %v245
      %v412 = vunpack.c.l.b16 %v246
      %v413 = vunpack.c.h.b16 %v246
      %v414 = vunpack.c.l.b16 %v247
      %v415 = vunpack.c.h.b16 %v247
      %v416 = vpack.c.b16 %v374, %v368
      %v417 = vpack.c.b16 %v375, %v369
      %v418 = vpack.c.b16 %v376, %v370
      %v419 = vpack.c.b16 %v377, %v371
      %v420 = vpack.c.b16 %v378, %v372
      %v421 = vpack.c.b16 %v379, %v373
      %v422 = vpack.c.b16 %v386, %v380
      %v423 = vpack.c.b16 %v387, %v381
      %v424 = vpack.c.b16 %v388, %v382
      %v425 = vpack.c.b16 %v389, %v383
      %v426 = vpack.c.b16 %v390, %v384
      %v427 = vpack.c.b16 %v391, %v385
      %v428 = vpack.c.b16 %v398, %v392
      %v429 = vpack.c.b16 %v399, %v393
      %v430 = vpack.c.b16 %v400, %v394
      %v431 = vpack.c.b16 %v401, %v395
      %v432 = vpack.c.b16 %v402, %v396
      %v433 = vpack.c.b16 %v403, %v397
      %v434 = vpack.c.b16 %v410, %v404
      %v435 = vpack.c.b16 %v411, %v405
      %v436 = vpack.c.b16 %v412, %v406
      %v437 = vpack.c.b16 %v413, %v407
      %v438 = vpack.c.b16 %v414, %v408
      %v439 = vpack.c.b16 %v415, %v409
      %v560 = vunpack.c.l.b16 %v248
      %v561 = vunpack.c.l.b16 %v249
      %v562 = vunpack.c.l.b16 %v250
      %v563 = vunpack.c.l.b16 %v251
      %v564 = vunpack.c.l.b16 %v252
      %v565 = vunpack.c.l.b16 %v253
      %v566 = vunpack.c.l.b16 %v254
      %v567 = vunpack.c.l.b16 %v255
      %v568 = vunpack.c.l.b16 %v256
      %v569 = vunpack.c.l.b16 %v257
      %v570 = vunpack.c.l.b16 %v258
      %v571 = vunpack.c.l.b16 %v259
      %v572 = vunpack.c.l.b16 %v260
      %v573 = vunpack.c.l.b16 %v261
      %v574 = vunpack.c.l.b16 %v262
      %v575 = vunpack.c.l.b16 %v263
      %v576 = vunpack.c.l.b16 %v264
      %v577 = vunpack.c.l.b16 %v265
      %v578 = vunpack.c.l.b16 %v266
      %v579 = vunpack.c.l.b16 %v267
      %v580 = vunpack.c.l.b16 %v268
      %v581 = vunpack.c.l.b16 %v269
      %v582 = vunpack.c.l.b16 %v270
      %v583 = vunpack.c.l.b16 %v271
      %v584 = vunpack.c.l.b16 %v272
      %v585 = vunpack.c.l.b16 %v273
      %v586 = vunpack.c.l.b16 %v274
      %v587 = vunpack.c.l.b16 %v275
      %v588 = vunpack.c.l.b16 %v276
      %v589 = vunpack.c.l.b16 %v277
      %v590 = vunpack.c.l.b16 %v278
      %v591 = vunpack.c.l.b16 %v279
      %v592 = vunpack.c.l.b16 %v280
      %v593 = vunpack.c.l.b16 %v281
      %v594 = vunpack.c.l.b16 %v282
      %v595 = vunpack.c.l.b16 %v283
      %v596 = vunpack.c.l.b16 %v284
      %v597 = vunpack.c.l.b16 %v285
      %v598 = vunpack.c.l.b16 %v286
      %v599 = vunpack.c.l.b16 %v287
      %v600 = vunpack.c.l.b16 %v288
      %v601 = vunpack.c.l.b16 %v289
      %v602 = vunpack.c.l.b16 %v290
      %v603 = vunpack.c.l.b16 %v291
      %v604 = vunpack.c.l.b16 %v292
      %v605 = vunpack.c.l.b16 %v293
      %v606 = vunpack.c.l.b16 %v294
      %v607 = vunpack.c.l.b16 %v295
      %v608 = vunpack.c.l.b16 %v296
      %v609 = vunpack.c.l.b16 %v297
      %v610 = vunpack.c.l.b16 %v298
      %v611 = vunpack.c.l.b16 %v299
      %v612 = vunpack.c.l.b16 %v300
      %v613 = vunpack.c.l.b16 %v301
      %v614 = vunpack.c.l.b16 %v302
      %v615 = vunpack.c.l.b16 %v303
      %v616 = vunpack.c.l.b16 %v304
      %v617 = vunpack.c.l.b16 %v305
      %v618 = vunpack.c.l.b16 %v306
      %v619 = vunpack.c.l.b16 %v307
      %v620 = vunpack.c.l.b16 %v308
      %v621 = vunpack.c.l.b16 %v309
      %v622 = vunpack.c.l.b16 %v310
      %v623 = vunpack.c.l.b16 %v311
      %v624 = vunpack.c.l.b16 %v312
      %v625 = vunpack.c.l.b16 %v313
      %v626 = vunpack.c.l.b16 %v314
      %v627 = vunpack.c.l.b16 %v315
      %v628 = vunpack.c.l.b16 %v316
      %v629 = vunpack.c.l.b16 %v317
      %v630 = vunpack.c.l.b16 %v318
      %v631 = vunpack.c.l.b16 %v319
      %v632 = vunpack.c.l.b16 %v320
      %v633 = vunpack.c.l.b16 %v321
      %v634 = vunpack.c.l.b16 %v322
      %v635 = vunpack.c.l.b16 %v323
      %v636 = vunpack.c.l.b16 %v324
      %v637 = vunpack.c.l.b16 %v325
      %v638 = vunpack.c.l.b16 %v326
      %v639 = vunpack.c.l.b16 %v327
      %v640 = vunpack.c.l.b16 %v328
      %v641 = vunpack.c.l.b16 %v329
      %v642 = vunpack.c.l.b16 %v330
      %v643 = vunpack.c.l.b16 %v331
      %v644 = vunpack.c.l.b16 %v332
      %v645 = vunpack.c.l.b16 %v333
      %v646 = vunpack.c.l.b16 %v334
      %v647 = vunpack.c.l.b16 %v335
      %v648 = vunpack.c.l.b16 %v336
      %v649 = vunpack.c.l.b16 %v337
      %v650 = vunpack.c.l.b16 %v338
      %v651 = vunpack.c.l.b16 %v339
      %v652 = vunpack.c.l.b16 %v340
      %v653 = vunpack.c.l.b16 %v341
      %v654 = vunpack.c.l.b16 %v342
      %v655 = vunpack.c.l.b16 %v343
      %v656 = vpack.c.b16 %v561, %v560
      %v657 = vpack.c.b16 %v563, %v562
      %v658 = vpack.c.b16 %v565, %v564
      %v659 = vpack.c.b16 %v567, %v566
      %v660 = vpack.c.b16 %v569, %v568
      %v661 = vpack.c.b16 %v571, %v570
      %v662 = vpack.c.b16 %v573, %v572
      %v663 = vpack.c.b16 %v575, %v574
      %v664 = vpack.c.b16 %v577, %v576
      %v665 = vpack.c.b16 %v579, %v578
      %v666 = vpack.c.b16 %v581, %v580
      %v667 = vpack.c.b16 %v583, %v582
      %v668 = vpack.c.b16 %v585, %v584
      %v669 = vpack.c.b16 %v587, %v586
      %v670 = vpack.c.b16 %v589, %v588
      %v671 = vpack.c.b16 %v591, %v590
      %v672 = vpack.c.b16 %v593, %v592
      %v673 = vpack.c.b16 %v595, %v594
      %v674 = vpack.c.b16 %v597, %v596
      %v675 = vpack.c.b16 %v599, %v598
      %v676 = vpack.c.b16 %v601, %v600
      %v677 = vpack.c.b16 %v603, %v602
      %v678 = vpack.c.b16 %v605, %v604
      %v679 = vpack.c.b16 %v607, %v606
      %v680 = vpack.c.b16 %v609, %v608
      %v681 = vpack.c.b16 %v611, %v610
      %v682 = vpack.c.b16 %v613, %v612
      %v683 = vpack.c.b16 %v615, %v614
      %v684 = vpack.c.b16 %v617, %v616
      %v685 = vpack.c.b16 %v619, %v618
      %v686 = vpack.c.b16 %v621, %v620
      %v687 = vpack.c.b16 %v623, %v622
      %v688 = vpack.c.b16 %v625, %v624
      %v689 = vpack.c.b16 %v627, %v626
      %v690 = vpack.c.b16 %v629, %v628
      %v691 = vpack.c.b16 %v631, %v630
      %v692 = vpack.c.b16 %v633, %v632
      %v693 = vpack.c.b16 %v635, %v634
      %v694 = vpack.c.b16 %v637, %v636
      %v695 = vpack.c.b16 %v639, %v638
      %v696 = vpack.c.b16 %v641, %v640
      %v697 = vpack.c.b16 %v643, %v642
      %v698 = vpack.c.b16 %v645, %v644
      %v699 = vpack.c.b16 %v647, %v646
      %v700 = vpack.c.b16 %v649, %v648
      %v701 = vpack.c.b16 %v651, %v650
      %v702 = vpack.c.b16 %v653, %v652
      %v703 = vpack.c.b16 %v655, %v654
      %752 = vmatprep.subr.bf16.mxu0 0
      %753 = vmatpush1.bf16.msra.mxu0 %v663
      %754 = vmatprep.subr.bf16.mxu0 0
      %755 = vmatpush1.bf16.msra.mxu0 %v662
      %756 = vmatprep.subr.bf16.mxu0 0
      %757 = vmatpush1.bf16.msra.mxu0 %v661
      %758 = vmatprep.subr.bf16.mxu0 0
      %759 = vmatpush1.bf16.msra.mxu0 %v660
      %760 = vmatprep.subr.bf16.mxu0 0
      %761 = vmatpush1.bf16.msra.mxu0 %v659
      %762 = vmatprep.subr.bf16.mxu0 0
      %763 = vmatpush1.bf16.msra.mxu0 %v658
      %764 = vmatprep.subr.bf16.mxu0 0
      %765 = vmatpush1.bf16.msra.mxu0 %v657
      %766 = vmatprep.subr.bf16.mxu0 0
      %767 = vmatpush1.bf16.msra.mxu0 %v656
      %768 = vmatprep.subr.bf16.mxu0 0
      %769 = vmatpush2.bf16.msra.mxu0 %v671
      %770 = vmatprep.subr.bf16.mxu0 0
      %771 = vmatpush2.bf16.msra.mxu0 %v670
      %772 = vmatprep.subr.bf16.mxu0 0
      %773 = vmatpush2.bf16.msra.mxu0 %v669
      %774 = vmatprep.subr.bf16.mxu0 0
      %775 = vmatpush2.bf16.msra.mxu0 %v668
      %776 = vmatprep.subr.bf16.mxu0 0
      %777 = vmatpush2.bf16.msra.mxu0 %v667
      %778 = vmatprep.subr.bf16.mxu0 0
      %779 = vmatpush2.bf16.msra.mxu0 %v666
      %780 = vmatprep.subr.bf16.mxu0 0
      %781 = vmatpush2.bf16.msra.mxu0 %v665
      %782 = vmatprep.subr.bf16.mxu0 0
      %783 = vmatpush2.bf16.msra.mxu0 %v664
      %784 = vmatprep.mubr.bf16.mxu0 %v417
      %785 = vmatmul.mubr.bf16.gmra.mxu0 %v416
      %v786 = vpop.f32.mrf.mxu0
      %v787 = vadd.f32 0.0, %v786
      %v788 = vpop.f32.mrf.mxu0
      %v789 = vpop.f32.mrf.mxu0
      %v790 = vadd.f32 0.0, %v789
      %v791 = vpop.f32.mrf.mxu0
      %792 = vmatprep.mubr.bf16.mxu0 %v423
      %793 = vmatmul.mubr.bf16.gmra.mxu0 %v422
      %v794 = vpop.f32.mrf.mxu0
      %v795 = vadd.f32 0.0, %v794
      %v796 = vpop.f32.mrf.mxu0
      %v797 = vpop.f32.mrf.mxu0
      %v798 = vadd.f32 0.0, %v797
      %v799 = vpop.f32.mrf.mxu0
      %800 = vmatprep.mubr.bf16.mxu0 %v429
      %801 = vmatmul.mubr.bf16.gmra.mxu0 %v428
      %v802 = vpop.f32.mrf.mxu0
      %v803 = vadd.f32 0.0, %v802
      %v804 = vpop.f32.mrf.mxu0
      %v805 = vpop.f32.mrf.mxu0
      %v806 = vadd.f32 0.0, %v805
      %v807 = vpop.f32.mrf.mxu0
      %808 = vmatprep.mubr.bf16.mxu0 %v435
      %809 = vmatmul.mubr.bf16.gmra.mxu0 %v434
      %v810 = vpop.f32.mrf.mxu0
      %v811 = vadd.f32 0.0, %v810
      %v812 = vpop.f32.mrf.mxu0
      %v813 = vpop.f32.mrf.mxu0
      %v814 = vadd.f32 0.0, %v813
      %v815 = vpop.f32.mrf.mxu0
      %816 = vdwg.mxu0
      %817 = vmatprep.subr.bf16.mxu0 0
      %818 = vmatpush1.bf16.msra.mxu0 %v679
      %819 = vmatprep.subr.bf16.mxu0 0
      %820 = vmatpush1.bf16.msra.mxu0 %v678
      %821 = vmatprep.subr.bf16.mxu0 0
      %822 = vmatpush1.bf16.msra.mxu0 %v677
      %823 = vmatprep.subr.bf16.mxu0 0
      %824 = vmatpush1.bf16.msra.mxu0 %v676
      %825 = vmatprep.subr.bf16.mxu0 0
      %826 = vmatpush1.bf16.msra.mxu0 %v675
      %827 = vmatprep.subr.bf16.mxu0 0
      %828 = vmatpush1.bf16.msra.mxu0 %v674
      %829 = vmatprep.subr.bf16.mxu0 0
      %830 = vmatpush1.bf16.msra.mxu0 %v673
      %831 = vmatprep.subr.bf16.mxu0 0
      %832 = vmatpush1.bf16.msra.mxu0 %v672
      %833 = vmatprep.subr.bf16.mxu0 0
      %834 = vmatpush2.bf16.msra.mxu0 %v687
      %835 = vmatprep.subr.bf16.mxu0 0
      %836 = vmatpush2.bf16.msra.mxu0 %v686
      %837 = vmatprep.subr.bf16.mxu0 0
      %838 = vmatpush2.bf16.msra.mxu0 %v685
      %839 = vmatprep.subr.bf16.mxu0 0
      %840 = vmatpush2.bf16.msra.mxu0 %v684
      %841 = vmatprep.subr.bf16.mxu0 0
      %842 = vmatpush2.bf16.msra.mxu0 %v683
      %843 = vmatprep.subr.bf16.mxu0 0
      %844 = vmatpush2.bf16.msra.mxu0 %v682
      %845 = vmatprep.subr.bf16.mxu0 0
      %846 = vmatpush2.bf16.msra.mxu0 %v681
      %847 = vmatprep.subr.bf16.mxu0 0
      %848 = vmatpush2.bf16.msra.mxu0 %v680
      %849 = vmatprep.mubr.bf16.mxu0 %v419
      %850 = vmatmul.mubr.bf16.gmra.mxu0 %v418
      %v851 = vpop.f32.mrf.mxu0
      %v852 = vadd.f32 %v787, %v851
      %v853 = vpop.f32.mrf.mxu0
      %v854 = vpop.f32.mrf.mxu0
      %v855 = vadd.f32 %v790, %v854
      %v856 = vpop.f32.mrf.mxu0
      %857 = vmatprep.mubr.bf16.mxu0 %v425
      %858 = vmatmul.mubr.bf16.gmra.mxu0 %v424
      %v859 = vpop.f32.mrf.mxu0
      %v860 = vadd.f32 %v795, %v859
      %v861 = vpop.f32.mrf.mxu0
      %v862 = vpop.f32.mrf.mxu0
      %v863 = vadd.f32 %v798, %v862
      %v864 = vpop.f32.mrf.mxu0
      %865 = vmatprep.mubr.bf16.mxu0 %v431
      %866 = vmatmul.mubr.bf16.gmra.mxu0 %v430
      %v867 = vpop.f32.mrf.mxu0
      %v868 = vadd.f32 %v803, %v867
      %v869 = vpop.f32.mrf.mxu0
      %v870 = vpop.f32.mrf.mxu0
      %v871 = vadd.f32 %v806, %v870
      %v872 = vpop.f32.mrf.mxu0
      %873 = vmatprep.mubr.bf16.mxu0 %v437
      %874 = vmatmul.mubr.bf16.gmra.mxu0 %v436
      %v875 = vpop.f32.mrf.mxu0
      %v876 = vadd.f32 %v811, %v875
      %v877 = vpop.f32.mrf.mxu0
      %v878 = vpop.f32.mrf.mxu0
      %v879 = vadd.f32 %v814, %v878
      %v880 = vpop.f32.mrf.mxu0
      %881 = vdwg.mxu0
      %882 = vmatprep.subr.bf16.mxu0 0
      %883 = vmatpush1.bf16.msra.mxu0 %v695
      %884 = vmatprep.subr.bf16.mxu0 0
      %885 = vmatpush1.bf16.msra.mxu0 %v694
      %886 = vmatprep.subr.bf16.mxu0 0
      %887 = vmatpush1.bf16.msra.mxu0 %v693
      %888 = vmatprep.subr.bf16.mxu0 0
      %889 = vmatpush1.bf16.msra.mxu0 %v692
      %890 = vmatprep.subr.bf16.mxu0 0
      %891 = vmatpush1.bf16.msra.mxu0 %v691
      %892 = vmatprep.subr.bf16.mxu0 0
      %893 = vmatpush1.bf16.msra.mxu0 %v690
      %894 = vmatprep.subr.bf16.mxu0 0
      %895 = vmatpush1.bf16.msra.mxu0 %v689
      %896 = vmatprep.subr.bf16.mxu0 0
      %897 = vmatpush1.bf16.msra.mxu0 %v688
      %898 = vmatprep.subr.bf16.mxu0 0
      %899 = vmatpush2.bf16.msra.mxu0 %v703
      %900 = vmatprep.subr.bf16.mxu0 0
      %901 = vmatpush2.bf16.msra.mxu0 %v702
      %902 = vmatprep.subr.bf16.mxu0 0
      %903 = vmatpush2.bf16.msra.mxu0 %v701
      %904 = vmatprep.subr.bf16.mxu0 0
      %905 = vmatpush2.bf16.msra.mxu0 %v700
      %906 = vmatprep.subr.bf16.mxu0 0
      %907 = vmatpush2.bf16.msra.mxu0 %v699
      %908 = vmatprep.subr.bf16.mxu0 0
      %909 = vmatpush2.bf16.msra.mxu0 %v698
      %910 = vmatprep.subr.bf16.mxu0 0
      %911 = vmatpush2.bf16.msra.mxu0 %v697
      %912 = vmatprep.subr.bf16.mxu0 0
      %913 = vmatpush2.bf16.msra.mxu0 %v696
      %914 = vmatprep.mubr.bf16.mxu0 %v421
      %915 = vmatmul.mubr.bf16.gmra.mxu0 %v420
      %v916 = vpop.f32.mrf.mxu0
      %v917 = vadd.f32 %v852, %v916
      %v918 = vpop.f32.mrf.mxu0
      %v919 = vpop.f32.mrf.mxu0
      %v920 = vadd.f32 %v855, %v919
      %v921 = vpop.f32.mrf.mxu0
      %922 = vmatprep.mubr.bf16.mxu0 %v427
      %923 = vmatmul.mubr.bf16.gmra.mxu0 %v426
      %v924 = vpop.f32.mrf.mxu0
      %v925 = vadd.f32 %v860, %v924
      %v926 = vpop.f32.mrf.mxu0
      %v927 = vpop.f32.mrf.mxu0
      %v928 = vadd.f32 %v863, %v927
      %v929 = vpop.f32.mrf.mxu0
      %930 = vmatprep.mubr.bf16.mxu0 %v433
      %931 = vmatmul.mubr.bf16.gmra.mxu0 %v432
      %v932 = vpop.f32.mrf.mxu0
      %v933 = vadd.f32 %v868, %v932
      %v934 = vpop.f32.mrf.mxu0
      %v935 = vpop.f32.mrf.mxu0
      %v936 = vadd.f32 %v871, %v935
      %v937 = vpop.f32.mrf.mxu0
      %938 = vmatprep.mubr.bf16.mxu0 %v439
      %939 = vmatmul.mubr.bf16.gmra.mxu0 %v438
      %v940 = vpop.f32.mrf.mxu0
      %v941 = vadd.f32 %v876, %v940
      %v942 = vpop.f32.mrf.mxu0
      %v943 = vpop.f32.mrf.mxu0
      %v944 = vadd.f32 %v879, %v943
      %v945 = vpop.f32.mrf.mxu0
      %946 = vdwg.mxu0
      %v947 = vld [vmem:[%s215] sm:$0x1]
      %v948 = vadd.f32 %v917, %v920
      %v949 = vadd.f32 %v948, %v925
      %v950 = vadd.f32 %v949, %v928
      %v951 = vadd.f32 %v950, %v933
      %v952 = vadd.f32 %v951, %v936
      %v953 = vadd.f32 %v952, %v941
      %v954 = vadd.f32 %v953, %v944
      %v955 = vrot.slane %v954, 4
      %v956 = vadd.f32 %v954, %v955
      %v957 = vrot.slane %v956, 2
      %v958 = vadd.f32 %v956, %v957
      %v959 = vrot.slane %v958, 1
      %v960 = vadd.f32 %v958, %v959
      %v961 = vadd.f32 %v947, %v960
      %962 = vst [vmem:[%s215] sm:$0x1] %v961
      %p963 = scmp.lt.s32.totalorder %s18, 1
      %s964 = scalar_select %p963, %s18, 1
      %s965 = scalar_lea.vmem %s2, %s964
      // Predicated region
      $region33: #{forward.4} parent=27 // pred_check
        %p966 = pneg %p106
      $region34: #{forward.4} parent=27 // pred_check_branch
        %968 = sbr.rel (%p966) target = $region36
      $region35: #{forward.4} parent=27 // pred_region
        _
      $region36: #{forward.4} parent=27 // pred_fallthru
        _
    $region28: #{forward.4} parent=5 // pred_fallthru
      _
    %p969 = scmp.le.s32.totalorder 2, %s8
    // Predicated region
    $region37: #{forward.4} parent=5 // pred_check
      %p970 = pneg %p969
    $region38: #{forward.4} parent=5 // pred_check_branch
      %972 = sbr.rel (%p970) target = $region40
    $region39: #{forward.4} parent=5 // pred_region
      %s973 = ssub.s32 %s8, 2
      // Predicated region
      $region41: #{forward.4} parent=39 // pred_check
        %p974 = pneg %p112
      $region42: #{forward.4} parent=39 // pred_check_branch
        %976 = sbr.rel (%p974) target = $region44
      $region43: #{forward.4} parent=39 // pred_region
        %p977 = scmp.lt.s32.totalorder %s21, 1
        %s978 = scalar_select %p977, %s21, 1
        %s979 = scalar_lea.vmem %s2, %s978
      $region44: #{forward.4} parent=39 // pred_fallthru
        _
    $region40: #{forward.4} parent=5 // pred_fallthru
      _
  $region6: #{forward.4} parent=0 // loop_footer
    %s12 = sadd.s32 1, %s8
  $region7: #{forward.4} parent=0 // loop_footer_branch
    %7 = sbr.rel target = $region3
  $region8: #{forward.4} parent=0 // loop_exit
    _

// kernel: forward.6
$region0: #{forward.6}
  #allocation0 [shape = 'u32[]', space=smem, size = 0x4, offset = 0x4, fixed_abs, tag = 'smem constant byte address 0x4 - core index']
  #allocation1 [shape = 'u32[144,128]{1,0:T(1,128)}', space=vmem, size = 0x12000, scoped, tag = 'internal scratch']
  %s0 = inlined_call_operand.vmem [shape: bf16[2,64,128], index: 0, kind: input, shape index: {}]
  %s1 = inlined_call_operand.vmem [shape: bf16[128,128], index: 1, kind: input, shape index: {}]
  %s2 = inlined_call_operand.vmem [shape: f32[2,1,128], index: 2, kind: output, shape index: {}]
  %s3 = sld [smem:[#allocation0]]
  $region45: #{forward.6} parent=0
    _
  %s5 = ssub.s32 1, %s3
  %s6 = scalar_select 0, %s5, %s3
  loop: start=0, step=1, limit=4
  $region2: #{forward.6} parent=0 // loop_pre_header
    _
  $region3: #{forward.6} parent=0 // loop_header
    %s8 = sphi 0, %s12
    %p9 = scmp.ge.s32.totalorder %s8, 4
    %s15 = sphi 0, %s34
    %s16 = sphi 0, %s30
    %s17 = sphi 0, %s26
    %s18 = sphi 0, %s15
    %s19 = sphi 0, %s16
    %s20 = sphi 0, %s17
    %s21 = sphi 0, %s18
    %s22 = sphi 0, %s19
    %s23 = sphi 0, %s20
    %s41 = sphi 0, %s43
    %s44 = sphi 0, %s41
    %s45 = sphi 0, %s44
    %s61 = sphi 0, %s45
    %s67 = sphi 0, %s69
    %s70 = sphi 0, %s67
    %s71 = sphi 0, %s70
    %s87 = sphi 0, %s71
    %s93 = sphi 0, %s95
    %s96 = sphi 0, %s93
    %s97 = sphi 0, %s96
    %s113 = sphi 0, %s97
  $region4: #{forward.6} parent=0 // loop_header_branch
    %11 = sbr.rel (%p9) target = $region8
  $region5: #{forward.6} parent=0 // loop_body
    %s13 = ssub.s32 %s8, 1
    %s14 = ssub.s32 %s8, 2
    %s24 = sadd.s32 1, %s17
    %p25 = scmp.ge.s32.totalorder %s24, 1
    %s26 = scalar_select %p25, 0, %s24
    %s27 = sadd.s32 1, %s16
    %s28 = scalar_select %p25, %s27, %s16
    %p29 = scmp.ge.s32.totalorder %s28, 1
    %s30 = scalar_select %p29, 0, %s28
    %s31 = sadd.s32 1, %s15
    %s32 = scalar_select %p29, %s31, %s15
    %p33 = scmp.ge.s32.totalorder %s32, 2
    %s34 = scalar_select %p33, 0, %s32
    %s35 = ssub.s32 %s15, %s34
    %s36 = ssub.s32 %s16, %s30
    %s37 = sor.u32 %s35, %s36
    %s38 = ssub.s32 %s17, %s26
    %s39 = sor.u32 %s37, %s38
    %p40 = scmp.eq.s32.totalorder %s39, 0
    %s42 = sadd.s32 %s41, 1
    %s43 = scalar_select %p40, %s41, %s42
    %p46 = pneg %p40
    %p47 = scmp.eq.s32.totalorder %s8, 1
    %p48 = por %p46, %p47
    %p49 = scmp.ne.s32.totalorder %s41, %s44
    %p50 = scmp.eq.s32.totalorder %s8, 0
    %p51 = por %p49, %p50
    %p52 = scmp.ne.s32.totalorder %s41, %s44
    %p53 = scmp.eq.s32.totalorder %s13, 1
    %p54 = por %p52, %p53
    %p55 = scmp.ne.s32.totalorder %s44, %s45
    %p56 = scmp.eq.s32.totalorder %s13, 0
    %p57 = por %p55, %p56
    %p58 = scmp.ne.s32.totalorder %s44, %s45
    %p59 = scmp.eq.s32.totalorder %s14, 1
    %p60 = por %p58, %p59
    %p62 = scmp.ne.s32.totalorder %s45, %s61
    %p63 = scmp.eq.s32.totalorder %s14, 0
    %p64 = por %p62, %p63
    %s65 = ssub.s32 %s17, %s26
    %p66 = scmp.eq.s32.totalorder %s65, 0
    %s68 = sadd.s32 %s67, 1
    %s69 = scalar_select %p66, %s67, %s68
    %p72 = pneg %p66
    %p73 = scmp.eq.s32.totalorder %s8, 1
    %p74 = por %p72, %p73
    %p75 = scmp.ne.s32.totalorder %s67, %s70
    %p76 = scmp.eq.s32.totalorder %s8, 0
    %p77 = por %p75, %p76
    %p78 = scmp.ne.s32.totalorder %s67, %s70
    %p79 = scmp.eq.s32.totalorder %s13, 1
    %p80 = por %p78, %p79
    %p81 = scmp.ne.s32.totalorder %s70, %s71
    %p82 = scmp.eq.s32.totalorder %s13, 0
    %p83 = por %p81, %p82
    %p84 = scmp.ne.s32.totalorder %s70, %s71
    %p85 = scmp.eq.s32.totalorder %s14, 1
    %p86 = por %p84, %p85
    %p88 = scmp.ne.s32.totalorder %s71, %s87
    %p89 = scmp.eq.s32.totalorder %s14, 0
    %p90 = por %p88, %p89
    %s91 = ssub.s32 %s15, %s34
    %p92 = scmp.eq.s32.totalorder %s91, 0
    %s94 = sadd.s32 %s93, 1
    %s95 = scalar_select %p92, %s93, %s94
    %p98 = pneg %p92
    %p99 = scmp.eq.s32.totalorder %s8, 1
    %p100 = por %p98, %p99
    %p101 = scmp.ne.s32.totalorder %s93, %s96
    %p102 = scmp.eq.s32.totalorder %s8, 0
    %p103 = por %p101, %p102
    %p104 = scmp.ne.s32.totalorder %s93, %s96
    %p105 = scmp.eq.s32.totalorder %s13, 1
    %p106 = por %p104, %p105
    %p107 = scmp.ne.s32.totalorder %s96, %s97
    %p108 = scmp.eq.s32.totalorder %s13, 0
    %p109 = por %p107, %p108
    %p110 = scmp.ne.s32.totalorder %s96, %s97
    %p111 = scmp.eq.s32.totalorder %s14, 1
    %p112 = por %p110, %p111
    %p114 = scmp.ne.s32.totalorder %s97, %s113
    %p115 = scmp.eq.s32.totalorder %s14, 0
    %p116 = por %p114, %p115
    %p117 = scmp.le.s32.totalorder 1, %s8
    %p118 = scmp.lt.s32.totalorder %s8, 3
    %p119 = pnand %p117, %p118
    %p120 = pneg %p119
    // Predicated region
    $region9: #{forward.6} parent=5 // pred_check
      _
    $region10: #{forward.6} parent=5 // pred_check_branch
      %122 = sbr.rel (%p119) target = $region12
    $region11: #{forward.6} parent=5 // pred_region
      %s123 = ssub.s32 %s8, 1
      // Predicated region
      $region13: #{forward.6} parent=11 // pred_check
        %p124 = pneg %p83
      $region14: #{forward.6} parent=11 // pred_check_branch
        %126 = sbr.rel (%p124) target = $region16
      $region15: #{forward.6} parent=11 // pred_region
        %s127 = smul.u32 16, %s20
        %p128 = scmp.lt.s32.totalorder %s127, 15
        %s129 = scalar_select %p128, %s127, 15
        %s130 = smul.addr %s129, 4
        %s131 = scalar_lea.vmem %s1, %s130
        %s132 = smul.u32 16, %s20
      $region16: #{forward.6} parent=11 // pred_fallthru
        _
    $region12: #{forward.6} parent=5 // pred_fallthru
      _
    %p133 = scmp.lt.s32.totalorder %s8, 2
    // Predicated region
    $region17: #{forward.6} parent=5 // pred_check
      %p134 = pneg %p133
    $region18: #{forward.6} parent=5 // pred_check_branch
      %136 = sbr.rel (%p134) target = $region20
    $region19: #{forward.6} parent=5 // pred_region
      // Predicated region
      $region21: #{forward.6} parent=19 // pred_check
        %p137 = pneg %p51
      $region22: #{forward.6} parent=19 // pred_check_branch
        %139 = sbr.rel (%p137) target = $region24
      $region23: #{forward.6} parent=19 // pred_region
        %s140 = smul.u32 8, %s16
        %p141 = scmp.lt.s32.totalorder %s15, 1
        %s142 = scalar_select %p141, %s15, 1
        %p143 = scmp.lt.s32.totalorder %s140, 7
        %s144 = scalar_select %p143, %s140, 7
        %p145 = scmp.lt.s32.totalorder %s17, 0
        %s146 = scalar_select %p145, %s17, 0
        %s147 = sadd.s32 %s146, %s144
        %s148 = smul.addr %s142, 8
        %s149 = sadd.s32 %s147, %s148
        %s150 = smul.addr %s149, 4
        %s151 = scalar_lea.vmem %s0, %s150
        %s152 = smul.u32 8, %s16
      $region24: #{forward.6} parent=19 // pred_fallthru
        _
    $region20: #{forward.6} parent=5 // pred_fallthru
      _
    %p153 = scmp.le.s32.totalorder 1, %s8
    %p154 = scmp.lt.s32.totalorder %s8, 3
    %p155 = pnand %p153, %p154
    %p156 = pneg %p155
    // Predicated region
    $region25: #{forward.6} parent=5 // pred_check
      _
    $region26: #{forward.6} parent=5 // pred_check_branch
      %158 = sbr.rel (%p155) target = $region28
    $region27: #{forward.6} parent=5 // pred_region
      %s159 = ssub.s32 %s8, 1
      %s160 = smul.u32 8, %s19
      %p161 = scmp.lt.s32.totalorder %s18, 1
      %s162 = scalar_select %p161, %s18, 1
      %p163 = scmp.lt.s32.totalorder %s160, 7
      %s164 = scalar_select %p163, %s160, 7
      %p165 = scmp.lt.s32.totalorder %s20, 0
      %s166 = scalar_select %p165, %s20, 0
      %s167 = sadd.s32 %s166, %s164
      %s168 = smul.addr %s162, 8
      %s169 = sadd.s32 %s167, %s168
      %s170 = smul.addr %s169, 4
      %s171 = scalar_lea.vmem %s0, %s170
      %p172 = pneg %p57
      %p173 = pneg %p54
      %s174 = smul.u32 16, %s20
      %p175 = scmp.lt.s32.totalorder %s174, 15
      %s176 = scalar_select %p175, %s174, 15
      %s177 = smul.addr %s176, 4
      %s178 = scalar_lea.vmem %s1, %s177
      %p179 = pneg %p83
      %p180 = pneg %p80
      %p181 = pneg %p109
      %p182 = pneg %p106
      %p183 = scmp.lt.s32.totalorder %s18, 1
      %s184 = scalar_select %p183, %s18, 1
      %s185 = scalar_lea.vmem %s2, %s184
      %s186 = smul.u32 8, %s19
      %p187 = scmp.lt.s32.totalorder %s18, 1
      %s188 = scalar_select %p187, %s18, 1
      %p189 = scmp.lt.s32.totalorder %s186, 7
      %s190 = scalar_select %p189, %s186, 7
      %p191 = scmp.lt.s32.totalorder %s20, 0
      %s192 = scalar_select %p191, %s20, 0
      %s193 = sadd.s32 %s192, %s190
      %s194 = smul.addr %s188, 8
      %s195 = sadd.s32 %s193, %s194
      %s196 = smul.addr %s195, 4
      %s197 = scalar_lea.vmem %s0, %s196
      %s198 = smul.u32 8, %s19
      %s199 = smul.u32 16, %s20
      %p200 = scmp.lt.s32.totalorder %s199, 15
      %s201 = scalar_select %p200, %s199, 15
      %s202 = smul.addr %s201, 4
      %s203 = scalar_lea.vmem %s1, %s202
      %s204 = smul.u32 16, %s20
      %p205 = scmp.lt.s32.totalorder %s18, 1
      %s206 = scalar_select %p205, %s18, 1
      %s207 = scalar_lea.vmem %s2, %s206
      %p209 = scmp.eq.s32.totalorder %s19, 0
      %p210 = scmp.eq.s32.totalorder %s20, 0
      %p211 = pnand %p209, %p210
      %p212 = pneg %p211
      // Predicated region
      $region29: #{forward.6} parent=27 // pred_check
        _
      $region30: #{forward.6} parent=27 // pred_check_branch
        %214 = sbr.rel (%p211) target = $region32
      $region31: #{forward.6} parent=27 // pred_region
        %215 = vst [vmem:[%s207] sm:$0x1] 0.0
      $region32: #{forward.6} parent=27 // pred_fallthru
        _
      %v216 = vld [vmem:[%s197] sm:$0xf]
      %v217 = vld [vmem:[%s197 + $0x4] sm:$0xf]
      %v218 = vld [vmem:[%s197 + $0x8] sm:$0xf]
      %v219 = vld [vmem:[%s197 + $0xc] sm:$0xf]
      %v220 = vld [vmem:[%s197 + $0x10] sm:$0xf]
      %v221 = vld [vmem:[%s197 + $0x14] sm:$0xf]
      %v222 = vld [vmem:[%s197 + $0x18] sm:$0xf]
      %v223 = vld [vmem:[%s197 + $0x1c] sm:$0xf]
      %v224 = vld [vmem:[%s203] sm:$0xf]
      %v225 = vld [vmem:[%s203 + $0x4] sm:$0xf]
      %v226 = vld [vmem:[%s203 + $0x8] sm:$0xf]
      %v227 = vld [vmem:[%s203 + $0xc] sm:$0xf]
      %v228 = vld [vmem:[%s203 + $0x10] sm:$0xf]
      %v229 = vld [vmem:[%s203 + $0x14] sm:$0xf]
      %v230 = vld [vmem:[%s203 + $0x18] sm:$0xf]
      %v231 = vld [vmem:[%s203 + $0x1c] sm:$0xf]
      %v232 = vld [vmem:[%s203 + $0x20] sm:$0xf]
      %v233 = vld [vmem:[%s203 + $0x24] sm:$0xf]
      %v234 = vld [vmem:[%s203 + $0x28] sm:$0xf]
      %v235 = vld [vmem:[%s203 + $0x2c] sm:$0xf]
      %v236 = vld [vmem:[%s203 + $0x30] sm:$0xf]
      %v237 = vld [vmem:[%s203 + $0x34] sm:$0xf]
      %v238 = vld [vmem:[%s203 + $0x38] sm:$0xf]
      %v239 = vld [vmem:[%s203 + $0x3c] sm:$0xf]
      %v248 = vunpack.c.l.b16 %v216
      %v249 = vunpack.c.l.b16 %v217
      %v250 = vunpack.c.l.b16 %v218
      %v251 = vunpack.c.l.b16 %v219
      %v252 = vunpack.c.l.b16 %v220
      %v253 = vunpack.c.l.b16 %v221
      %v254 = vunpack.c.l.b16 %v222
      %v255 = vunpack.c.l.b16 %v223
      %v256 = vpack.c.b16 %v249, %v248
      %v257 = vpack.c.b16 %v251, %v250
      %v258 = vpack.c.b16 %v253, %v252
      %v259 = vpack.c.b16 %v255, %v254
      %v280 = vunpack.c.l.b16 %v224
      %v281 = vunpack.c.l.b16 %v225
      %v282 = vunpack.c.l.b16 %v226
      %v283 = vunpack.c.l.b16 %v227
      %v284 = vunpack.c.l.b16 %v228
      %v285 = vunpack.c.l.b16 %v229
      %v286 = vunpack.c.l.b16 %v230
      %v287 = vunpack.c.l.b16 %v231
      %v288 = vunpack.c.l.b16 %v232
      %v289 = vunpack.c.l.b16 %v233
      %v290 = vunpack.c.l.b16 %v234
      %v291 = vunpack.c.l.b16 %v235
      %v292 = vunpack.c.l.b16 %v236
      %v293 = vunpack.c.l.b16 %v237
      %v294 = vunpack.c.l.b16 %v238
      %v295 = vunpack.c.l.b16 %v239
      %v296 = vpack.c.b16 %v281, %v280
      %v297 = vpack.c.b16 %v283, %v282
      %v298 = vpack.c.b16 %v285, %v284
      %v299 = vpack.c.b16 %v287, %v286
      %v300 = vpack.c.b16 %v289, %v288
      %v301 = vpack.c.b16 %v291, %v290
      %v302 = vpack.c.b16 %v293, %v292
      %v303 = vpack.c.b16 %v295, %v294
      %312 = vmatprep.subr.bf16.mxu0 0
      %313 = vmatpush1.bf16.msra.mxu0 %v303
      %314 = vmatprep.subr.bf16.mxu0 0
      %315 = vmatpush1.bf16.msra.mxu0 %v302
      %316 = vmatprep.subr.bf16.mxu0 0
      %317 = vmatpush1.bf16.msra.mxu0 %v301
      %318 = vmatprep.subr.bf16.mxu0 0
      %319 = vmatpush1.bf16.msra.mxu0 %v300
      %320 = vmatprep.subr.bf16.mxu0 0
      %321 = vmatpush1.bf16.msra.mxu0 %v299
      %322 = vmatprep.subr.bf16.mxu0 0
      %323 = vmatpush1.bf16.msra.mxu0 %v298
      %324 = vmatprep.subr.bf16.mxu0 0
      %325 = vmatpush1.bf16.msra.mxu0 %v297
      %326 = vmatprep.subr.bf16.mxu0 0
      %327 = vmatpush1.bf16.msra.mxu0 %v296
      %328 = vmatprep.subr.bf16.mxu0 0
      %329 = vmatpush2.bf16.msra.mxu0 0
      %330 = vmatprep.subr.bf16.mxu0 0
      %331 = vmatpush2.bf16.msra.mxu0 0
      %332 = vmatprep.subr.bf16.mxu0 0
      %333 = vmatpush2.bf16.msra.mxu0 0
      %334 = vmatprep.subr.bf16.mxu0 0
      %335 = vmatpush2.bf16.msra.mxu0 0
      %336 = vmatprep.subr.bf16.mxu0 0
      %337 = vmatpush2.bf16.msra.mxu0 0
      %338 = vmatprep.subr.bf16.mxu0 0
      %339 = vmatpush2.bf16.msra.mxu0 0
      %340 = vmatprep.subr.bf16.mxu0 0
      %341 = vmatpush2.bf16.msra.mxu0 0
      %342 = vmatprep.subr.bf16.mxu0 0
      %343 = vmatpush2.bf16.msra.mxu0 0
      %344 = vmatprep.mubr.bf16.mxu0 0
      %345 = vmatmul.mubr.bf16.gmra.mxu0 %v256
      %v346 = vpop.f32.mrf.mxu0
      %v347 = vadd.f32 0.0, %v346
      %v348 = vpop.f32.mrf.mxu0
      %v349 = vpop.f32.mrf.mxu0
      %v350 = vadd.f32 0.0, %v349
      %v351 = vpop.f32.mrf.mxu0
      %352 = vmatprep.mubr.bf16.mxu0 0
      %353 = vmatmul.mubr.bf16.gmra.mxu0 %v257
      %v354 = vpop.f32.mrf.mxu0
      %v355 = vadd.f32 0.0, %v354
      %v356 = vpop.f32.mrf.mxu0
      %v357 = vpop.f32.mrf.mxu0
      %v358 = vadd.f32 0.0, %v357
      %v359 = vpop.f32.mrf.mxu0
      %360 = vmatprep.mubr.bf16.mxu0 0
      %361 = vmatmul.mubr.bf16.gmra.mxu0 %v258
      %v362 = vpop.f32.mrf.mxu0
      %v363 = vadd.f32 0.0, %v362
      %v364 = vpop.f32.mrf.mxu0
      %v365 = vpop.f32.mrf.mxu0
      %v366 = vadd.f32 0.0, %v365
      %v367 = vpop.f32.mrf.mxu0
      %368 = vmatprep.mubr.bf16.mxu0 0
      %369 = vmatmul.mubr.bf16.gmra.mxu0 %v259
      %v370 = vpop.f32.mrf.mxu0
      %v371 = vadd.f32 0.0, %v370
      %v372 = vpop.f32.mrf.mxu0
      %v373 = vpop.f32.mrf.mxu0
      %v374 = vadd.f32 0.0, %v373
      %v375 = vpop.f32.mrf.mxu0
      %376 = vdwg.mxu0
      %v377 = vld [vmem:[%s207] sm:$0x1]
      %v378 = vadd.f32 %v347, %v350
      %v379 = vadd.f32 %v378, %v355
      %v380 = vadd.f32 %v379, %v358
      %v381 = vadd.f32 %v380, %v363
      %v382 = vadd.f32 %v381, %v366
      %v383 = vadd.f32 %v382, %v371
      %v384 = vadd.f32 %v383, %v374
      %v385 = vrot.slane %v384, 4
      %v386 = vadd.f32 %v384, %v385
      %v387 = vrot.slane %v386, 2
      %v388 = vadd.f32 %v386, %v387
      %v389 = vrot.slane %v388, 1
      %v390 = vadd.f32 %v388, %v389
      %v391 = vadd.f32 %v377, %v390
      %392 = vst [vmem:[%s207] sm:$0x1] %v391
      %p393 = scmp.lt.s32.totalorder %s18, 1
      %s394 = scalar_select %p393, %s18, 1
      %s395 = scalar_lea.vmem %s2, %s394
      // Predicated region
      $region33: #{forward.6} parent=27 // pred_check
        %p396 = pneg %p106
      $region34: #{forward.6} parent=27 // pred_check_branch
        %398 = sbr.rel (%p396) target = $region36
      $region35: #{forward.6} parent=27 // pred_region
        _
      $region36: #{forward.6} parent=27 // pred_fallthru
        _
    $region28: #{forward.6} parent=5 // pred_fallthru
      _
    %p399 = scmp.le.s32.totalorder 2, %s8
    // Predicated region
    $region37: #{forward.6} parent=5 // pred_check
      %p400 = pneg %p399
    $region38: #{forward.6} parent=5 // pred_check_branch
      %402 = sbr.rel (%p400) target = $region40
    $region39: #{forward.6} parent=5 // pred_region
      %s403 = ssub.s32 %s8, 2
      // Predicated region
      $region41: #{forward.6} parent=39 // pred_check
        %p404 = pneg %p112
      $region42: #{forward.6} parent=39 // pred_check_branch
        %406 = sbr.rel (%p404) target = $region44
      $region43: #{forward.6} parent=39 // pred_region
        %p407 = scmp.lt.s32.totalorder %s21, 1
        %s408 = scalar_select %p407, %s21, 1
        %s409 = scalar_lea.vmem %s2, %s408
      $region44: #{forward.6} parent=39 // pred_fallthru
        _
    $region40: #{forward.6} parent=5 // pred_fallthru
      _
  $region6: #{forward.6} parent=0 // loop_footer
    %s12 = sadd.s32 1, %s8
  $region7: #{forward.6} parent=0 // loop_footer_branch
    %7 = sbr.rel target = $region3
  $region8: #{forward.6} parent=0 // loop_exit
    _

// kernel: forward.5
$region0: #{forward.5}
  #allocation0 [shape = 'u32[]', space=smem, size = 0x4, offset = 0x4, fixed_abs, tag = 'smem constant byte address 0x4 - core index']
  #allocation1 [shape = 'u32[144,128]{1,0:T(1,128)}', space=vmem, size = 0x12000, scoped, tag = 'internal scratch']
  %s0 = inlined_call_operand.vmem [shape: f32[2,128], index: 0, kind: input, shape index: {}]
  %s1 = inlined_call_operand.vmem [shape: bf16[128,1024], index: 1, kind: input, shape index: {}]
  %s2 = inlined_call_operand.vmem [shape: f32[1,1024], index: 2, kind: input, shape index: {}]
  %s3 = inlined_call_operand.vmem [shape: bf16[1024,1024], index: 3, kind: input, shape index: {}]
  %s4 = inlined_call_operand.vmem [shape: f32[1,1024], index: 4, kind: input, shape index: {}]
  %s5 = inlined_call_operand.hbm [shape: f32[2,1024], index: 5, kind: output, shape index: {}]
  %s6 = sld [smem:[#allocation0]]
  $region30: #{forward.5} parent=0
    _
  %s8 = ssub.s32 1, %s6
  %s9 = scalar_select 0, %s8, %s6
  $region1: #{forward.5} parent=0
    #allocation2 [shape = 'u8[8192]{0}', space=vmem, size = 0x2000, scoped, tag = 'output window, operand 0, single buffered']
    #allocation3 [shape = 's32[1]{0}', space=sflag, size = 0x4, scoped, tag = 'scoped memory for forward.5']
    %10 = vsyncpa [#allocation3], 0
    // Predicated region
    $region2: #{forward.5} parent=1 // pred_check
      _
    $region3: #{forward.5} parent=1 // pred_check_branch
      %12 = sbr.rel (0) target = $region5
    $region4: #{forward.5} parent=1 // pred_region
      _
    $region5: #{forward.5} parent=1 // pred_fallthru
      _
    // Predicated region
    $region6: #{forward.5} parent=1 // pred_check
      _
    $region7: #{forward.5} parent=1 // pred_check_branch
      %14 = sbr.rel (0) target = $region9
    $region8: #{forward.5} parent=1 // pred_region
      _
    $region9: #{forward.5} parent=1 // pred_fallthru
      _
    // Predicated region
    $region10: #{forward.5} parent=1 // pred_check
      _
    $region11: #{forward.5} parent=1 // pred_check_branch
      %16 = sbr.rel (0) target = $region13
    $region12: #{forward.5} parent=1 // pred_region
      _
    $region13: #{forward.5} parent=1 // pred_fallthru
      _
    // Predicated region
    $region14: #{forward.5} parent=1 // pred_check
      _
    $region15: #{forward.5} parent=1 // pred_check_branch
      %18 = sbr.rel (0) target = $region17
    $region16: #{forward.5} parent=1 // pred_region
      _
    $region17: #{forward.5} parent=1 // pred_fallthru
      _
    // Predicated region
    $region18: #{forward.5} parent=1 // pred_check
      _
    $region19: #{forward.5} parent=1 // pred_check_branch
      %20 = sbr.rel (0) target = $region21
    $region20: #{forward.5} parent=1 // pred_region
      _
    $region21: #{forward.5} parent=1 // pred_fallthru
      _
    %v22 = vld [vmem:[%s0] sm:$0x3]
    %v23 = vmul.f32 %v22, 0.015625
    %v24 = vpack.c.bf16 %v23, %v23
    %v25 = vld [vmem:[%s1] sm:$0xff]
    %v26 = vld [vmem:[%s1 + $0x8] sm:$0xff]
    %v27 = vld [vmem:[%s1 + $0x10] sm:$0xff]
    %v28 = vld [vmem:[%s1 + $0x18] sm:$0xff]
    %v29 = vld [vmem:[%s1 + $0x20] sm:$0xff]
    %v30 = vld [vmem:[%s1 + $0x28] sm:$0xff]
    %v31 = vld [vmem:[%s1 + $0x30] sm:$0xff]
    %v32 = vld [vmem:[%s1 + $0x38] sm:$0xff]
    %v33 = vld [vmem:[%s1 + $0x40] sm:$0xff]
    %v34 = vld [vmem:[%s1 + $0x48] sm:$0xff]
    %v35 = vld [vmem:[%s1 + $0x50] sm:$0xff]
    %v36 = vld [vmem:[%s1 + $0x58] sm:$0xff]
    %v37 = vld [vmem:[%s1 + $0x60] sm:$0xff]
    %v38 = vld [vmem:[%s1 + $0x68] sm:$0xff]
    %v39 = vld [vmem:[%s1 + $0x70] sm:$0xff]
    %v40 = vld [vmem:[%s1 + $0x78] sm:$0xff]
    %v41 = vld [vmem:[%s1 + $0x80] sm:$0xff]
    %v42 = vld [vmem:[%s1 + $0x88] sm:$0xff]
    %v43 = vld [vmem:[%s1 + $0x90] sm:$0xff]
    %v44 = vld [vmem:[%s1 + $0x98] sm:$0xff]
    %v45 = vld [vmem:[%s1 + $0xa0] sm:$0xff]
    %v46 = vld [vmem:[%s1 + $0xa8] sm:$0xff]
    %v47 = vld [vmem:[%s1 + $0xb0] sm:$0xff]
    %v48 = vld [vmem:[%s1 + $0xb8] sm:$0xff]
    %v49 = vld [vmem:[%s1 + $0xc0] sm:$0xff]
    %v50 = vld [vmem:[%s1 + $0xc8] sm:$0xff]
    %v51 = vld [vmem:[%s1 + $0xd0] sm:$0xff]
    %v52 = vld [vmem:[%s1 + $0xd8] sm:$0xff]
    %v53 = vld [vmem:[%s1 + $0xe0] sm:$0xff]
    %v54 = vld [vmem:[%s1 + $0xe8] sm:$0xff]
    %v55 = vld [vmem:[%s1 + $0xf0] sm:$0xff]
    %v56 = vld [vmem:[%s1 + $0xf8] sm:$0xff]
    %v57 = vld [vmem:[%s1 + $0x100] sm:$0xff]
    %v58 = vld [vmem:[%s1 + $0x108] sm:$0xff]
    %v59 = vld [vmem:[%s1 + $0x110] sm:$0xff]
    %v60 = vld [vmem:[%s1 + $0x118] sm:$0xff]
    %v61 = vld [vmem:[%s1 + $0x120] sm:$0xff]
    %v62 = vld [vmem:[%s1 + $0x128] sm:$0xff]
    %v63 = vld [vmem:[%s1 + $0x130] sm:$0xff]
    %v64 = vld [vmem:[%s1 + $0x138] sm:$0xff]
    %v65 = vld [vmem:[%s1 + $0x140] sm:$0xff]
    %v66 = vld [vmem:[%s1 + $0x148] sm:$0xff]
    %v67 = vld [vmem:[%s1 + $0x150] sm:$0xff]
    %v68 = vld [vmem:[%s1 + $0x158] sm:$0xff]
    %v69 = vld [vmem:[%s1 + $0x160] sm:$0xff]
    %v70 = vld [vmem:[%s1 + $0x168] sm:$0xff]
    %v71 = vld [vmem:[%s1 + $0x170] sm:$0xff]
    %v72 = vld [vmem:[%s1 + $0x178] sm:$0xff]
    %v73 = vld [vmem:[%s1 + $0x180] sm:$0xff]
    %v74 = vld [vmem:[%s1 + $0x188] sm:$0xff]
    %v75 = vld [vmem:[%s1 + $0x190] sm:$0xff]
    %v76 = vld [vmem:[%s1 + $0x198] sm:$0xff]
    %v77 = vld [vmem:[%s1 + $0x1a0] sm:$0xff]
    %v78 = vld [vmem:[%s1 + $0x1a8] sm:$0xff]
    %v79 = vld [vmem:[%s1 + $0x1b0] sm:$0xff]
    %v80 = vld [vmem:[%s1 + $0x1b8] sm:$0xff]
    %v81 = vld [vmem:[%s1 + $0x1c0] sm:$0xff]
    %v82 = vld [vmem:[%s1 + $0x1c8] sm:$0xff]
    %v83 = vld [vmem:[%s1 + $0x1d0] sm:$0xff]
    %v84 = vld [vmem:[%s1 + $0x1d8] sm:$0xff]
    %v85 = vld [vmem:[%s1 + $0x1e0] sm:$0xff]
    %v86 = vld [vmem:[%s1 + $0x1e8] sm:$0xff]
    %v87 = vld [vmem:[%s1 + $0x1f0] sm:$0xff]
    %v88 = vld [vmem:[%s1 + $0x1f8] sm:$0xff]
    %v89 = vld [vmem:[%s2] sm:$0xff]
    %v91 = vlaneseq
    %v92 = vshrl.u32 %v91, 7
    %v93 = vsub.s32 0, %v92
    %v94 = vrot.slane %v89, %v93
    %v95 = vlaneseq
    %v96 = vshrl.u32 %v95, 7
    %v97 = vsub.s32 1, %v96
    %v98 = vrot.slane %v89, %v97
    %v99 = vlaneseq
    %v100 = vshrl.u32 %v99, 7
    %v101 = vsub.s32 2, %v100
    %v102 = vrot.slane %v89, %v101
    %v103 = vlaneseq
    %v104 = vshrl.u32 %v103, 7
    %v105 = vsub.s32 3, %v104
    %v106 = vrot.slane %v89, %v105
    %v107 = vlaneseq
    %v108 = vshrl.u32 %v107, 7
    %v109 = vsub.s32 4, %v108
    %v110 = vrot.slane %v89, %v109
    %v111 = vlaneseq
    %v112 = vshrl.u32 %v111, 7
    %v113 = vsub.s32 5, %v112
    %v114 = vrot.slane %v89, %v113
    %v115 = vlaneseq
    %v116 = vshrl.u32 %v115, 7
    %v117 = vsub.s32 6, %v116
    %v118 = vrot.slane %v89, %v117
    %v119 = vlaneseq
    %v120 = vshrl.u32 %v119, 7
    %v121 = vsub.s32 7, %v120
    %v122 = vrot.slane %v89, %v121
    %v195 = vunpack.c.l.b16 %v25
    %v196 = vunpack.c.h.b16 %v25
    %v197 = vunpack.c.l.b16 %v26
    %v198 = vunpack.c.h.b16 %v26
    %v199 = vunpack.c.l.b16 %v27
    %v200 = vunpack.c.h.b16 %v27
    %v201 = vunpack.c.l.b16 %v28
    %v202 = vunpack.c.h.b16 %v28
    %v203 = vunpack.c.l.b16 %v29
    %v204 = vunpack.c.h.b16 %v29
    %v205 = vunpack.c.l.b16 %v30
    %v206 = vunpack.c.h.b16 %v30
    %v207 = vunpack.c.l.b16 %v31
    %v208 = vunpack.c.h.b16 %v31
    %v209 = vunpack.c.l.b16 %v32
    %v210 = vunpack.c.h.b16 %v32
    %v211 = vunpack.c.l.b16 %v33
    %v212 = vunpack.c.h.b16 %v33
    %v213 = vunpack.c.l.b16 %v34
    %v214 = vunpack.c.h.b16 %v34
    %v215 = vunpack.c.l.b16 %v35
    %v216 = vunpack.c.h.b16 %v35
    %v217 = vunpack.c.l.b16 %v36
    %v218 = vunpack.c.h.b16 %v36
    %v219 = vunpack.c.l.b16 %v37
    %v220 = vunpack.c.h.b16 %v37
    %v221 = vunpack.c.l.b16 %v38
    %v222 = vunpack.c.h.b16 %v38
    %v223 = vunpack.c.l.b16 %v39
    %v224 = vunpack.c.h.b16 %v39
    %v225 = vunpack.c.l.b16 %v40
    %v226 = vunpack.c.h.b16 %v40
    %v227 = vunpack.c.l.b16 %v41
    %v228 = vunpack.c.h.b16 %v41
    %v229 = vunpack.c.l.b16 %v42
    %v230 = vunpack.c.h.b16 %v42
    %v231 = vunpack.c.l.b16 %v43
    %v232 = vunpack.c.h.b16 %v43
    %v233 = vunpack.c.l.b16 %v44
    %v234 = vunpack.c.h.b16 %v44
    %v235 = vunpack.c.l.b16 %v45
    %v236 = vunpack.c.h.b16 %v45
    %v237 = vunpack.c.l.b16 %v46
    %v238 = vunpack.c.h.b16 %v46
    %v239 = vunpack.c.l.b16 %v47
    %v240 = vunpack.c.h.b16 %v47
    %v241 = vunpack.c.l.b16 %v48
    %v242 = vunpack.c.h.b16 %v48
    %v243 = vunpack.c.l.b16 %v49
    %v244 = vunpack.c.h.b16 %v49
    %v245 = vunpack.c.l.b16 %v50
    %v246 = vunpack.c.h.b16 %v50
    %v247 = vunpack.c.l.b16 %v51
    %v248 = vunpack.c.h.b16 %v51
    %v249 = vunpack.c.l.b16 %v52
    %v250 = vunpack.c.h.b16 %v52
    %v251 = vunpack.c.l.b16 %v53
    %v252 = vunpack.c.h.b16 %v53
    %v253 = vunpack.c.l.b16 %v54
    %v254 = vunpack.c.h.b16 %v54
    %v255 = vunpack.c.l.b16 %v55
    %v256 = vunpack.c.h.b16 %v55
    %v257 = vunpack.c.l.b16 %v56
    %v258 = vunpack.c.h.b16 %v56
    %v259 = vunpack.c.l.b16 %v57
    %v260 = vunpack.c.h.b16 %v57
    %v261 = vunpack.c.l.b16 %v58
    %v262 = vunpack.c.h.b16 %v58
    %v263 = vunpack.c.l.b16 %v59
    %v264 = vunpack.c.h.b16 %v59
    %v265 = vunpack.c.l.b16 %v60
    %v266 = vunpack.c.h.b16 %v60
    %v267 = vunpack.c.l.b16 %v61
    %v268 = vunpack.c.h.b16 %v61
    %v269 = vunpack.c.l.b16 %v62
    %v270 = vunpack.c.h.b16 %v62
    %v271 = vunpack.c.l.b16 %v63
    %v272 = vunpack.c.h.b16 %v63
    %v273 = vunpack.c.l.b16 %v64
    %v274 = vunpack.c.h.b16 %v64
    %v275 = vunpack.c.l.b16 %v65
    %v276 = vunpack.c.h.b16 %v65
    %v277 = vunpack.c.l.b16 %v66
    %v278 = vunpack.c.h.b16 %v66
    %v279 = vunpack.c.l.b16 %v67
    %v280 = vunpack.c.h.b16 %v67
    %v281 = vunpack.c.l.b16 %v68
    %v282 = vunpack.c.h.b16 %v68
    %v283 = vunpack.c.l.b16 %v69
    %v284 = vunpack.c.h.b16 %v69
    %v285 = vunpack.c.l.b16 %v70
    %v286 = vunpack.c.h.b16 %v70
    %v287 = vunpack.c.l.b16 %v71
    %v288 = vunpack.c.h.b16 %v71
    %v289 = vunpack.c.l.b16 %v72
    %v290 = vunpack.c.h.b16 %v72
    %v291 = vunpack.c.l.b16 %v73
    %v292 = vunpack.c.h.b16 %v73
    %v293 = vunpack.c.l.b16 %v74
    %v294 = vunpack.c.h.b16 %v74
    %v295 = vunpack.c.l.b16 %v75
    %v296 = vunpack.c.h.b16 %v75
    %v297 = vunpack.c.l.b16 %v76
    %v298 = vunpack.c.h.b16 %v76
    %v299 = vunpack.c.l.b16 %v77
    %v300 = vunpack.c.h.b16 %v77
    %v301 = vunpack.c.l.b16 %v78
    %v302 = vunpack.c.h.b16 %v78
    %v303 = vunpack.c.l.b16 %v79
    %v304 = vunpack.c.h.b16 %v79
    %v305 = vunpack.c.l.b16 %v80
    %v306 = vunpack.c.h.b16 %v80
    %v307 = vunpack.c.l.b16 %v81
    %v308 = vunpack.c.h.b16 %v81
    %v309 = vunpack.c.l.b16 %v82
    %v310 = vunpack.c.h.b16 %v82
    %v311 = vunpack.c.l.b16 %v83
    %v312 = vunpack.c.h.b16 %v83
    %v313 = vunpack.c.l.b16 %v84
    %v314 = vunpack.c.h.b16 %v84
    %v315 = vunpack.c.l.b16 %v85
    %v316 = vunpack.c.h.b16 %v85
    %v317 = vunpack.c.l.b16 %v86
    %v318 = vunpack.c.h.b16 %v86
    %v319 = vunpack.c.l.b16 %v87
    %v320 = vunpack.c.h.b16 %v87
    %v321 = vunpack.c.l.b16 %v88
    %v322 = vunpack.c.h.b16 %v88
    %v323 = vpack.c.b16 %v203, %v195
    %v324 = vpack.c.b16 %v204, %v196
    %v325 = vpack.c.b16 %v205, %v197
    %v326 = vpack.c.b16 %v206, %v198
    %v327 = vpack.c.b16 %v207, %v199
    %v328 = vpack.c.b16 %v208, %v200
    %v329 = vpack.c.b16 %v209, %v201
    %v330 = vpack.c.b16 %v210, %v202
    %v331 = vpack.c.b16 %v219, %v211
    %v332 = vpack.c.b16 %v220, %v212
    %v333 = vpack.c.b16 %v221, %v213
    %v334 = vpack.c.b16 %v222, %v214
    %v335 = vpack.c.b16 %v223, %v215
    %v336 = vpack.c.b16 %v224, %v216
    %v337 = vpack.c.b16 %v225, %v217
    %v338 = vpack.c.b16 %v226, %v218
    %v339 = vpack.c.b16 %v235, %v227
    %v340 = vpack.c.b16 %v236, %v228
    %v341 = vpack.c.b16 %v237, %v229
    %v342 = vpack.c.b16 %v238, %v230
    %v343 = vpack.c.b16 %v239, %v231
    %v344 = vpack.c.b16 %v240, %v232
    %v345 = vpack.c.b16 %v241, %v233
    %v346 = vpack.c.b16 %v242, %v234
    %v347 = vpack.c.b16 %v251, %v243
    %v348 = vpack.c.b16 %v252, %v244
    %v349 = vpack.c.b16 %v253, %v245
    %v350 = vpack.c.b16 %v254, %v246
    %v351 = vpack.c.b16 %v255, %v247
    %v352 = vpack.c.b16 %v256, %v248
    %v353 = vpack.c.b16 %v257, %v249
    %v354 = vpack.c.b16 %v258, %v250
    %v355 = vpack.c.b16 %v267, %v259
    %v356 = vpack.c.b16 %v268, %v260
    %v357 = vpack.c.b16 %v269, %v261
    %v358 = vpack.c.b16 %v270, %v262
    %v359 = vpack.c.b16 %v271, %v263
    %v360 = vpack.c.b16 %v272, %v264
    %v361 = vpack.c.b16 %v273, %v265
    %v362 = vpack.c.b16 %v274, %v266
    %v363 = vpack.c.b16 %v283, %v275
    %v364 = vpack.c.b16 %v284, %v276
    %v365 = vpack.c.b16 %v285, %v277
    %v366 = vpack.c.b16 %v286, %v278
    %v367 = vpack.c.b16 %v287, %v279
    %v368 = vpack.c.b16 %v288, %v280
    %v369 = vpack.c.b16 %v289, %v281
    %v370 = vpack.c.b16 %v290, %v282
    %v371 = vpack.c.b16 %v299, %v291
    %v372 = vpack.c.b16 %v300, %v292
    %v373 = vpack.c.b16 %v301, %v293
    %v374 = vpack.c.b16 %v302, %v294
    %v375 = vpack.c.b16 %v303, %v295
    %v376 = vpack.c.b16 %v304, %v296
    %v377 = vpack.c.b16 %v305, %v297
    %v378 = vpack.c.b16 %v306, %v298
    %v379 = vpack.c.b16 %v315, %v307
    %v380 = vpack.c.b16 %v316, %v308
    %v381 = vpack.c.b16 %v317, %v309
    %v382 = vpack.c.b16 %v318, %v310
    %v383 = vpack.c.b16 %v319, %v311
    %v384 = vpack.c.b16 %v320, %v312
    %v385 = vpack.c.b16 %v321, %v313
    %v386 = vpack.c.b16 %v322, %v314
    %451 = vmatprep.subr.bf16.mxu0 %v380
    %452 = vmatpush1.bf16.msra.mxu0 %v379
    %453 = vmatprep.subr.bf16.mxu0 %v372
    %454 = vmatpush1.bf16.msra.mxu0 %v371
    %455 = vmatprep.subr.bf16.mxu0 %v364
    %456 = vmatpush1.bf16.msra.mxu0 %v363
    %457 = vmatprep.subr.bf16.mxu0 %v356
    %458 = vmatpush1.bf16.msra.mxu0 %v355
    %459 = vmatprep.subr.bf16.mxu0 %v348
    %460 = vmatpush1.bf16.msra.mxu0 %v347
    %461 = vmatprep.subr.bf16.mxu0 %v340
    %462 = vmatpush1.bf16.msra.mxu0 %v339
    %463 = vmatprep.subr.bf16.mxu0 %v332
    %464 = vmatpush1.bf16.msra.mxu0 %v331
    %465 = vmatprep.subr.bf16.mxu0 %v324
    %466 = vmatpush1.bf16.msra.mxu0 %v323
    %467 = vmatprep.subr.bf16.mxu0 0
    %468 = vmatpush2.bf16.msra.mxu0 0
    %469 = vmatprep.subr.bf16.mxu0 0
    %470 = vmatpush2.bf16.msra.mxu0 0
    %471 = vmatprep.subr.bf16.mxu0 0
    %472 = vmatpush2.bf16.msra.mxu0 0
    %473 = vmatprep.subr.bf16.mxu0 0
    %474 = vmatpush2.bf16.msra.mxu0 0
    %475 = vmatprep.subr.bf16.mxu0 0
    %476 = vmatpush2.bf16.msra.mxu0 0
    %477 = vmatprep.subr.bf16.mxu0 0
    %478 = vmatpush2.bf16.msra.mxu0 0
    %479 = vmatprep.subr.bf16.mxu0 0
    %480 = vmatpush2.bf16.msra.mxu0 0
    %481 = vmatprep.subr.bf16.mxu0 0
    %482 = vmatpush2.bf16.msra.mxu0 0
    %483 = vmatprep.mubr.bf16.mxu0 0
    %484 = vmatmul.mubr.bf16.gmra.mxu0 %v24
    %v485 = vpop.f32.mrf.mxu0
    %v486 = vadd.f32 %v94, %v485
    %v487 = vpop.f32.mrf.mxu0
    %v488 = vadd.f32 %v98, %v487
    %v489 = vpop.f32.mrf.mxu0
    %v490 = vpop.f32.mrf.mxu0
    %491 = vdwg.mxu0
    %492 = vmatprep.subr.bf16.mxu0 %v382
    %493 = vmatpush1.bf16.msra.mxu0 %v381
    %494 = vmatprep.subr.bf16.mxu0 %v374
    %495 = vmatpush1.bf16.msra.mxu0 %v373
    %496 = vmatprep.subr.bf16.mxu0 %v366
    %497 = vmatpush1.bf16.msra.mxu0 %v365
    %498 = vmatprep.subr.bf16.mxu0 %v358
    %499 = vmatpush1.bf16.msra.mxu0 %v357
    %500 = vmatprep.subr.bf16.mxu0 %v350
    %501 = vmatpush1.bf16.msra.mxu0 %v349
    %502 = vmatprep.subr.bf16.mxu0 %v342
    %503 = vmatpush1.bf16.msra.mxu0 %v341
    %504 = vmatprep.subr.bf16.mxu0 %v334
    %505 = vmatpush1.bf16.msra.mxu0 %v333
    %506 = vmatprep.subr.bf16.mxu0 %v326
    %507 = vmatpush1.bf16.msra.mxu0 %v325
    %508 = vmatprep.subr.bf16.mxu0 0
    %509 = vmatpush2.bf16.msra.mxu0 0
    %510 = vmatprep.subr.bf16.mxu0 0
    %511 = vmatpush2.bf16.msra.mxu0 0
    %512 = vmatprep.subr.bf16.mxu0 0
    %513 = vmatpush2.bf16.msra.mxu0 0
    %514 = vmatprep.subr.bf16.mxu0 0
    %515 = vmatpush2.bf16.msra.mxu0 0
    %516 = vmatprep.subr.bf16.mxu0 0
    %517 = vmatpush2.bf16.msra.mxu0 0
    %518 = vmatprep.subr.bf16.mxu0 0
    %519 = vmatpush2.bf16.msra.mxu0 0
    %520 = vmatprep.subr.bf16.mxu0 0
    %521 = vmatpush2.bf16.msra.mxu0 0
    %522 = vmatprep.subr.bf16.mxu0 0
    %523 = vmatpush2.bf16.msra.mxu0 0
    %524 = vmatprep.mubr.bf16.mxu0 0
    %525 = vmatmul.mubr.bf16.gmra.mxu0 %v24
    %v526 = vpop.f32.mrf.mxu0
    %v527 = vadd.f32 %v102, %v526
    %v528 = vpop.f32.mrf.mxu0
    %v529 = vadd.f32 %v106, %v528
    %v530 = vpop.f32.mrf.mxu0
    %v531 = vpop.f32.mrf.mxu0
    %532 = vdwg.mxu0
    %533 = vmatprep.subr.bf16.mxu0 %v384
    %534 = vmatpush1.bf16.msra.mxu0 %v383
    %535 = vmatprep.subr.bf16.mxu0 %v376
    %536 = vmatpush1.bf16.msra.mxu0 %v375
    %537 = vmatprep.subr.bf16.mxu0 %v368
    %538 = vmatpush1.bf16.msra.mxu0 %v367
    %539 = vmatprep.subr.bf16.mxu0 %v360
    %540 = vmatpush1.bf16.msra.mxu0 %v359
    %541 = vmatprep.subr.bf16.mxu0 %v352
    %542 = vmatpush1.bf16.msra.mxu0 %v351
    %543 = vmatprep.subr.bf16.mxu0 %v344
    %544 = vmatpush1.bf16.msra.mxu0 %v343
    %545 = vmatprep.subr.bf16.mxu0 %v336
    %546 = vmatpush1.bf16.msra.mxu0 %v335
    %547 = vmatprep.subr.bf16.mxu0 %v328
    %548 = vmatpush1.bf16.msra.mxu0 %v327
    %549 = vmatprep.subr.bf16.mxu0 0
    %550 = vmatpush2.bf16.msra.mxu0 0
    %551 = vmatprep.subr.bf16.mxu0 0
    %552 = vmatpush2.bf16.msra.mxu0 0
    %553 = vmatprep.subr.bf16.mxu0 0
    %554 = vmatpush2.bf16.msra.mxu0 0
    %555 = vmatprep.subr.bf16.mxu0 0
    %556 = vmatpush2.bf16.msra.mxu0 0
    %557 = vmatprep.subr.bf16.mxu0 0
    %558 = vmatpush2.bf16.msra.mxu0 0
    %559 = vmatprep.subr.bf16.mxu0 0
    %560 = vmatpush2.bf16.msra.mxu0 0
    %561 = vmatprep.subr.bf16.mxu0 0
    %562 = vmatpush2.bf16.msra.mxu0 0
    %563 = vmatprep.subr.bf16.mxu0 0
    %564 = vmatpush2.bf16.msra.mxu0 0
    %565 = vmatprep.mubr.bf16.mxu0 0
    %566 = vmatmul.mubr.bf16.gmra.mxu0 %v24
    %v567 = vpop.f32.mrf.mxu0
    %v568 = vadd.f32 %v110, %v567
    %v569 = vpop.f32.mrf.mxu0
    %v570 = vadd.f32 %v114, %v569
    %v571 = vpop.f32.mrf.mxu0
    %v572 = vpop.f32.mrf.mxu0
    %573 = vdwg.mxu0
    %574 = vmatprep.subr.bf16.mxu0 %v386
    %575 = vmatpush1.bf16.msra.mxu0 %v385
    %576 = vmatprep.subr.bf16.mxu0 %v378
    %577 = vmatpush1.bf16.msra.mxu0 %v377
    %578 = vmatprep.subr.bf16.mxu0 %v370
    %579 = vmatpush1.bf16.msra.mxu0 %v369
    %580 = vmatprep.subr.bf16.mxu0 %v362
    %581 = vmatpush1.bf16.msra.mxu0 %v361
    %582 = vmatprep.subr.bf16.mxu0 %v354
    %583 = vmatpush1.bf16.msra.mxu0 %v353
    %584 = vmatprep.subr.bf16.mxu0 %v346
    %585 = vmatpush1.bf16.msra.mxu0 %v345
    %586 = vmatprep.subr.bf16.mxu0 %v338
    %587 = vmatpush1.bf16.msra.mxu0 %v337
    %588 = vmatprep.subr.bf16.mxu0 %v330
    %589 = vmatpush1.bf16.msra.mxu0 %v329
    %590 = vmatprep.subr.bf16.mxu0 0
    %591 = vmatpush2.bf16.msra.mxu0 0
    %592 = vmatprep.subr.bf16.mxu0 0
    %593 = vmatpush2.bf16.msra.mxu0 0
    %594 = vmatprep.subr.bf16.mxu0 0
    %595 = vmatpush2.bf16.msra.mxu0 0
    %596 = vmatprep.subr.bf16.mxu0 0
    %597 = vmatpush2.bf16.msra.mxu0 0
    %598 = vmatprep.subr.bf16.mxu0 0
    %599 = vmatpush2.bf16.msra.mxu0 0
    %600 = vmatprep.subr.bf16.mxu0 0
    %601 = vmatpush2.bf16.msra.mxu0 0
    %602 = vmatprep.subr.bf16.mxu0 0
    %603 = vmatpush2.bf16.msra.mxu0 0
    %604 = vmatprep.subr.bf16.mxu0 0
    %605 = vmatpush2.bf16.msra.mxu0 0
    %606 = vmatprep.mubr.bf16.mxu0 0
    %607 = vmatmul.mubr.bf16.gmra.mxu0 %v24
    %v608 = vpop.f32.mrf.mxu0
    %v609 = vadd.f32 %v118, %v608
    %v610 = vpop.f32.mrf.mxu0
    %v611 = vadd.f32 %v122, %v610
    %v612 = vpop.f32.mrf.mxu0
    %v613 = vpop.f32.mrf.mxu0
    %614 = vdwg.mxu0
    %v615 = vpack.c.bf16 %v486, %v486
    %v616 = vpack.c.bf16 %v488, %v488
    %v617 = vpack.c.bf16 %v527, %v527
    %v618 = vpack.c.bf16 %v529, %v529
    %v619 = vpack.c.bf16 %v568, %v568
    %v620 = vpack.c.bf16 %v570, %v570
    %v621 = vpack.c.bf16 %v609, %v609
    %v622 = vpack.c.bf16 %v611, %v611
    %v623 = vld [vmem:[%s3] sm:$0xff]
    %v624 = vld [vmem:[%s3 + $0x8] sm:$0xff]
    %v625 = vld [vmem:[%s3 + $0x10] sm:$0xff]
    %v626 = vld [vmem:[%s3 + $0x18] sm:$0xff]
    %v627 = vld [vmem:[%s3 + $0x20] sm:$0xff]
    %v628 = vld [vmem:[%s3 + $0x28] sm:$0xff]
    %v629 = vld [vmem:[%s3 + $0x30] sm:$0xff]
    %v630 = vld [vmem:[%s3 + $0x38] sm:$0xff]
    %v631 = vld [vmem:[%s3 + $0x40] sm:$0xff]
    %v632 = vld [vmem:[%s3 + $0x48] sm:$0xff]
    %v633 = vld [vmem:[%s3 + $0x50] sm:$0xff]
    %v634 = vld [vmem:[%s3 + $0x58] sm:$0xff]
    %v635 = vld [vmem:[%s3 + $0x60] sm:$0xff]
    %v636 = vld [vmem:[%s3 + $0x68] sm:$0xff]
    %v637 = vld [vmem:[%s3 + $0x70] sm:$0xff]
    %v638 = vld [vmem:[%s3 + $0x78] sm:$0xff]
    %v639 = vld [vmem:[%s3 + $0x80] sm:$0xff]
    %v640 = vld [vmem:[%s3 + $0x88] sm:$0xff]
    %v641 = vld [vmem:[%s3 + $0x90] sm:$0xff]
    %v642 = vld [vmem:[%s3 + $0x98] sm:$0xff]
    %v643 = vld [vmem:[%s3 + $0xa0] sm:$0xff]
    %v644 = vld [vmem:[%s3 + $0xa8] sm:$0xff]
    %v645 = vld [vmem:[%s3 + $0xb0] sm:$0xff]
    %v646 = vld [vmem:[%s3 + $0xb8] sm:$0xff]
    %v647 = vld [vmem:[%s3 + $0xc0] sm:$0xff]
    %v648 = vld [vmem:[%s3 + $0xc8] sm:$0xff]
    %v649 = vld [vmem:[%s3 + $0xd0] sm:$0xff]
    %v650 = vld [vmem:[%s3 + $0xd8] sm:$0xff]
    %v651 = vld [vmem:[%s3 + $0xe0] sm:$0xff]
    %v652 = vld [vmem:[%s3 + $0xe8] sm:$0xff]
    %v653 = vld [vmem:[%s3 + $0xf0] sm:$0xff]
    %v654 = vld [vmem:[%s3 + $0xf8] sm:$0xff]
    %v655 = vld [vmem:[%s3 + $0x100] sm:$0xff]
    %v656 = vld [vmem:[%s3 + $0x108] sm:$0xff]
    %v657 = vld [vmem:[%s3 + $0x110] sm:$0xff]
    %v658 = vld [vmem:[%s3 + $0x118] sm:$0xff]
    %v659 = vld [vmem:[%s3 + $0x120] sm:$0xff]
    %v660 = vld [vmem:[%s3 + $0x128] sm:$0xff]
    %v661 = vld [vmem:[%s3 + $0x130] sm:$0xff]
    %v662 = vld [vmem:[%s3 + $0x138] sm:$0xff]
    %v663 = vld [vmem:[%s3 + $0x140] sm:$0xff]
    %v664 = vld [vmem:[%s3 + $0x148] sm:$0xff]
    %v665 = vld [vmem:[%s3 + $0x150] sm:$0xff]
    %v666 = vld [vmem:[%s3 + $0x158] sm:$0xff]
    %v667 = vld [vmem:[%s3 + $0x160] sm:$0xff]
    %v668 = vld [vmem:[%s3 + $0x168] sm:$0xff]
    %v669 = vld [vmem:[%s3 + $0x170] sm:$0xff]
    %v670 = vld [vmem:[%s3 + $0x178] sm:$0xff]
    %v671 = vld [vmem:[%s3 + $0x180] sm:$0xff]
    %v672 = vld [vmem:[%s3 + $0x188] sm:$0xff]
    %v673 = vld [vmem:[%s3 + $0x190] sm:$0xff]
    %v674 = vld [vmem:[%s3 + $0x198] sm:$0xff]
    %v675 = vld [vmem:[%s3 + $0x1a0] sm:$0xff]
    %v676 = vld [vmem:[%s3 + $0x1a8] sm:$0xff]
    %v677 = vld [vmem:[%s3 + $0x1b0] sm:$0xff]
    %v678 = vld [vmem:[%s3 + $0x1b8] sm:$0xff]
    %v679 = vld [vmem:[%s3 + $0x1c0] sm:$0xff]
    %v680 = vld [vmem:[%s3 + $0x1c8] sm:$0xff]
    %v681 = vld [vmem:[%s3 + $0x1d0] sm:$0xff]
    %v682 = vld [vmem:[%s3 + $0x1d8] sm:$0xff]
    %v683 = vld [vmem:[%s3 + $0x1e0] sm:$0xff]
    %v684 = vld [vmem:[%s3 + $0x1e8] sm:$0xff]
    %v685 = vld [vmem:[%s3 + $0x1f0] sm:$0xff]
    %v686 = vld [vmem:[%s3 + $0x1f8] sm:$0xff]
    %v687 = vld [vmem:[%s3 + $0x200] sm:$0xff]
    %v688 = vld [vmem:[%s3 + $0x208] sm:$0xff]
    %v689 = vld [vmem:[%s3 + $0x210] sm:$0xff]
    %v690 = vld [vmem:[%s3 + $0x218] sm:$0xff]
    %v691 = vld [vmem:[%s3 + $0x220] sm:$0xff]
    %v692 = vld [vmem:[%s3 + $0x228] sm:$0xff]
    %v693 = vld [vmem:[%s3 + $0x230] sm:$0xff]
    %v694 = vld [vmem:[%s3 + $0x238] sm:$0xff]
    %v695 = vld [vmem:[%s3 + $0x240] sm:$0xff]
    %v696 = vld [vmem:[%s3 + $0x248] sm:$0xff]
    %v697 = vld [vmem:[%s3 + $0x250] sm:$0xff]
    %v698 = vld [vmem:[%s3 + $0x258] sm:$0xff]
    %v699 = vld [vmem:[%s3 + $0x260] sm:$0xff]
    %v700 = vld [vmem:[%s3 + $0x268] sm:$0xff]
    %v701 = vld [vmem:[%s3 + $0x270] sm:$0xff]
    %v702 = vld [vmem:[%s3 + $0x278] sm:$0xff]
    %v703 = vld [vmem:[%s3 + $0x280] sm:$0xff]
    %v704 = vld [vmem:[%s3 + $0x288] sm:$0xff]
    %v705 = vld [vmem:[%s3 + $0x290] sm:$0xff]
    %v706 = vld [vmem:[%s3 + $0x298] sm:$0xff]
    %v707 = vld [vmem:[%s3 + $0x2a0] sm:$0xff]
    %v708 = vld [vmem:[%s3 + $0x2a8] sm:$0xff]
    %v709 = vld [vmem:[%s3 + $0x2b0] sm:$0xff]
    %v710 = vld [vmem:[%s3 + $0x2b8] sm:$0xff]
    %v711 = vld [vmem:[%s3 + $0x2c0] sm:$0xff]
    %v712 = vld [vmem:[%s3 + $0x2c8] sm:$0xff]
    %v713 = vld [vmem:[%s3 + $0x2d0] sm:$0xff]
    %v714 = vld [vmem:[%s3 + $0x2d8] sm:$0xff]
    %v715 = vld [vmem:[%s3 + $0x2e0] sm:$0xff]
    %v716 = vld [vmem:[%s3 + $0x2e8] sm:$0xff]
    %v717 = vld [vmem:[%s3 + $0x2f0] sm:$0xff]
    %v718 = vld [vmem:[%s3 + $0x2f8] sm:$0xff]
    %v719 = vld [vmem:[%s3 + $0x300] sm:$0xff]
    %v720 = vld [vmem:[%s3 + $0x308] sm:$0xff]
    %v721 = vld [vmem:[%s3 + $0x310] sm:$0xff]
    %v722 = vld [vmem:[%s3 + $0x318] sm:$0xff]
    %v723 = vld [vmem:[%s3 + $0x320] sm:$0xff]
    %v724 = vld [vmem:[%s3 + $0x328] sm:$0xff]
    %v725 = vld [vmem:[%s3 + $0x330] sm:$0xff]
    %v726 = vld [vmem:[%s3 + $0x338] sm:$0xff]
    %v727 = vld [vmem:[%s3 + $0x340] sm:$0xff]
    %v728 = vld [vmem:[%s3 + $0x348] sm:$0xff]
    %v729 = vld [vmem:[%s3 + $0x350] sm:$0xff]
    %v730 = vld [vmem:[%s3 + $0x358] sm:$0xff]
    %v731 = vld [vmem:[%s3 + $0x360] sm:$0xff]
    %v732 = vld [vmem:[%s3 + $0x368] sm:$0xff]
    %v733 = vld [vmem:[%s3 + $0x370] sm:$0xff]
    %v734 = vld [vmem:[%s3 + $0x378] sm:$0xff]
    %v735 = vld [vmem:[%s3 + $0x380] sm:$0xff]
    %v736 = vld [vmem:[%s3 + $0x388] sm:$0xff]
    %v737 = vld [vmem:[%s3 + $0x390] sm:$0xff]
    %v738 = vld [vmem:[%s3 + $0x398] sm:$0xff]
    %v739 = vld [vmem:[%s3 + $0x3a0] sm:$0xff]
    %v740 = vld [vmem:[%s3 + $0x3a8] sm:$0xff]
    %v741 = vld [vmem:[%s3 + $0x3b0] sm:$0xff]
    %v742 = vld [vmem:[%s3 + $0x3b8] sm:$0xff]
    %v743 = vld [vmem:[%s3 + $0x3c0] sm:$0xff]
    %v744 = vld [vmem:[%s3 + $0x3c8] sm:$0xff]
    %v745 = vld [vmem:[%s3 + $0x3d0] sm:$0xff]
    %v746 = vld [vmem:[%s3 + $0x3d8] sm:$0xff]
    %v747 = vld [vmem:[%s3 + $0x3e0] sm:$0xff]
    %v748 = vld [vmem:[%s3 + $0x3e8] sm:$0xff]
    %v749 = vld [vmem:[%s3 + $0x3f0] sm:$0xff]
    %v750 = vld [vmem:[%s3 + $0x3f8] sm:$0xff]
    %v751 = vld [vmem:[%s3 + $0x400] sm:$0xff]
    %v752 = vld [vmem:[%s3 + $0x408] sm:$0xff]
    %v753 = vld [vmem:[%s3 + $0x410] sm:$0xff]
    %v754 = vld [vmem:[%s3 + $0x418] sm:$0xff]
    %v755 = vld [vmem:[%s3 + $0x420] sm:$0xff]
    %v756 = vld [vmem:[%s3 + $0x428] sm:$0xff]
    %v757 = vld [vmem:[%s3 + $0x430] sm:$0xff]
    %v758 = vld [vmem:[%s3 + $0x438] sm:$0xff]
    %v759 = vld [vmem:[%s3 + $0x440] sm:$0xff]
    %v760 = vld [vmem:[%s3 + $0x448] sm:$0xff]
    %v761 = vld [vmem:[%s3 + $0x450] sm:$0xff]
    %v762 = vld [vmem:[%s3 + $0x458] sm:$0xff]
    %v763 = vld [vmem:[%s3 + $0x460] sm:$0xff]
    %v764 = vld [vmem:[%s3 + $0x468] sm:$0xff]
    %v765 = vld [vmem:[%s3 + $0x470] sm:$0xff]
    %v766 = vld [vmem:[%s3 + $0x478] sm:$0xff]
    %v767 = vld [vmem:[%s3 + $0x480] sm:$0xff]
    %v768 = vld [vmem:[%s3 + $0x488] sm:$0xff]
    %v769 = vld [vmem:[%s3 + $0x490] sm:$0xff]
    %v770 = vld [vmem:[%s3 + $0x498] sm:$0xff]
    %v771 = vld [vmem:[%s3 + $0x4a0] sm:$0xff]
    %v772 = vld [vmem:[%s3 + $0x4a8] sm:$0xff]
    %v773 = vld [vmem:[%s3 + $0x4b0] sm:$0xff]
    %v774 = vld [vmem:[%s3 + $0x4b8] sm:$0xff]
    %v775 = vld [vmem:[%s3 + $0x4c0] sm:$0xff]
    %v776 = vld [vmem:[%s3 + $0x4c8] sm:$0xff]
    %v777 = vld [vmem:[%s3 + $0x4d0] sm:$0xff]
    %v778 = vld [vmem:[%s3 + $0x4d8] sm:$0xff]
    %v779 = vld [vmem:[%s3 + $0x4e0] sm:$0xff]
    %v780 = vld [vmem:[%s3 + $0x4e8] sm:$0xff]
    %v781 = vld [vmem:[%s3 + $0x4f0] sm:$0xff]
    %v782 = vld [vmem:[%s3 + $0x4f8] sm:$0xff]
    %v783 = vld [vmem:[%s3 + $0x500] sm:$0xff]
    %v784 = vld [vmem:[%s3 + $0x508] sm:$0xff]
    %v785 = vld [vmem:[%s3 + $0x510] sm:$0xff]
    %v786 = vld [vmem:[%s3 + $0x518] sm:$0xff]
    %v787 = vld [vmem:[%s3 + $0x520] sm:$0xff]
    %v788 = vld [vmem:[%s3 + $0x528] sm:$0xff]
    %v789 = vld [vmem:[%s3 + $0x530] sm:$0xff]
    %v790 = vld [vmem:[%s3 + $0x538] sm:$0xff]
    %v791 = vld [vmem:[%s3 + $0x540] sm:$0xff]
    %v792 = vld [vmem:[%s3 + $0x548] sm:$0xff]
    %v793 = vld [vmem:[%s3 + $0x550] sm:$0xff]
    %v794 = vld [vmem:[%s3 + $0x558] sm:$0xff]
    %v795 = vld [vmem:[%s3 + $0x560] sm:$0xff]
    %v796 = vld [vmem:[%s3 + $0x568] sm:$0xff]
    %v797 = vld [vmem:[%s3 + $0x570] sm:$0xff]
    %v798 = vld [vmem:[%s3 + $0x578] sm:$0xff]
    %v799 = vld [vmem:[%s3 + $0x580] sm:$0xff]
    %v800 = vld [vmem:[%s3 + $0x588] sm:$0xff]
    %v801 = vld [vmem:[%s3 + $0x590] sm:$0xff]
    %v802 = vld [vmem:[%s3 + $0x598] sm:$0xff]
    %v803 = vld [vmem:[%s3 + $0x5a0] sm:$0xff]
    %v804 = vld [vmem:[%s3 + $0x5a8] sm:$0xff]
    %v805 = vld [vmem:[%s3 + $0x5b0] sm:$0xff]
    %v806 = vld [vmem:[%s3 + $0x5b8] sm:$0xff]
    %v807 = vld [vmem:[%s3 + $0x5c0] sm:$0xff]
    %v808 = vld [vmem:[%s3 + $0x5c8] sm:$0xff]
    %v809 = vld [vmem:[%s3 + $0x5d0] sm:$0xff]
    %v810 = vld [vmem:[%s3 + $0x5d8] sm:$0xff]
    %v811 = vld [vmem:[%s3 + $0x5e0] sm:$0xff]
    %v812 = vld [vmem:[%s3 + $0x5e8] sm:$0xff]
    %v813 = vld [vmem:[%s3 + $0x5f0] sm:$0xff]
    %v814 = vld [vmem:[%s3 + $0x5f8] sm:$0xff]
    %v815 = vld [vmem:[%s3 + $0x600] sm:$0xff]
    %v816 = vld [vmem:[%s3 + $0x608] sm:$0xff]
    %v817 = vld [vmem:[%s3 + $0x610] sm:$0xff]
    %v818 = vld [vmem:[%s3 + $0x618] sm:$0xff]
    %v819 = vld [vmem:[%s3 + $0x620] sm:$0xff]
    %v820 = vld [vmem:[%s3 + $0x628] sm:$0xff]
    %v821 = vld [vmem:[%s3 + $0x630] sm:$0xff]
    %v822 = vld [vmem:[%s3 + $0x638] sm:$0xff]
    %v823 = vld [vmem:[%s3 + $0x640] sm:$0xff]
    %v824 = vld [vmem:[%s3 + $0x648] sm:$0xff]
    %v825 = vld [vmem:[%s3 + $0x650] sm:$0xff]
    %v826 = vld [vmem:[%s3 + $0x658] sm:$0xff]
    %v827 = vld [vmem:[%s3 + $0x660] sm:$0xff]
    %v828 = vld [vmem:[%s3 + $0x668] sm:$0xff]
    %v829 = vld [vmem:[%s3 + $0x670] sm:$0xff]
    %v830 = vld [vmem:[%s3 + $0x678] sm:$0xff]
    %v831 = vld [vmem:[%s3 + $0x680] sm:$0xff]
    %v832 = vld [vmem:[%s3 + $0x688] sm:$0xff]
    %v833 = vld [vmem:[%s3 + $0x690] sm:$0xff]
    %v834 = vld [vmem:[%s3 + $0x698] sm:$0xff]
    %v835 = vld [vmem:[%s3 + $0x6a0] sm:$0xff]
    %v836 = vld [vmem:[%s3 + $0x6a8] sm:$0xff]
    %v837 = vld [vmem:[%s3 + $0x6b0] sm:$0xff]
    %v838 = vld [vmem:[%s3 + $0x6b8] sm:$0xff]
    %v839 = vld [vmem:[%s3 + $0x6c0] sm:$0xff]
    %v840 = vld [vmem:[%s3 + $0x6c8] sm:$0xff]
    %v841 = vld [vmem:[%s3 + $0x6d0] sm:$0xff]
    %v842 = vld [vmem:[%s3 + $0x6d8] sm:$0xff]
    %v843 = vld [vmem:[%s3 + $0x6e0] sm:$0xff]
    %v844 = vld [vmem:[%s3 + $0x6e8] sm:$0xff]
    %v845 = vld [vmem:[%s3 + $0x6f0] sm:$0xff]
    %v846 = vld [vmem:[%s3 + $0x6f8] sm:$0xff]
    %v847 = vld [vmem:[%s3 + $0x700] sm:$0xff]
    %v848 = vld [vmem:[%s3 + $0x708] sm:$0xff]
    %v849 = vld [vmem:[%s3 + $0x710] sm:$0xff]
    %v850 = vld [vmem:[%s3 + $0x718] sm:$0xff]
    %v851 = vld [vmem:[%s3 + $0x720] sm:$0xff]
    %v852 = vld [vmem:[%s3 + $0x728] sm:$0xff]
    %v853 = vld [vmem:[%s3 + $0x730] sm:$0xff]
    %v854 = vld [vmem:[%s3 + $0x738] sm:$0xff]
    %v855 = vld [vmem:[%s3 + $0x740] sm:$0xff]
    %v856 = vld [vmem:[%s3 + $0x748] sm:$0xff]
    %v857 = vld [vmem:[%s3 + $0x750] sm:$0xff]
    %v858 = vld [vmem:[%s3 + $0x758] sm:$0xff]
    %v859 = vld [vmem:[%s3 + $0x760] sm:$0xff]
    %v860 = vld [vmem:[%s3 + $0x768] sm:$0xff]
    %v861 = vld [vmem:[%s3 + $0x770] sm:$0xff]
    %v862 = vld [vmem:[%s3 + $0x778] sm:$0xff]
    %v863 = vld [vmem:[%s3 + $0x780] sm:$0xff]
    %v864 = vld [vmem:[%s3 + $0x788] sm:$0xff]
    %v865 = vld [vmem:[%s3 + $0x790] sm:$0xff]
    %v866 = vld [vmem:[%s3 + $0x798] sm:$0xff]
    %v867 = vld [vmem:[%s3 + $0x7a0] sm:$0xff]
    %v868 = vld [vmem:[%s3 + $0x7a8] sm:$0xff]
    %v869 = vld [vmem:[%s3 + $0x7b0] sm:$0xff]
    %v870 = vld [vmem:[%s3 + $0x7b8] sm:$0xff]
    %v871 = vld [vmem:[%s3 + $0x7c0] sm:$0xff]
    %v872 = vld [vmem:[%s3 + $0x7c8] sm:$0xff]
    %v873 = vld [vmem:[%s3 + $0x7d0] sm:$0xff]
    %v874 = vld [vmem:[%s3 + $0x7d8] sm:$0xff]
    %v875 = vld [vmem:[%s3 + $0x7e0] sm:$0xff]
    %v876 = vld [vmem:[%s3 + $0x7e8] sm:$0xff]
    %v877 = vld [vmem:[%s3 + $0x7f0] sm:$0xff]
    %v878 = vld [vmem:[%s3 + $0x7f8] sm:$0xff]
    %v879 = vld [vmem:[%s3 + $0x800] sm:$0xff]
    %v880 = vld [vmem:[%s3 + $0x808] sm:$0xff]
    %v881 = vld [vmem:[%s3 + $0x810] sm:$0xff]
    %v882 = vld [vmem:[%s3 + $0x818] sm:$0xff]
    %v883 = vld [vmem:[%s3 + $0x820] sm:$0xff]
    %v884 = vld [vmem:[%s3 + $0x828] sm:$0xff]
    %v885 = vld [vmem:[%s3 + $0x830] sm:$0xff]
    %v886 = vld [vmem:[%s3 + $0x838] sm:$0xff]
    %v887 = vld [vmem:[%s3 + $0x840] sm:$0xff]
    %v888 = vld [vmem:[%s3 + $0x848] sm:$0xff]
    %v889 = vld [vmem:[%s3 + $0x850] sm:$0xff]
    %v890 = vld [vmem:[%s3 + $0x858] sm:$0xff]
    %v891 = vld [vmem:[%s3 + $0x860] sm:$0xff]
    %v892 = vld [vmem:[%s3 + $0x868] sm:$0xff]
    %v893 = vld [vmem:[%s3 + $0x870] sm:$0xff]
    %v894 = vld [vmem:[%s3 + $0x878] sm:$0xff]
    %v895 = vld [vmem:[%s3 + $0x880] sm:$0xff]
    %v896 = vld [vmem:[%s3 + $0x888] sm:$0xff]
    %v897 = vld [vmem:[%s3 + $0x890] sm:$0xff]
    %v898 = vld [vmem:[%s3 + $0x898] sm:$0xff]
    %v899 = vld [vmem:[%s3 + $0x8a0] sm:$0xff]
    %v900 = vld [vmem:[%s3 + $0x8a8] sm:$0xff]
    %v901 = vld [vmem:[%s3 + $0x8b0] sm:$0xff]
    %v902 = vld [vmem:[%s3 + $0x8b8] sm:$0xff]
    %v903 = vld [vmem:[%s3 + $0x8c0] sm:$0xff]
    %v904 = vld [vmem:[%s3 + $0x8c8] sm:$0xff]
    %v905 = vld [vmem:[%s3 + $0x8d0] sm:$0xff]
    %v906 = vld [vmem:[%s3 + $0x8d8] sm:$0xff]
    %v907 = vld [vmem:[%s3 + $0x8e0] sm:$0xff]
    %v908 = vld [vmem:[%s3 + $0x8e8] sm:$0xff]
    %v909 = vld [vmem:[%s3 + $0x8f0] sm:$0xff]
    %v910 = vld [vmem:[%s3 + $0x8f8] sm:$0xff]
    %v911 = vld [vmem:[%s3 + $0x900] sm:$0xff]
    %v912 = vld [vmem:[%s3 + $0x908] sm:$0xff]
    %v913 = vld [vmem:[%s3 + $0x910] sm:$0xff]
    %v914 = vld [vmem:[%s3 + $0x918] sm:$0xff]
    %v915 = vld [vmem:[%s3 + $0x920] sm:$0xff]
    %v916 = vld [vmem:[%s3 + $0x928] sm:$0xff]
    %v917 = vld [vmem:[%s3 + $0x930] sm:$0xff]
    %v918 = vld [vmem:[%s3 + $0x938] sm:$0xff]
    %v919 = vld [vmem:[%s3 + $0x940] sm:$0xff]
    %v920 = vld [vmem:[%s3 + $0x948] sm:$0xff]
    %v921 = vld [vmem:[%s3 + $0x950] sm:$0xff]
    %v922 = vld [vmem:[%s3 + $0x958] sm:$0xff]
    %v923 = vld [vmem:[%s3 + $0x960] sm:$0xff]
    %v924 = vld [vmem:[%s3 + $0x968] sm:$0xff]
    %v925 = vld [vmem:[%s3 + $0x970] sm:$0xff]
    %v926 = vld [vmem:[%s3 + $0x978] sm:$0xff]
    %v927 = vld [vmem:[%s3 + $0x980] sm:$0xff]
    %v928 = vld [vmem:[%s3 + $0x988] sm:$0xff]
    %v929 = vld [vmem:[%s3 + $0x990] sm:$0xff]
    %v930 = vld [vmem:[%s3 + $0x998] sm:$0xff]
    %v931 = vld [vmem:[%s3 + $0x9a0] sm:$0xff]
    %v932 = vld [vmem:[%s3 + $0x9a8] sm:$0xff]
    %v933 = vld [vmem:[%s3 + $0x9b0] sm:$0xff]
    %v934 = vld [vmem:[%s3 + $0x9b8] sm:$0xff]
    %v935 = vld [vmem:[%s3 + $0x9c0] sm:$0xff]
    %v936 = vld [vmem:[%s3 + $0x9c8] sm:$0xff]
    %v937 = vld [vmem:[%s3 + $0x9d0] sm:$0xff]
    %v938 = vld [vmem:[%s3 + $0x9d8] sm:$0xff]
    %v939 = vld [vmem:[%s3 + $0x9e0] sm:$0xff]
    %v940 = vld [vmem:[%s3 + $0x9e8] sm:$0xff]
    %v941 = vld [vmem:[%s3 + $0x9f0] sm:$0xff]
    %v942 = vld [vmem:[%s3 + $0x9f8] sm:$0xff]
    %v943 = vld [vmem:[%s3 + $0xa00] sm:$0xff]
    %v944 = vld [vmem:[%s3 + $0xa08] sm:$0xff]
    %v945 = vld [vmem:[%s3 + $0xa10] sm:$0xff]
    %v946 = vld [vmem:[%s3 + $0xa18] sm:$0xff]
    %v947 = vld [vmem:[%s3 + $0xa20] sm:$0xff]
    %v948 = vld [vmem:[%s3 + $0xa28] sm:$0xff]
    %v949 = vld [vmem:[%s3 + $0xa30] sm:$0xff]
    %v950 = vld [vmem:[%s3 + $0xa38] sm:$0xff]
    %v951 = vld [vmem:[%s3 + $0xa40] sm:$0xff]
    %v952 = vld [vmem:[%s3 + $0xa48] sm:$0xff]
    %v953 = vld [vmem:[%s3 + $0xa50] sm:$0xff]
    %v954 = vld [vmem:[%s3 + $0xa58] sm:$0xff]
    %v955 = vld [vmem:[%s3 + $0xa60] sm:$0xff]
    %v956 = vld [vmem:[%s3 + $0xa68] sm:$0xff]
    %v957 = vld [vmem:[%s3 + $0xa70] sm:$0xff]
    %v958 = vld [vmem:[%s3 + $0xa78] sm:$0xff]
    %v959 = vld [vmem:[%s3 + $0xa80] sm:$0xff]
    %v960 = vld [vmem:[%s3 + $0xa88] sm:$0xff]
    %v961 = vld [vmem:[%s3 + $0xa90] sm:$0xff]
    %v962 = vld [vmem:[%s3 + $0xa98] sm:$0xff]
    %v963 = vld [vmem:[%s3 + $0xaa0] sm:$0xff]
    %v964 = vld [vmem:[%s3 + $0xaa8] sm:$0xff]
    %v965 = vld [vmem:[%s3 + $0xab0] sm:$0xff]
    %v966 = vld [vmem:[%s3 + $0xab8] sm:$0xff]
    %v967 = vld [vmem:[%s3 + $0xac0] sm:$0xff]
    %v968 = vld [vmem:[%s3 + $0xac8] sm:$0xff]
    %v969 = vld [vmem:[%s3 + $0xad0] sm:$0xff]
    %v970 = vld [vmem:[%s3 + $0xad8] sm:$0xff]
    %v971 = vld [vmem:[%s3 + $0xae0] sm:$0xff]
    %v972 = vld [vmem:[%s3 + $0xae8] sm:$0xff]
    %v973 = vld [vmem:[%s3 + $0xaf0] sm:$0xff]
    %v974 = vld [vmem:[%s3 + $0xaf8] sm:$0xff]
    %v975 = vld [vmem:[%s3 + $0xb00] sm:$0xff]
    %v976 = vld [vmem:[%s3 + $0xb08] sm:$0xff]
    %v977 = vld [vmem:[%s3 + $0xb10] sm:$0xff]
    %v978 = vld [vmem:[%s3 + $0xb18] sm:$0xff]
    %v979 = vld [vmem:[%s3 + $0xb20] sm:$0xff]
    %v980 = vld [vmem:[%s3 + $0xb28] sm:$0xff]
    %v981 = vld [vmem:[%s3 + $0xb30] sm:$0xff]
    %v982 = vld [vmem:[%s3 + $0xb38] sm:$0xff]
    %v983 = vld [vmem:[%s3 + $0xb40] sm:$0xff]
    %v984 = vld [vmem:[%s3 + $0xb48] sm:$0xff]
    %v985 = vld [vmem:[%s3 + $0xb50] sm:$0xff]
    %v986 = vld [vmem:[%s3 + $0xb58] sm:$0xff]
    %v987 = vld [vmem:[%s3 + $0xb60] sm:$0xff]
    %v988 = vld [vmem:[%s3 + $0xb68] sm:$0xff]
    %v989 = vld [vmem:[%s3 + $0xb70] sm:$0xff]
    %v990 = vld [vmem:[%s3 + $0xb78] sm:$0xff]
    %v991 = vld [vmem:[%s3 + $0xb80] sm:$0xff]
    %v992 = vld [vmem:[%s3 + $0xb88] sm:$0xff]
    %v993 = vld [vmem:[%s3 + $0xb90] sm:$0xff]
    %v994 = vld [vmem:[%s3 + $0xb98] sm:$0xff]
    %v995 = vld [vmem:[%s3 + $0xba0] sm:$0xff]
    %v996 = vld [vmem:[%s3 + $0xba8] sm:$0xff]
    %v997 = vld [vmem:[%s3 + $0xbb0] sm:$0xff]
    %v998 = vld [vmem:[%s3 + $0xbb8] sm:$0xff]
    %v999 = vld [vmem:[%s3 + $0xbc0] sm:$0xff]
    %v1000 = vld [vmem:[%s3 + $0xbc8] sm:$0xff]
    %v1001 = vld [vmem:[%s3 + $0xbd0] sm:$0xff]
    %v1002 = vld [vmem:[%s3 + $0xbd8] sm:$0xff]
    %v1003 = vld [vmem:[%s3 + $0xbe0] sm:$0xff]
    %v1004 = vld [vmem:[%s3 + $0xbe8] sm:$0xff]
    %v1005 = vld [vmem:[%s3 + $0xbf0] sm:$0xff]
    %v1006 = vld [vmem:[%s3 + $0xbf8] sm:$0xff]
    %v1007 = vld [vmem:[%s3 + $0xc00] sm:$0xff]
    %v1008 = vld [vmem:[%s3 + $0xc08] sm:$0xff]
    %v1009 = vld [vmem:[%s3 + $0xc10] sm:$0xff]
    %v1010 = vld [vmem:[%s3 + $0xc18] sm:$0xff]
    %v1011 = vld [vmem:[%s3 + $0xc20] sm:$0xff]
    %v1012 = vld [vmem:[%s3 + $0xc28] sm:$0xff]
    %v1013 = vld [vmem:[%s3 + $0xc30] sm:$0xff]
    %v1014 = vld [vmem:[%s3 + $0xc38] sm:$0xff]
    %v1015 = vld [vmem:[%s3 + $0xc40] sm:$0xff]
    %v1016 = vld [vmem:[%s3 + $0xc48] sm:$0xff]
    %v1017 = vld [vmem:[%s3 + $0xc50] sm:$0xff]
    %v1018 = vld [vmem:[%s3 + $0xc58] sm:$0xff]
    %v1019 = vld [vmem:[%s3 + $0xc60] sm:$0xff]
    %v1020 = vld [vmem:[%s3 + $0xc68] sm:$0xff]
    %v1021 = vld [vmem:[%s3 + $0xc70] sm:$0xff]
    %v1022 = vld [vmem:[%s3 + $0xc78] sm:$0xff]
    %v1023 = vld [vmem:[%s3 + $0xc80] sm:$0xff]
    %v1024 = vld [vmem:[%s3 + $0xc88] sm:$0xff]
    %v1025 = vld [vmem:[%s3 + $0xc90] sm:$0xff]
    %v1026 = vld [vmem:[%s3 + $0xc98] sm:$0xff]
    %v1027 = vld [vmem:[%s3 + $0xca0] sm:$0xff]
    %v1028 = vld [vmem:[%s3 + $0xca8] sm:$0xff]
    %v1029 = vld [vmem:[%s3 + $0xcb0] sm:$0xff]
    %v1030 = vld [vmem:[%s3 + $0xcb8] sm:$0xff]
    %v1031 = vld [vmem:[%s3 + $0xcc0] sm:$0xff]
    %v1032 = vld [vmem:[%s3 + $0xcc8] sm:$0xff]
    %v1033 = vld [vmem:[%s3 + $0xcd0] sm:$0xff]
    %v1034 = vld [vmem:[%s3 + $0xcd8] sm:$0xff]
    %v1035 = vld [vmem:[%s3 + $0xce0] sm:$0xff]
    %v1036 = vld [vmem:[%s3 + $0xce8] sm:$0xff]
    %v1037 = vld [vmem:[%s3 + $0xcf0] sm:$0xff]
    %v1038 = vld [vmem:[%s3 + $0xcf8] sm:$0xff]
    %v1039 = vld [vmem:[%s3 + $0xd00] sm:$0xff]
    %v1040 = vld [vmem:[%s3 + $0xd08] sm:$0xff]
    %v1041 = vld [vmem:[%s3 + $0xd10] sm:$0xff]
    %v1042 = vld [vmem:[%s3 + $0xd18] sm:$0xff]
    %v1043 = vld [vmem:[%s3 + $0xd20] sm:$0xff]
    %v1044 = vld [vmem:[%s3 + $0xd28] sm:$0xff]
    %v1045 = vld [vmem:[%s3 + $0xd30] sm:$0xff]
    %v1046 = vld [vmem:[%s3 + $0xd38] sm:$0xff]
    %v1047 = vld [vmem:[%s3 + $0xd40] sm:$0xff]
    %v1048 = vld [vmem:[%s3 + $0xd48] sm:$0xff]
    %v1049 = vld [vmem:[%s3 + $0xd50] sm:$0xff]
    %v1050 = vld [vmem:[%s3 + $0xd58] sm:$0xff]
    %v1051 = vld [vmem:[%s3 + $0xd60] sm:$0xff]
    %v1052 = vld [vmem:[%s3 + $0xd68] sm:$0xff]
    %v1053 = vld [vmem:[%s3 + $0xd70] sm:$0xff]
    %v1054 = vld [vmem:[%s3 + $0xd78] sm:$0xff]
    %v1055 = vld [vmem:[%s3 + $0xd80] sm:$0xff]
    %v1056 = vld [vmem:[%s3 + $0xd88] sm:$0xff]
    %v1057 = vld [vmem:[%s3 + $0xd90] sm:$0xff]
    %v1058 = vld [vmem:[%s3 + $0xd98] sm:$0xff]
    %v1059 = vld [vmem:[%s3 + $0xda0] sm:$0xff]
    %v1060 = vld [vmem:[%s3 + $0xda8] sm:$0xff]
    %v1061 = vld [vmem:[%s3 + $0xdb0] sm:$0xff]
    %v1062 = vld [vmem:[%s3 + $0xdb8] sm:$0xff]
    %v1063 = vld [vmem:[%s3 + $0xdc0] sm:$0xff]
    %v1064 = vld [vmem:[%s3 + $0xdc8] sm:$0xff]
    %v1065 = vld [vmem:[%s3 + $0xdd0] sm:$0xff]
    %v1066 = vld [vmem:[%s3 + $0xdd8] sm:$0xff]
    %v1067 = vld [vmem:[%s3 + $0xde0] sm:$0xff]
    %v1068 = vld [vmem:[%s3 + $0xde8] sm:$0xff]
    %v1069 = vld [vmem:[%s3 + $0xdf0] sm:$0xff]
    %v1070 = vld [vmem:[%s3 + $0xdf8] sm:$0xff]
    %v1071 = vld [vmem:[%s3 + $0xe00] sm:$0xff]
    %v1072 = vld [vmem:[%s3 + $0xe08] sm:$0xff]
    %v1073 = vld [vmem:[%s3 + $0xe10] sm:$0xff]
    %v1074 = vld [vmem:[%s3 + $0xe18] sm:$0xff]
    %v1075 = vld [vmem:[%s3 + $0xe20] sm:$0xff]
    %v1076 = vld [vmem:[%s3 + $0xe28] sm:$0xff]
    %v1077 = vld [vmem:[%s3 + $0xe30] sm:$0xff]
    %v1078 = vld [vmem:[%s3 + $0xe38] sm:$0xff]
    %v1079 = vld [vmem:[%s3 + $0xe40] sm:$0xff]
    %v1080 = vld [vmem:[%s3 + $0xe48] sm:$0xff]
    %v1081 = vld [vmem:[%s3 + $0xe50] sm:$0xff]
    %v1082 = vld [vmem:[%s3 + $0xe58] sm:$0xff]
    %v1083 = vld [vmem:[%s3 + $0xe60] sm:$0xff]
    %v1084 = vld [vmem:[%s3 + $0xe68] sm:$0xff]
    %v1085 = vld [vmem:[%s3 + $0xe70] sm:$0xff]
    %v1086 = vld [vmem:[%s3 + $0xe78] sm:$0xff]
    %v1087 = vld [vmem:[%s3 + $0xe80] sm:$0xff]
    %v1088 = vld [vmem:[%s3 + $0xe88] sm:$0xff]
    %v1089 = vld [vmem:[%s3 + $0xe90] sm:$0xff]
    %v1090 = vld [vmem:[%s3 + $0xe98] sm:$0xff]
    %v1091 = vld [vmem:[%s3 + $0xea0] sm:$0xff]
    %v1092 = vld [vmem:[%s3 + $0xea8] sm:$0xff]
    %v1093 = vld [vmem:[%s3 + $0xeb0] sm:$0xff]
    %v1094 = vld [vmem:[%s3 + $0xeb8] sm:$0xff]
    %v1095 = vld [vmem:[%s3 + $0xec0] sm:$0xff]
    %v1096 = vld [vmem:[%s3 + $0xec8] sm:$0xff]
    %v1097 = vld [vmem:[%s3 + $0xed0] sm:$0xff]
    %v1098 = vld [vmem:[%s3 + $0xed8] sm:$0xff]
    %v1099 = vld [vmem:[%s3 + $0xee0] sm:$0xff]
    %v1100 = vld [vmem:[%s3 + $0xee8] sm:$0xff]
    %v1101 = vld [vmem:[%s3 + $0xef0] sm:$0xff]
    %v1102 = vld [vmem:[%s3 + $0xef8] sm:$0xff]
    %v1103 = vld [vmem:[%s3 + $0xf00] sm:$0xff]
    %v1104 = vld [vmem:[%s3 + $0xf08] sm:$0xff]
    %v1105 = vld [vmem:[%s3 + $0xf10] sm:$0xff]
    %v1106 = vld [vmem:[%s3 + $0xf18] sm:$0xff]
    %v1107 = vld [vmem:[%s3 + $0xf20] sm:$0xff]
    %v1108 = vld [vmem:[%s3 + $0xf28] sm:$0xff]
    %v1109 = vld [vmem:[%s3 + $0xf30] sm:$0xff]
    %v1110 = vld [vmem:[%s3 + $0xf38] sm:$0xff]
    %v1111 = vld [vmem:[%s3 + $0xf40] sm:$0xff]
    %v1112 = vld [vmem:[%s3 + $0xf48] sm:$0xff]
    %v1113 = vld [vmem:[%s3 + $0xf50] sm:$0xff]
    %v1114 = vld [vmem:[%s3 + $0xf58] sm:$0xff]
    %v1115 = vld [vmem:[%s3 + $0xf60] sm:$0xff]
    %v1116 = vld [vmem:[%s3 + $0xf68] sm:$0xff]
    %v1117 = vld [vmem:[%s3 + $0xf70] sm:$0xff]
    %v1118 = vld [vmem:[%s3 + $0xf78] sm:$0xff]
    %v1119 = vld [vmem:[%s3 + $0xf80] sm:$0xff]
    %v1120 = vld [vmem:[%s3 + $0xf88] sm:$0xff]
    %v1121 = vld [vmem:[%s3 + $0xf90] sm:$0xff]
    %v1122 = vld [vmem:[%s3 + $0xf98] sm:$0xff]
    %v1123 = vld [vmem:[%s3 + $0xfa0] sm:$0xff]
    %v1124 = vld [vmem:[%s3 + $0xfa8] sm:$0xff]
    %v1125 = vld [vmem:[%s3 + $0xfb0] sm:$0xff]
    %v1126 = vld [vmem:[%s3 + $0xfb8] sm:$0xff]
    %v1127 = vld [vmem:[%s3 + $0xfc0] sm:$0xff]
    %v1128 = vld [vmem:[%s3 + $0xfc8] sm:$0xff]
    %v1129 = vld [vmem:[%s3 + $0xfd0] sm:$0xff]
    %v1130 = vld [vmem:[%s3 + $0xfd8] sm:$0xff]
    %v1131 = vld [vmem:[%s3 + $0xfe0] sm:$0xff]
    %v1132 = vld [vmem:[%s3 + $0xfe8] sm:$0xff]
    %v1133 = vld [vmem:[%s3 + $0xff0] sm:$0xff]
    %v1134 = vld [vmem:[%s3 + $0xff8] sm:$0xff]
    %v1135 = vld [vmem:[%s4] sm:$0xff]
    %v1137 = vlaneseq
    %v1138 = vshrl.u32 %v1137, 7
    %v1139 = vsub.s32 0, %v1138
    %v1140 = vrot.slane %v1135, %v1139
    %v1141 = vlaneseq
    %v1142 = vshrl.u32 %v1141, 7
    %v1143 = vsub.s32 1, %v1142
    %v1144 = vrot.slane %v1135, %v1143
    %v1145 = vlaneseq
    %v1146 = vshrl.u32 %v1145, 7
    %v1147 = vsub.s32 2, %v1146
    %v1148 = vrot.slane %v1135, %v1147
    %v1149 = vlaneseq
    %v1150 = vshrl.u32 %v1149, 7
    %v1151 = vsub.s32 3, %v1150
    %v1152 = vrot.slane %v1135, %v1151
    %v1153 = vlaneseq
    %v1154 = vshrl.u32 %v1153, 7
    %v1155 = vsub.s32 4, %v1154
    %v1156 = vrot.slane %v1135, %v1155
    %v1157 = vlaneseq
    %v1158 = vshrl.u32 %v1157, 7
    %v1159 = vsub.s32 5, %v1158
    %v1160 = vrot.slane %v1135, %v1159
    %v1161 = vlaneseq
    %v1162 = vshrl.u32 %v1161, 7
    %v1163 = vsub.s32 6, %v1162
    %v1164 = vrot.slane %v1135, %v1163
    %v1165 = vlaneseq
    %v1166 = vshrl.u32 %v1165, 7
    %v1167 = vsub.s32 7, %v1166
    %v1168 = vrot.slane %v1135, %v1167
    %v1689 = vunpack.c.l.b16 %v623
    %v1690 = vunpack.c.h.b16 %v623
    %v1691 = vunpack.c.l.b16 %v624
    %v1692 = vunpack.c.h.b16 %v624
    %v1693 = vunpack.c.l.b16 %v625
    %v1694 = vunpack.c.h.b16 %v625
    %v1695 = vunpack.c.l.b16 %v626
    %v1696 = vunpack.c.h.b16 %v626
    %v1697 = vunpack.c.l.b16 %v627
    %v1698 = vunpack.c.h.b16 %v627
    %v1699 = vunpack.c.l.b16 %v628
    %v1700 = vunpack.c.h.b16 %v628
    %v1701 = vunpack.c.l.b16 %v629
    %v1702 = vunpack.c.h.b16 %v629
    %v1703 = vunpack.c.l.b16 %v630
    %v1704 = vunpack.c.h.b16 %v630
    %v1705 = vunpack.c.l.b16 %v631
    %v1706 = vunpack.c.h.b16 %v631
    %v1707 = vunpack.c.l.b16 %v632
    %v1708 = vunpack.c.h.b16 %v632
    %v1709 = vunpack.c.l.b16 %v633
    %v1710 = vunpack.c.h.b16 %v633
    %v1711 = vunpack.c.l.b16 %v634
    %v1712 = vunpack.c.h.b16 %v634
    %v1713 = vunpack.c.l.b16 %v635
    %v1714 = vunpack.c.h.b16 %v635
    %v1715 = vunpack.c.l.b16 %v636
    %v1716 = vunpack.c.h.b16 %v636
    %v1717 = vunpack.c.l.b16 %v637
    %v1718 = vunpack.c.h.b16 %v637
    %v1719 = vunpack.c.l.b16 %v638
    %v1720 = vunpack.c.h.b16 %v638
    %v1721 = vunpack.c.l.b16 %v639
    %v1722 = vunpack.c.h.b16 %v639
    %v1723 = vunpack.c.l.b16 %v640
    %v1724 = vunpack.c.h.b16 %v640
    %v1725 = vunpack.c.l.b16 %v641
    %v1726 = vunpack.c.h.b16 %v641
    %v1727 = vunpack.c.l.b16 %v642
    %v1728 = vunpack.c.h.b16 %v642
    %v1729 = vunpack.c.l.b16 %v643
    %v1730 = vunpack.c.h.b16 %v643
    %v1731 = vunpack.c.l.b16 %v644
    %v1732 = vunpack.c.h.b16 %v644
    %v1733 = vunpack.c.l.b16 %v645
    %v1734 = vunpack.c.h.b16 %v645
    %v1735 = vunpack.c.l.b16 %v646
    %v1736 = vunpack.c.h.b16 %v646
    %v1737 = vunpack.c.l.b16 %v647
    %v1738 = vunpack.c.h.b16 %v647
    %v1739 = vunpack.c.l.b16 %v648
    %v1740 = vunpack.c.h.b16 %v648
    %v1741 = vunpack.c.l.b16 %v649
    %v1742 = vunpack.c.h.b16 %v649
    %v1743 = vunpack.c.l.b16 %v650
    %v1744 = vunpack.c.h.b16 %v650
    %v1745 = vunpack.c.l.b16 %v651
    %v1746 = vunpack.c.h.b16 %v651
    %v1747 = vunpack.c.l.b16 %v652
    %v1748 = vunpack.c.h.b16 %v652
    %v1749 = vunpack.c.l.b16 %v653
    %v1750 = vunpack.c.h.b16 %v653
    %v1751 = vunpack.c.l.b16 %v654
    %v1752 = vunpack.c.h.b16 %v654
    %v1753 = vunpack.c.l.b16 %v655
    %v1754 = vunpack.c.h.b16 %v655
    %v1755 = vunpack.c.l.b16 %v656
    %v1756 = vunpack.c.h.b16 %v656
    %v1757 = vunpack.c.l.b16 %v657
    %v1758 = vunpack.c.h.b16 %v657
    %v1759 = vunpack.c.l.b16 %v658
    %v1760 = vunpack.c.h.b16 %v658
    %v1761 = vunpack.c.l.b16 %v659
    %v1762 = vunpack.c.h.b16 %v659
    %v1763 = vunpack.c.l.b16 %v660
    %v1764 = vunpack.c.h.b16 %v660
    %v1765 = vunpack.c.l.b16 %v661
    %v1766 = vunpack.c.h.b16 %v661
    %v1767 = vunpack.c.l.b16 %v662
    %v1768 = vunpack.c.h.b16 %v662
    %v1769 = vunpack.c.l.b16 %v663
    %v1770 = vunpack.c.h.b16 %v663
    %v1771 = vunpack.c.l.b16 %v664
    %v1772 = vunpack.c.h.b16 %v664
    %v1773 = vunpack.c.l.b16 %v665
    %v1774 = vunpack.c.h.b16 %v665
    %v1775 = vunpack.c.l.b16 %v666
    %v1776 = vunpack.c.h.b16 %v666
    %v1777 = vunpack.c.l.b16 %v667
    %v1778 = vunpack.c.h.b16 %v667
    %v1779 = vunpack.c.l.b16 %v668
    %v1780 = vunpack.c.h.b16 %v668
    %v1781 = vunpack.c.l.b16 %v669
    %v1782 = vunpack.c.h.b16 %v669
    %v1783 = vunpack.c.l.b16 %v670
    %v1784 = vunpack.c.h.b16 %v670
    %v1785 = vunpack.c.l.b16 %v671
    %v1786 = vunpack.c.h.b16 %v671
    %v1787 = vunpack.c.l.b16 %v672
    %v1788 = vunpack.c.h.b16 %v672
    %v1789 = vunpack.c.l.b16 %v673
    %v1790 = vunpack.c.h.b16 %v673
    %v1791 = vunpack.c.l.b16 %v674
    %v1792 = vunpack.c.h.b16 %v674
    %v1793 = vunpack.c.l.b16 %v675
    %v1794 = vunpack.c.h.b16 %v675
    %v1795 = vunpack.c.l.b16 %v676
    %v1796 = vunpack.c.h.b16 %v676
    %v1797 = vunpack.c.l.b16 %v677
    %v1798 = vunpack.c.h.b16 %v677
    %v1799 = vunpack.c.l.b16 %v678
    %v1800 = vunpack.c.h.b16 %v678
    %v1801 = vunpack.c.l.b16 %v679
    %v1802 = vunpack.c.h.b16 %v679
    %v1803 = vunpack.c.l.b16 %v680
    %v1804 = vunpack.c.h.b16 %v680
    %v1805 = vunpack.c.l.b16 %v681
    %v1806 = vunpack.c.h.b16 %v681
    %v1807 = vunpack.c.l.b16 %v682
    %v1808 = vunpack.c.h.b16 %v682
    %v1809 = vunpack.c.l.b16 %v683
    %v1810 = vunpack.c.h.b16 %v683
    %v1811 = vunpack.c.l.b16 %v684
    %v1812 = vunpack.c.h.b16 %v684
    %v1813 = vunpack.c.l.b16 %v685
    %v1814 = vunpack.c.h.b16 %v685
    %v1815 = vunpack.c.l.b16 %v686
    %v1816 = vunpack.c.h.b16 %v686
    %v1817 = vunpack.c.l.b16 %v687
    %v1818 = vunpack.c.h.b16 %v687
    %v1819 = vunpack.c.l.b16 %v688
    %v1820 = vunpack.c.h.b16 %v688
    %v1821 = vunpack.c.l.b16 %v689
    %v1822 = vunpack.c.h.b16 %v689
    %v1823 = vunpack.c.l.b16 %v690
    %v1824 = vunpack.c.h.b16 %v690
    %v1825 = vunpack.c.l.b16 %v691
    %v1826 = vunpack.c.h.b16 %v691
    %v1827 = vunpack.c.l.b16 %v692
    %v1828 = vunpack.c.h.b16 %v692
    %v1829 = vunpack.c.l.b16 %v693
    %v1830 = vunpack.c.h.b16 %v693
    %v1831 = vunpack.c.l.b16 %v694
    %v1832 = vunpack.c.h.b16 %v694
    %v1833 = vunpack.c.l.b16 %v695
    %v1834 = vunpack.c.h.b16 %v695
    %v1835 = vunpack.c.l.b16 %v696
    %v1836 = vunpack.c.h.b16 %v696
    %v1837 = vunpack.c.l.b16 %v697
    %v1838 = vunpack.c.h.b16 %v697
    %v1839 = vunpack.c.l.b16 %v698
    %v1840 = vunpack.c.h.b16 %v698
    %v1841 = vunpack.c.l.b16 %v699
    %v1842 = vunpack.c.h.b16 %v699
    %v1843 = vunpack.c.l.b16 %v700
    %v1844 = vunpack.c.h.b16 %v700
    %v1845 = vunpack.c.l.b16 %v701
    %v1846 = vunpack.c.h.b16 %v701
    %v1847 = vunpack.c.l.b16 %v702
    %v1848 = vunpack.c.h.b16 %v702
    %v1849 = vunpack.c.l.b16 %v703
    %v1850 = vunpack.c.h.b16 %v703
    %v1851 = vunpack.c.l.b16 %v704
    %v1852 = vunpack.c.h.b16 %v704
    %v1853 = vunpack.c.l.b16 %v705
    %v1854 = vunpack.c.h.b16 %v705
    %v1855 = vunpack.c.l.b16 %v706
    %v1856 = vunpack.c.h.b16 %v706
    %v1857 = vunpack.c.l.b16 %v707
    %v1858 = vunpack.c.h.b16 %v707
    %v1859 = vunpack.c.l.b16 %v708
    %v1860 = vunpack.c.h.b16 %v708
    %v1861 = vunpack.c.l.b16 %v709
    %v1862 = vunpack.c.h.b16 %v709
    %v1863 = vunpack.c.l.b16 %v710
    %v1864 = vunpack.c.h.b16 %v710
    %v1865 = vunpack.c.l.b16 %v711
    %v1866 = vunpack.c.h.b16 %v711
    %v1867 = vunpack.c.l.b16 %v712
    %v1868 = vunpack.c.h.b16 %v712
    %v1869 = vunpack.c.l.b16 %v713
    %v1870 = vunpack.c.h.b16 %v713
    %v1871 = vunpack.c.l.b16 %v714
    %v1872 = vunpack.c.h.b16 %v714
    %v1873 = vunpack.c.l.b16 %v715
    %v1874 = vunpack.c.h.b16 %v715
    %v1875 = vunpack.c.l.b16 %v716
    %v1876 = vunpack.c.h.b16 %v716
    %v1877 = vunpack.c.l.b16 %v717
    %v1878 = vunpack.c.h.b16 %v717
    %v1879 = vunpack.c.l.b16 %v718
    %v1880 = vunpack.c.h.b16 %v718
    %v1881 = vunpack.c.l.b16 %v719
    %v1882 = vunpack.c.h.b16 %v719
    %v1883 = vunpack.c.l.b16 %v720
    %v1884 = vunpack.c.h.b16 %v720
    %v1885 = vunpack.c.l.b16 %v721
    %v1886 = vunpack.c.h.b16 %v721
    %v1887 = vunpack.c.l.b16 %v722
    %v1888 = vunpack.c.h.b16 %v722
    %v1889 = vunpack.c.l.b16 %v723
    %v1890 = vunpack.c.h.b16 %v723
    %v1891 = vunpack.c.l.b16 %v724
    %v1892 = vunpack.c.h.b16 %v724
    %v1893 = vunpack.c.l.b16 %v725
    %v1894 = vunpack.c.h.b16 %v725
    %v1895 = vunpack.c.l.b16 %v726
    %v1896 = vunpack.c.h.b16 %v726
    %v1897 = vunpack.c.l.b16 %v727
    %v1898 = vunpack.c.h.b16 %v727
    %v1899 = vunpack.c.l.b16 %v728
    %v1900 = vunpack.c.h.b16 %v728
    %v1901 = vunpack.c.l.b16 %v729
    %v1902 = vunpack.c.h.b16 %v729
    %v1903 = vunpack.c.l.b16 %v730
    %v1904 = vunpack.c.h.b16 %v730
    %v1905 = vunpack.c.l.b16 %v731
    %v1906 = vunpack.c.h.b16 %v731
    %v1907 = vunpack.c.l.b16 %v732
    %v1908 = vunpack.c.h.b16 %v732
    %v1909 = vunpack.c.l.b16 %v733
    %v1910 = vunpack.c.h.b16 %v733
    %v1911 = vunpack.c.l.b16 %v734
    %v1912 = vunpack.c.h.b16 %v734
    %v1913 = vunpack.c.l.b16 %v735
    %v1914 = vunpack.c.h.b16 %v735
    %v1915 = vunpack.c.l.b16 %v736
    %v1916 = vunpack.c.h.b16 %v736
    %v1917 = vunpack.c.l.b16 %v737
    %v1918 = vunpack.c.h.b16 %v737
    %v1919 = vunpack.c.l.b16 %v738
    %v1920 = vunpack.c.h.b16 %v738
    %v1921 = vunpack.c.l.b16 %v739
    %v1922 = vunpack.c.h.b16 %v739
    %v1923 = vunpack.c.l.b16 %v740
    %v1924 = vunpack.c.h.b16 %v740
    %v1925 = vunpack.c.l.b16 %v741
    %v1926 = vunpack.c.h.b16 %v741
    %v1927 = vunpack.c.l.b16 %v742
    %v1928 = vunpack.c.h.b16 %v742
    %v1929 = vunpack.c.l.b16 %v743
    %v1930 = vunpack.c.h.b16 %v743
    %v1931 = vunpack.c.l.b16 %v744
    %v1932 = vunpack.c.h.b16 %v744
    %v1933 = vunpack.c.l.b16 %v745
    %v1934 = vunpack.c.h.b16 %v745
    %v1935 = vunpack.c.l.b16 %v746
    %v1936 = vunpack.c.h.b16 %v746
    %v1937 = vunpack.c.l.b16 %v747
    %v1938 = vunpack.c.h.b16 %v747
    %v1939 = vunpack.c.l.b16 %v748
    %v1940 = vunpack.c.h.b16 %v748
    %v1941 = vunpack.c.l.b16 %v749
    %v1942 = vunpack.c.h.b16 %v749
    %v1943 = vunpack.c.l.b16 %v750
    %v1944 = vunpack.c.h.b16 %v750
    %v1945 = vunpack.c.l.b16 %v751
    %v1946 = vunpack.c.h.b16 %v751
    %v1947 = vunpack.c.l.b16 %v752
    %v1948 = vunpack.c.h.b16 %v752
    %v1949 = vunpack.c.l.b16 %v753
    %v1950 = vunpack.c.h.b16 %v753
    %v1951 = vunpack.c.l.b16 %v754
    %v1952 = vunpack.c.h.b16 %v754
    %v1953 = vunpack.c.l.b16 %v755
    %v1954 = vunpack.c.h.b16 %v755
    %v1955 = vunpack.c.l.b16 %v756
    %v1956 = vunpack.c.h.b16 %v756
    %v1957 = vunpack.c.l.b16 %v757
    %v1958 = vunpack.c.h.b16 %v757
    %v1959 = vunpack.c.l.b16 %v758
    %v1960 = vunpack.c.h.b16 %v758
    %v1961 = vunpack.c.l.b16 %v759
    %v1962 = vunpack.c.h.b16 %v759
    %v1963 = vunpack.c.l.b16 %v760
    %v1964 = vunpack.c.h.b16 %v760
    %v1965 = vunpack.c.l.b16 %v761
    %v1966 = vunpack.c.h.b16 %v761
    %v1967 = vunpack.c.l.b16 %v762
    %v1968 = vunpack.c.h.b16 %v762
    %v1969 = vunpack.c.l.b16 %v763
    %v1970 = vunpack.c.h.b16 %v763
    %v1971 = vunpack.c.l.b16 %v764
    %v1972 = vunpack.c.h.b16 %v764
    %v1973 = vunpack.c.l.b16 %v765
    %v1974 = vunpack.c.h.b16 %v765
    %v1975 = vunpack.c.l.b16 %v766
    %v1976 = vunpack.c.h.b16 %v766
    %v1977 = vunpack.c.l.b16 %v767
    %v1978 = vunpack.c.h.b16 %v767
    %v1979 = vunpack.c.l.b16 %v768
    %v1980 = vunpack.c.h.b16 %v768
    %v1981 = vunpack.c.l.b16 %v769
    %v1982 = vunpack.c.h.b16 %v769
    %v1983 = vunpack.c.l.b16 %v770
    %v1984 = vunpack.c.h.b16 %v770
    %v1985 = vunpack.c.l.b16 %v771
    %v1986 = vunpack.c.h.b16 %v771
    %v1987 = vunpack.c.l.b16 %v772
    %v1988 = vunpack.c.h.b16 %v772
    %v1989 = vunpack.c.l.b16 %v773
    %v1990 = vunpack.c.h.b16 %v773
    %v1991 = vunpack.c.l.b16 %v774
    %v1992 = vunpack.c.h.b16 %v774
    %v1993 = vunpack.c.l.b16 %v775
    %v1994 = vunpack.c.h.b16 %v775
    %v1995 = vunpack.c.l.b16 %v776
    %v1996 = vunpack.c.h.b16 %v776
    %v1997 = vunpack.c.l.b16 %v777
    %v1998 = vunpack.c.h.b16 %v777
    %v1999 = vunpack.c.l.b16 %v778
    %v2000 = vunpack.c.h.b16 %v778
    %v2001 = vunpack.c.l.b16 %v779
    %v2002 = vunpack.c.h.b16 %v779
    %v2003 = vunpack.c.l.b16 %v780
    %v2004 = vunpack.c.h.b16 %v780
    %v2005 = vunpack.c.l.b16 %v781
    %v2006 = vunpack.c.h.b16 %v781
    %v2007 = vunpack.c.l.b16 %v782
    %v2008 = vunpack.c.h.b16 %v782
    %v2009 = vunpack.c.l.b16 %v783
    %v2010 = vunpack.c.h.b16 %v783
    %v2011 = vunpack.c.l.b16 %v784
    %v2012 = vunpack.c.h.b16 %v784
    %v2013 = vunpack.c.l.b16 %v785
    %v2014 = vunpack.c.h.b16 %v785
    %v2015 = vunpack.c.l.b16 %v786
    %v2016 = vunpack.c.h.b16 %v786
    %v2017 = vunpack.c.l.b16 %v787
    %v2018 = vunpack.c.h.b16 %v787
    %v2019 = vunpack.c.l.b16 %v788
    %v2020 = vunpack.c.h.b16 %v788
    %v2021 = vunpack.c.l.b16 %v789
    %v2022 = vunpack.c.h.b16 %v789
    %v2023 = vunpack.c.l.b16 %v790
    %v2024 = vunpack.c.h.b16 %v790
    %v2025 = vunpack.c.l.b16 %v791
    %v2026 = vunpack.c.h.b16 %v791
    %v2027 = vunpack.c.l.b16 %v792
    %v2028 = vunpack.c.h.b16 %v792
    %v2029 = vunpack.c.l.b16 %v793
    %v2030 = vunpack.c.h.b16 %v793
    %v2031 = vunpack.c.l.b16 %v794
    %v2032 = vunpack.c.h.b16 %v794
    %v2033 = vunpack.c.l.b16 %v795
    %v2034 = vunpack.c.h.b16 %v795
    %v2035 = vunpack.c.l.b16 %v796
    %v2036 = vunpack.c.h.b16 %v796
    %v2037 = vunpack.c.l.b16 %v797
    %v2038 = vunpack.c.h.b16 %v797
    %v2039 = vunpack.c.l.b16 %v798
    %v2040 = vunpack.c.h.b16 %v798
    %v2041 = vunpack.c.l.b16 %v799
    %v2042 = vunpack.c.h.b16 %v799
    %v2043 = vunpack.c.l.b16 %v800
    %v2044 = vunpack.c.h.b16 %v800
    %v2045 = vunpack.c.l.b16 %v801
    %v2046 = vunpack.c.h.b16 %v801
    %v2047 = vunpack.c.l.b16 %v802
    %v2048 = vunpack.c.h.b16 %v802
    %v2049 = vunpack.c.l.b16 %v803
    %v2050 = vunpack.c.h.b16 %v803
    %v2051 = vunpack.c.l.b16 %v804
    %v2052 = vunpack.c.h.b16 %v804
    %v2053 = vunpack.c.l.b16 %v805
    %v2054 = vunpack.c.h.b16 %v805
    %v2055 = vunpack.c.l.b16 %v806
    %v2056 = vunpack.c.h.b16 %v806
    %v2057 = vunpack.c.l.b16 %v807
    %v2058 = vunpack.c.h.b16 %v807
    %v2059 = vunpack.c.l.b16 %v808
    %v2060 = vunpack.c.h.b16 %v808
    %v2061 = vunpack.c.l.b16 %v809
    %v2062 = vunpack.c.h.b16 %v809
    %v2063 = vunpack.c.l.b16 %v810
    %v2064 = vunpack.c.h.b16 %v810
    %v2065 = vunpack.c.l.b16 %v811
    %v2066 = vunpack.c.h.b16 %v811
    %v2067 = vunpack.c.l.b16 %v812
    %v2068 = vunpack.c.h.b16 %v812
    %v2069 = vunpack.c.l.b16 %v813
    %v2070 = vunpack.c.h.b16 %v813
    %v2071 = vunpack.c.l.b16 %v814
    %v2072 = vunpack.c.h.b16 %v814
    %v2073 = vunpack.c.l.b16 %v815
    %v2074 = vunpack.c.h.b16 %v815
    %v2075 = vunpack.c.l.b16 %v816
    %v2076 = vunpack.c.h.b16 %v816
    %v2077 = vunpack.c.l.b16 %v817
    %v2078 = vunpack.c.h.b16 %v817
    %v2079 = vunpack.c.l.b16 %v818
    %v2080 = vunpack.c.h.b16 %v818
    %v2081 = vunpack.c.l.b16 %v819
    %v2082 = vunpack.c.h.b16 %v819
    %v2083 = vunpack.c.l.b16 %v820
    %v2084 = vunpack.c.h.b16 %v820
    %v2085 = vunpack.c.l.b16 %v821
    %v2086 = vunpack.c.h.b16 %v821
    %v2087 = vunpack.c.l.b16 %v822
    %v2088 = vunpack.c.h.b16 %v822
    %v2089 = vunpack.c.l.b16 %v823
    %v2090 = vunpack.c.h.b16 %v823
    %v2091 = vunpack.c.l.b16 %v824
    %v2092 = vunpack.c.h.b16 %v824
    %v2093 = vunpack.c.l.b16 %v825
    %v2094 = vunpack.c.h.b16 %v825
    %v2095 = vunpack.c.l.b16 %v826
    %v2096 = vunpack.c.h.b16 %v826
    %v2097 = vunpack.c.l.b16 %v827
    %v2098 = vunpack.c.h.b16 %v827
    %v2099 = vunpack.c.l.b16 %v828
    %v2100 = vunpack.c.h.b16 %v828
    %v2101 = vunpack.c.l.b16 %v829
    %v2102 = vunpack.c.h.b16 %v829
    %v2103 = vunpack.c.l.b16 %v830
    %v2104 = vunpack.c.h.b16 %v830
    %v2105 = vunpack.c.l.b16 %v831
    %v2106 = vunpack.c.h.b16 %v831
    %v2107 = vunpack.c.l.b16 %v832
    %v2108 = vunpack.c.h.b16 %v832
    %v2109 = vunpack.c.l.b16 %v833
    %v2110 = vunpack.c.h.b16 %v833
    %v2111 = vunpack.c.l.b16 %v834
    %v2112 = vunpack.c.h.b16 %v834
    %v2113 = vunpack.c.l.b16 %v835
    %v2114 = vunpack.c.h.b16 %v835
    %v2115 = vunpack.c.l.b16 %v836
    %v2116 = vunpack.c.h.b16 %v836
    %v2117 = vunpack.c.l.b16 %v837
    %v2118 = vunpack.c.h.b16 %v837
    %v2119 = vunpack.c.l.b16 %v838
    %v2120 = vunpack.c.h.b16 %v838
    %v2121 = vunpack.c.l.b16 %v839
    %v2122 = vunpack.c.h.b16 %v839
    %v2123 = vunpack.c.l.b16 %v840
    %v2124 = vunpack.c.h.b16 %v840
    %v2125 = vunpack.c.l.b16 %v841
    %v2126 = vunpack.c.h.b16 %v841
    %v2127 = vunpack.c.l.b16 %v842
    %v2128 = vunpack.c.h.b16 %v842
    %v2129 = vunpack.c.l.b16 %v843
    %v2130 = vunpack.c.h.b16 %v843
    %v2131 = vunpack.c.l.b16 %v844
    %v2132 = vunpack.c.h.b16 %v844
    %v2133 = vunpack.c.l.b16 %v845
    %v2134 = vunpack.c.h.b16 %v845
    %v2135 = vunpack.c.l.b16 %v846
    %v2136 = vunpack.c.h.b16 %v846
    %v2137 = vunpack.c.l.b16 %v847
    %v2138 = vunpack.c.h.b16 %v847
    %v2139 = vunpack.c.l.b16 %v848
    %v2140 = vunpack.c.h.b16 %v848
    %v2141 = vunpack.c.l.b16 %v849
    %v2142 = vunpack.c.h.b16 %v849
    %v2143 = vunpack.c.l.b16 %v850
    %v2144 = vunpack.c.h.b16 %v850
    %v2145 = vunpack.c.l.b16 %v851
    %v2146 = vunpack.c.h.b16 %v851
    %v2147 = vunpack.c.l.b16 %v852
    %v2148 = vunpack.c.h.b16 %v852
    %v2149 = vunpack.c.l.b16 %v853
    %v2150 = vunpack.c.h.b16 %v853
    %v2151 = vunpack.c.l.b16 %v854
    %v2152 = vunpack.c.h.b16 %v854
    %v2153 = vunpack.c.l.b16 %v855
    %v2154 = vunpack.c.h.b16 %v855
    %v2155 = vunpack.c.l.b16 %v856
    %v2156 = vunpack.c.h.b16 %v856
    %v2157 = vunpack.c.l.b16 %v857
    %v2158 = vunpack.c.h.b16 %v857
    %v2159 = vunpack.c.l.b16 %v858
    %v2160 = vunpack.c.h.b16 %v858
    %v2161 = vunpack.c.l.b16 %v859
    %v2162 = vunpack.c.h.b16 %v859
    %v2163 = vunpack.c.l.b16 %v860
    %v2164 = vunpack.c.h.b16 %v860
    %v2165 = vunpack.c.l.b16 %v861
    %v2166 = vunpack.c.h.b16 %v861
    %v2167 = vunpack.c.l.b16 %v862
    %v2168 = vunpack.c.h.b16 %v862
    %v2169 = vunpack.c.l.b16 %v863
    %v2170 = vunpack.c.h.b16 %v863
    %v2171 = vunpack.c.l.b16 %v864
    %v2172 = vunpack.c.h.b16 %v864
    %v2173 = vunpack.c.l.b16 %v865
    %v2174 = vunpack.c.h.b16 %v865
    %v2175 = vunpack.c.l.b16 %v866
    %v2176 = vunpack.c.h.b16 %v866
    %v2177 = vunpack.c.l.b16 %v867
    %v2178 = vunpack.c.h.b16 %v867
    %v2179 = vunpack.c.l.b16 %v868
    %v2180 = vunpack.c.h.b16 %v868
    %v2181 = vunpack.c.l.b16 %v869
    %v2182 = vunpack.c.h.b16 %v869
    %v2183 = vunpack.c.l.b16 %v870
    %v2184 = vunpack.c.h.b16 %v870
    %v2185 = vunpack.c.l.b16 %v871
    %v2186 = vunpack.c.h.b16 %v871
    %v2187 = vunpack.c.l.b16 %v872
    %v2188 = vunpack.c.h.b16 %v872
    %v2189 = vunpack.c.l.b16 %v873
    %v2190 = vunpack.c.h.b16 %v873
    %v2191 = vunpack.c.l.b16 %v874
    %v2192 = vunpack.c.h.b16 %v874
    %v2193 = vunpack.c.l.b16 %v875
    %v2194 = vunpack.c.h.b16 %v875
    %v2195 = vunpack.c.l.b16 %v876
    %v2196 = vunpack.c.h.b16 %v876
    %v2197 = vunpack.c.l.b16 %v877
    %v2198 = vunpack.c.h.b16 %v877
    %v2199 = vunpack.c.l.b16 %v878
    %v2200 = vunpack.c.h.b16 %v878
    %v2201 = vunpack.c.l.b16 %v879
    %v2202 = vunpack.c.h.b16 %v879
    %v2203 = vunpack.c.l.b16 %v880
    %v2204 = vunpack.c.h.b16 %v880
    %v2205 = vunpack.c.l.b16 %v881
    %v2206 = vunpack.c.h.b16 %v881
    %v2207 = vunpack.c.l.b16 %v882
    %v2208 = vunpack.c.h.b16 %v882
    %v2209 = vunpack.c.l.b16 %v883
    %v2210 = vunpack.c.h.b16 %v883
    %v2211 = vunpack.c.l.b16 %v884
    %v2212 = vunpack.c.h.b16 %v884
    %v2213 = vunpack.c.l.b16 %v885
    %v2214 = vunpack.c.h.b16 %v885
    %v2215 = vunpack.c.l.b16 %v886
    %v2216 = vunpack.c.h.b16 %v886
    %v2217 = vunpack.c.l.b16 %v887
    %v2218 = vunpack.c.h.b16 %v887
    %v2219 = vunpack.c.l.b16 %v888
    %v2220 = vunpack.c.h.b16 %v888
    %v2221 = vunpack.c.l.b16 %v889
    %v2222 = vunpack.c.h.b16 %v889
    %v2223 = vunpack.c.l.b16 %v890
    %v2224 = vunpack.c.h.b16 %v890
    %v2225 = vunpack.c.l.b16 %v891
    %v2226 = vunpack.c.h.b16 %v891
    %v2227 = vunpack.c.l.b16 %v892
    %v2228 = vunpack.c.h.b16 %v892
    %v2229 = vunpack.c.l.b16 %v893
    %v2230 = vunpack.c.h.b16 %v893
    %v2231 = vunpack.c.l.b16 %v894
    %v2232 = vunpack.c.h.b16 %v894
    %v2233 = vunpack.c.l.b16 %v895
    %v2234 = vunpack.c.h.b16 %v895
    %v2235 = vunpack.c.l.b16 %v896
    %v2236 = vunpack.c.h.b16 %v896
    %v2237 = vunpack.c.l.b16 %v897
    %v2238 = vunpack.c.h.b16 %v897
    %v2239 = vunpack.c.l.b16 %v898
    %v2240 = vunpack.c.h.b16 %v898
    %v2241 = vunpack.c.l.b16 %v899
    %v2242 = vunpack.c.h.b16 %v899
    %v2243 = vunpack.c.l.b16 %v900
    %v2244 = vunpack.c.h.b16 %v900
    %v2245 = vunpack.c.l.b16 %v901
    %v2246 = vunpack.c.h.b16 %v901
    %v2247 = vunpack.c.l.b16 %v902
    %v2248 = vunpack.c.h.b16 %v902
    %v2249 = vunpack.c.l.b16 %v903
    %v2250 = vunpack.c.h.b16 %v903
    %v2251 = vunpack.c.l.b16 %v904
    %v2252 = vunpack.c.h.b16 %v904
    %v2253 = vunpack.c.l.b16 %v905
    %v2254 = vunpack.c.h.b16 %v905
    %v2255 = vunpack.c.l.b16 %v906
    %v2256 = vunpack.c.h.b16 %v906
    %v2257 = vunpack.c.l.b16 %v907
    %v2258 = vunpack.c.h.b16 %v907
    %v2259 = vunpack.c.l.b16 %v908
    %v2260 = vunpack.c.h.b16 %v908
    %v2261 = vunpack.c.l.b16 %v909
    %v2262 = vunpack.c.h.b16 %v909
    %v2263 = vunpack.c.l.b16 %v910
    %v2264 = vunpack.c.h.b16 %v910
    %v2265 = vunpack.c.l.b16 %v911
    %v2266 = vunpack.c.h.b16 %v911
    %v2267 = vunpack.c.l.b16 %v912
    %v2268 = vunpack.c.h.b16 %v912
    %v2269 = vunpack.c.l.b16 %v913
    %v2270 = vunpack.c.h.b16 %v913
    %v2271 = vunpack.c.l.b16 %v914
    %v2272 = vunpack.c.h.b16 %v914
    %v2273 = vunpack.c.l.b16 %v915
    %v2274 = vunpack.c.h.b16 %v915
    %v2275 = vunpack.c.l.b16 %v916
    %v2276 = vunpack.c.h.b16 %v916
    %v2277 = vunpack.c.l.b16 %v917
    %v2278 = vunpack.c.h.b16 %v917
    %v2279 = vunpack.c.l.b16 %v918
    %v2280 = vunpack.c.h.b16 %v918
    %v2281 = vunpack.c.l.b16 %v919
    %v2282 = vunpack.c.h.b16 %v919
    %v2283 = vunpack.c.l.b16 %v920
    %v2284 = vunpack.c.h.b16 %v920
    %v2285 = vunpack.c.l.b16 %v921
    %v2286 = vunpack.c.h.b16 %v921
    %v2287 = vunpack.c.l.b16 %v922
    %v2288 = vunpack.c.h.b16 %v922
    %v2289 = vunpack.c.l.b16 %v923
    %v2290 = vunpack.c.h.b16 %v923
    %v2291 = vunpack.c.l.b16 %v924
    %v2292 = vunpack.c.h.b16 %v924
    %v2293 = vunpack.c.l.b16 %v925
    %v2294 = vunpack.c.h.b16 %v925
    %v2295 = vunpack.c.l.b16 %v926
    %v2296 = vunpack.c.h.b16 %v926
    %v2297 = vunpack.c.l.b16 %v927
    %v2298 = vunpack.c.h.b16 %v927
    %v2299 = vunpack.c.l.b16 %v928
    %v2300 = vunpack.c.h.b16 %v928
    %v2301 = vunpack.c.l.b16 %v929
    %v2302 = vunpack.c.h.b16 %v929
    %v2303 = vunpack.c.l.b16 %v930
    %v2304 = vunpack.c.h.b16 %v930
    %v2305 = vunpack.c.l.b16 %v931
    %v2306 = vunpack.c.h.b16 %v931
    %v2307 = vunpack.c.l.b16 %v932
    %v2308 = vunpack.c.h.b16 %v932
    %v2309 = vunpack.c.l.b16 %v933
    %v2310 = vunpack.c.h.b16 %v933
    %v2311 = vunpack.c.l.b16 %v934
    %v2312 = vunpack.c.h.b16 %v934
    %v2313 = vunpack.c.l.b16 %v935
    %v2314 = vunpack.c.h.b16 %v935
    %v2315 = vunpack.c.l.b16 %v936
    %v2316 = vunpack.c.h.b16 %v936
    %v2317 = vunpack.c.l.b16 %v937
    %v2318 = vunpack.c.h.b16 %v937
    %v2319 = vunpack.c.l.b16 %v938
    %v2320 = vunpack.c.h.b16 %v938
    %v2321 = vunpack.c.l.b16 %v939
    %v2322 = vunpack.c.h.b16 %v939
    %v2323 = vunpack.c.l.b16 %v940
    %v2324 = vunpack.c.h.b16 %v940
    %v2325 = vunpack.c.l.b16 %v941
    %v2326 = vunpack.c.h.b16 %v941
    %v2327 = vunpack.c.l.b16 %v942
    %v2328 = vunpack.c.h.b16 %v942
    %v2329 = vunpack.c.l.b16 %v943
    %v2330 = vunpack.c.h.b16 %v943
    %v2331 = vunpack.c.l.b16 %v944
    %v2332 = vunpack.c.h.b16 %v944
    %v2333 = vunpack.c.l.b16 %v945
    %v2334 = vunpack.c.h.b16 %v945
    %v2335 = vunpack.c.l.b16 %v946
    %v2336 = vunpack.c.h.b16 %v946
    %v2337 = vunpack.c.l.b16 %v947
    %v2338 = vunpack.c.h.b16 %v947
    %v2339 = vunpack.c.l.b16 %v948
    %v2340 = vunpack.c.h.b16 %v948
    %v2341 = vunpack.c.l.b16 %v949
    %v2342 = vunpack.c.h.b16 %v949
    %v2343 = vunpack.c.l.b16 %v950
    %v2344 = vunpack.c.h.b16 %v950
    %v2345 = vunpack.c.l.b16 %v951
    %v2346 = vunpack.c.h.b16 %v951
    %v2347 = vunpack.c.l.b16 %v952
    %v2348 = vunpack.c.h.b16 %v952
    %v2349 = vunpack.c.l.b16 %v953
    %v2350 = vunpack.c.h.b16 %v953
    %v2351 = vunpack.c.l.b16 %v954
    %v2352 = vunpack.c.h.b16 %v954
    %v2353 = vunpack.c.l.b16 %v955
    %v2354 = vunpack.c.h.b16 %v955
    %v2355 = vunpack.c.l.b16 %v956
    %v2356 = vunpack.c.h.b16 %v956
    %v2357 = vunpack.c.l.b16 %v957
    %v2358 = vunpack.c.h.b16 %v957
    %v2359 = vunpack.c.l.b16 %v958
    %v2360 = vunpack.c.h.b16 %v958
    %v2361 = vunpack.c.l.b16 %v959
    %v2362 = vunpack.c.h.b16 %v959
    %v2363 = vunpack.c.l.b16 %v960
    %v2364 = vunpack.c.h.b16 %v960
    %v2365 = vunpack.c.l.b16 %v961
    %v2366 = vunpack.c.h.b16 %v961
    %v2367 = vunpack.c.l.b16 %v962
    %v2368 = vunpack.c.h.b16 %v962
    %v2369 = vunpack.c.l.b16 %v963
    %v2370 = vunpack.c.h.b16 %v963
    %v2371 = vunpack.c.l.b16 %v964
    %v2372 = vunpack.c.h.b16 %v964
    %v2373 = vunpack.c.l.b16 %v965
    %v2374 = vunpack.c.h.b16 %v965
    %v2375 = vunpack.c.l.b16 %v966
    %v2376 = vunpack.c.h.b16 %v966
    %v2377 = vunpack.c.l.b16 %v967
    %v2378 = vunpack.c.h.b16 %v967
    %v2379 = vunpack.c.l.b16 %v968
    %v2380 = vunpack.c.h.b16 %v968
    %v2381 = vunpack.c.l.b16 %v969
    %v2382 = vunpack.c.h.b16 %v969
    %v2383 = vunpack.c.l.b16 %v970
    %v2384 = vunpack.c.h.b16 %v970
    %v2385 = vunpack.c.l.b16 %v971
    %v2386 = vunpack.c.h.b16 %v971
    %v2387 = vunpack.c.l.b16 %v972
    %v2388 = vunpack.c.h.b16 %v972
    %v2389 = vunpack.c.l.b16 %v973
    %v2390 = vunpack.c.h.b16 %v973
    %v2391 = vunpack.c.l.b16 %v974
    %v2392 = vunpack.c.h.b16 %v974
    %v2393 = vunpack.c.l.b16 %v975
    %v2394 = vunpack.c.h.b16 %v975
    %v2395 = vunpack.c.l.b16 %v976
    %v2396 = vunpack.c.h.b16 %v976
    %v2397 = vunpack.c.l.b16 %v977
    %v2398 = vunpack.c.h.b16 %v977
    %v2399 = vunpack.c.l.b16 %v978
    %v2400 = vunpack.c.h.b16 %v978
    %v2401 = vunpack.c.l.b16 %v979
    %v2402 = vunpack.c.h.b16 %v979
    %v2403 = vunpack.c.l.b16 %v980
    %v2404 = vunpack.c.h.b16 %v980
    %v2405 = vunpack.c.l.b16 %v981
    %v2406 = vunpack.c.h.b16 %v981
    %v2407 = vunpack.c.l.b16 %v982
    %v2408 = vunpack.c.h.b16 %v982
    %v2409 = vunpack.c.l.b16 %v983
    %v2410 = vunpack.c.h.b16 %v983
    %v2411 = vunpack.c.l.b16 %v984
    %v2412 = vunpack.c.h.b16 %v984
    %v2413 = vunpack.c.l.b16 %v985
    %v2414 = vunpack.c.h.b16 %v985
    %v2415 = vunpack.c.l.b16 %v986
    %v2416 = vunpack.c.h.b16 %v986
    %v2417 = vunpack.c.l.b16 %v987
    %v2418 = vunpack.c.h.b16 %v987
    %v2419 = vunpack.c.l.b16 %v988
    %v2420 = vunpack.c.h.b16 %v988
    %v2421 = vunpack.c.l.b16 %v989
    %v2422 = vunpack.c.h.b16 %v989
    %v2423 = vunpack.c.l.b16 %v990
    %v2424 = vunpack.c.h.b16 %v990
    %v2425 = vunpack.c.l.b16 %v991
    %v2426 = vunpack.c.h.b16 %v991
    %v2427 = vunpack.c.l.b16 %v992
    %v2428 = vunpack.c.h.b16 %v992
    %v2429 = vunpack.c.l.b16 %v993
    %v2430 = vunpack.c.h.b16 %v993
    %v2431 = vunpack.c.l.b16 %v994
    %v2432 = vunpack.c.h.b16 %v994
    %v2433 = vunpack.c.l.b16 %v995
    %v2434 = vunpack.c.h.b16 %v995
    %v2435 = vunpack.c.l.b16 %v996
    %v2436 = vunpack.c.h.b16 %v996
    %v2437 = vunpack.c.l.b16 %v997
    %v2438 = vunpack.c.h.b16 %v997
    %v2439 = vunpack.c.l.b16 %v998
    %v2440 = vunpack.c.h.b16 %v998
    %v2441 = vunpack.c.l.b16 %v999
    %v2442 = vunpack.c.h.b16 %v999
    %v2443 = vunpack.c.l.b16 %v1000
    %v2444 = vunpack.c.h.b16 %v1000
    %v2445 = vunpack.c.l.b16 %v1001
    %v2446 = vunpack.c.h.b16 %v1001
    %v2447 = vunpack.c.l.b16 %v1002
    %v2448 = vunpack.c.h.b16 %v1002
    %v2449 = vunpack.c.l.b16 %v1003
    %v2450 = vunpack.c.h.b16 %v1003
    %v2451 = vunpack.c.l.b16 %v1004
    %v2452 = vunpack.c.h.b16 %v1004
    %v2453 = vunpack.c.l.b16 %v1005
    %v2454 = vunpack.c.h.b16 %v1005
    %v2455 = vunpack.c.l.b16 %v1006
    %v2456 = vunpack.c.h.b16 %v1006
    %v2457 = vunpack.c.l.b16 %v1007
    %v2458 = vunpack.c.h.b16 %v1007
    %v2459 = vunpack.c.l.b16 %v1008
    %v2460 = vunpack.c.h.b16 %v1008
    %v2461 = vunpack.c.l.b16 %v1009
    %v2462 = vunpack.c.h.b16 %v1009
    %v2463 = vunpack.c.l.b16 %v1010
    %v2464 = vunpack.c.h.b16 %v1010
    %v2465 = vunpack.c.l.b16 %v1011
    %v2466 = vunpack.c.h.b16 %v1011
    %v2467 = vunpack.c.l.b16 %v1012
    %v2468 = vunpack.c.h.b16 %v1012
    %v2469 = vunpack.c.l.b16 %v1013
    %v2470 = vunpack.c.h.b16 %v1013
    %v2471 = vunpack.c.l.b16 %v1014
    %v2472 = vunpack.c.h.b16 %v1014
    %v2473 = vunpack.c.l.b16 %v1015
    %v2474 = vunpack.c.h.b16 %v1015
    %v2475 = vunpack.c.l.b16 %v1016
    %v2476 = vunpack.c.h.b16 %v1016
    %v2477 = vunpack.c.l.b16 %v1017
    %v2478 = vunpack.c.h.b16 %v1017
    %v2479 = vunpack.c.l.b16 %v1018
    %v2480 = vunpack.c.h.b16 %v1018
    %v2481 = vunpack.c.l.b16 %v1019
    %v2482 = vunpack.c.h.b16 %v1019
    %v2483 = vunpack.c.l.b16 %v1020
    %v2484 = vunpack.c.h.b16 %v1020
    %v2485 = vunpack.c.l.b16 %v1021
    %v2486 = vunpack.c.h.b16 %v1021
    %v2487 = vunpack.c.l.b16 %v1022
    %v2488 = vunpack.c.h.b16 %v1022
    %v2489 = vunpack.c.l.b16 %v1023
    %v2490 = vunpack.c.h.b16 %v1023
    %v2491 = vunpack.c.l.b16 %v1024
    %v2492 = vunpack.c.h.b16 %v1024
    %v2493 = vunpack.c.l.b16 %v1025
    %v2494 = vunpack.c.h.b16 %v1025
    %v2495 = vunpack.c.l.b16 %v1026
    %v2496 = vunpack.c.h.b16 %v1026
    %v2497 = vunpack.c.l.b16 %v1027
    %v2498 = vunpack.c.h.b16 %v1027
    %v2499 = vunpack.c.l.b16 %v1028
    %v2500 = vunpack.c.h.b16 %v1028
    %v2501 = vunpack.c.l.b16 %v1029
    %v2502 = vunpack.c.h.b16 %v1029
    %v2503 = vunpack.c.l.b16 %v1030
    %v2504 = vunpack.c.h.b16 %v1030
    %v2505 = vunpack.c.l.b16 %v1031
    %v2506 = vunpack.c.h.b16 %v1031
    %v2507 = vunpack.c.l.b16 %v1032
    %v2508 = vunpack.c.h.b16 %v1032
    %v2509 = vunpack.c.l.b16 %v1033
    %v2510 = vunpack.c.h.b16 %v1033
    %v2511 = vunpack.c.l.b16 %v1034
    %v2512 = vunpack.c.h.b16 %v1034
    %v2513 = vunpack.c.l.b16 %v1035
    %v2514 = vunpack.c.h.b16 %v1035
    %v2515 = vunpack.c.l.b16 %v1036
    %v2516 = vunpack.c.h.b16 %v1036
    %v2517 = vunpack.c.l.b16 %v1037
    %v2518 = vunpack.c.h.b16 %v1037
    %v2519 = vunpack.c.l.b16 %v1038
    %v2520 = vunpack.c.h.b16 %v1038
    %v2521 = vunpack.c.l.b16 %v1039
    %v2522 = vunpack.c.h.b16 %v1039
    %v2523 = vunpack.c.l.b16 %v1040
    %v2524 = vunpack.c.h.b16 %v1040
    %v2525 = vunpack.c.l.b16 %v1041
    %v2526 = vunpack.c.h.b16 %v1041
    %v2527 = vunpack.c.l.b16 %v1042
    %v2528 = vunpack.c.h.b16 %v1042
    %v2529 = vunpack.c.l.b16 %v1043
    %v2530 = vunpack.c.h.b16 %v1043
    %v2531 = vunpack.c.l.b16 %v1044
    %v2532 = vunpack.c.h.b16 %v1044
    %v2533 = vunpack.c.l.b16 %v1045
    %v2534 = vunpack.c.h.b16 %v1045
    %v2535 = vunpack.c.l.b16 %v1046
    %v2536 = vunpack.c.h.b16 %v1046
    %v2537 = vunpack.c.l.b16 %v1047
    %v2538 = vunpack.c.h.b16 %v1047
    %v2539 = vunpack.c.l.b16 %v1048
    %v2540 = vunpack.c.h.b16 %v1048
    %v2541 = vunpack.c.l.b16 %v1049
    %v2542 = vunpack.c.h.b16 %v1049
    %v2543 = vunpack.c.l.b16 %v1050
    %v2544 = vunpack.c.h.b16 %v1050
    %v2545 = vunpack.c.l.b16 %v1051
    %v2546 = vunpack.c.h.b16 %v1051
    %v2547 = vunpack.c.l.b16 %v1052
    %v2548 = vunpack.c.h.b16 %v1052
    %v2549 = vunpack.c.l.b16 %v1053
    %v2550 = vunpack.c.h.b16 %v1053
    %v2551 = vunpack.c.l.b16 %v1054
    %v2552 = vunpack.c.h.b16 %v1054
    %v2553 = vunpack.c.l.b16 %v1055
    %v2554 = vunpack.c.h.b16 %v1055
    %v2555 = vunpack.c.l.b16 %v1056
    %v2556 = vunpack.c.h.b16 %v1056
    %v2557 = vunpack.c.l.b16 %v1057
    %v2558 = vunpack.c.h.b16 %v1057
    %v2559 = vunpack.c.l.b16 %v1058
    %v2560 = vunpack.c.h.b16 %v1058
    %v2561 = vunpack.c.l.b16 %v1059
    %v2562 = vunpack.c.h.b16 %v1059
    %v2563 = vunpack.c.l.b16 %v1060
    %v2564 = vunpack.c.h.b16 %v1060
    %v2565 = vunpack.c.l.b16 %v1061
    %v2566 = vunpack.c.h.b16 %v1061
    %v2567 = vunpack.c.l.b16 %v1062
    %v2568 = vunpack.c.h.b16 %v1062
    %v2569 = vunpack.c.l.b16 %v1063
    %v2570 = vunpack.c.h.b16 %v1063
    %v2571 = vunpack.c.l.b16 %v1064
    %v2572 = vunpack.c.h.b16 %v1064
    %v2573 = vunpack.c.l.b16 %v1065
    %v2574 = vunpack.c.h.b16 %v1065
    %v2575 = vunpack.c.l.b16 %v1066
    %v2576 = vunpack.c.h.b16 %v1066
    %v2577 = vunpack.c.l.b16 %v1067
    %v2578 = vunpack.c.h.b16 %v1067
    %v2579 = vunpack.c.l.b16 %v1068
    %v2580 = vunpack.c.h.b16 %v1068
    %v2581 = vunpack.c.l.b16 %v1069
    %v2582 = vunpack.c.h.b16 %v1069
    %v2583 = vunpack.c.l.b16 %v1070
    %v2584 = vunpack.c.h.b16 %v1070
    %v2585 = vunpack.c.l.b16 %v1071
    %v2586 = vunpack.c.h.b16 %v1071
    %v2587 = vunpack.c.l.b16 %v1072
    %v2588 = vunpack.c.h.b16 %v1072
    %v2589 = vunpack.c.l.b16 %v1073
    %v2590 = vunpack.c.h.b16 %v1073
    %v2591 = vunpack.c.l.b16 %v1074
    %v2592 = vunpack.c.h.b16 %v1074
    %v2593 = vunpack.c.l.b16 %v1075
    %v2594 = vunpack.c.h.b16 %v1075
    %v2595 = vunpack.c.l.b16 %v1076
    %v2596 = vunpack.c.h.b16 %v1076
    %v2597 = vunpack.c.l.b16 %v1077
    %v2598 = vunpack.c.h.b16 %v1077
    %v2599 = vunpack.c.l.b16 %v1078
    %v2600 = vunpack.c.h.b16 %v1078
    %v2601 = vunpack.c.l.b16 %v1079
    %v2602 = vunpack.c.h.b16 %v1079
    %v2603 = vunpack.c.l.b16 %v1080
    %v2604 = vunpack.c.h.b16 %v1080
    %v2605 = vunpack.c.l.b16 %v1081
    %v2606 = vunpack.c.h.b16 %v1081
    %v2607 = vunpack.c.l.b16 %v1082
    %v2608 = vunpack.c.h.b16 %v1082
    %v2609 = vunpack.c.l.b16 %v1083
    %v2610 = vunpack.c.h.b16 %v1083
    %v2611 = vunpack.c.l.b16 %v1084
    %v2612 = vunpack.c.h.b16 %v1084
    %v2613 = vunpack.c.l.b16 %v1085
    %v2614 = vunpack.c.h.b16 %v1085
    %v2615 = vunpack.c.l.b16 %v1086
    %v2616 = vunpack.c.h.b16 %v1086
    %v2617 = vunpack.c.l.b16 %v1087
    %v2618 = vunpack.c.h.b16 %v1087
    %v2619 = vunpack.c.l.b16 %v1088
    %v2620 = vunpack.c.h.b16 %v1088
    %v2621 = vunpack.c.l.b16 %v1089
    %v2622 = vunpack.c.h.b16 %v1089
    %v2623 = vunpack.c.l.b16 %v1090
    %v2624 = vunpack.c.h.b16 %v1090
    %v2625 = vunpack.c.l.b16 %v1091
    %v2626 = vunpack.c.h.b16 %v1091
    %v2627 = vunpack.c.l.b16 %v1092
    %v2628 = vunpack.c.h.b16 %v1092
    %v2629 = vunpack.c.l.b16 %v1093
    %v2630 = vunpack.c.h.b16 %v1093
    %v2631 = vunpack.c.l.b16 %v1094
    %v2632 = vunpack.c.h.b16 %v1094
    %v2633 = vunpack.c.l.b16 %v1095
    %v2634 = vunpack.c.h.b16 %v1095
    %v2635 = vunpack.c.l.b16 %v1096
    %v2636 = vunpack.c.h.b16 %v1096
    %v2637 = vunpack.c.l.b16 %v1097
    %v2638 = vunpack.c.h.b16 %v1097
    %v2639 = vunpack.c.l.b16 %v1098
    %v2640 = vunpack.c.h.b16 %v1098
    %v2641 = vunpack.c.l.b16 %v1099
    %v2642 = vunpack.c.h.b16 %v1099
    %v2643 = vunpack.c.l.b16 %v1100
    %v2644 = vunpack.c.h.b16 %v1100
    %v2645 = vunpack.c.l.b16 %v1101
    %v2646 = vunpack.c.h.b16 %v1101
    %v2647 = vunpack.c.l.b16 %v1102
    %v2648 = vunpack.c.h.b16 %v1102
    %v2649 = vunpack.c.l.b16 %v1103
    %v2650 = vunpack.c.h.b16 %v1103
    %v2651 = vunpack.c.l.b16 %v1104
    %v2652 = vunpack.c.h.b16 %v1104
    %v2653 = vunpack.c.l.b16 %v1105
    %v2654 = vunpack.c.h.b16 %v1105
    %v2655 = vunpack.c.l.b16 %v1106
    %v2656 = vunpack.c.h.b16 %v1106
    %v2657 = vunpack.c.l.b16 %v1107
    %v2658 = vunpack.c.h.b16 %v1107
    %v2659 = vunpack.c.l.b16 %v1108
    %v2660 = vunpack.c.h.b16 %v1108
    %v2661 = vunpack.c.l.b16 %v1109
    %v2662 = vunpack.c.h.b16 %v1109
    %v2663 = vunpack.c.l.b16 %v1110
    %v2664 = vunpack.c.h.b16 %v1110
    %v2665 = vunpack.c.l.b16 %v1111
    %v2666 = vunpack.c.h.b16 %v1111
    %v2667 = vunpack.c.l.b16 %v1112
    %v2668 = vunpack.c.h.b16 %v1112
    %v2669 = vunpack.c.l.b16 %v1113
    %v2670 = vunpack.c.h.b16 %v1113
    %v2671 = vunpack.c.l.b16 %v1114
    %v2672 = vunpack.c.h.b16 %v1114
    %v2673 = vunpack.c.l.b16 %v1115
    %v2674 = vunpack.c.h.b16 %v1115
    %v2675 = vunpack.c.l.b16 %v1116
    %v2676 = vunpack.c.h.b16 %v1116
    %v2677 = vunpack.c.l.b16 %v1117
    %v2678 = vunpack.c.h.b16 %v1117
    %v2679 = vunpack.c.l.b16 %v1118
    %v2680 = vunpack.c.h.b16 %v1118
    %v2681 = vunpack.c.l.b16 %v1119
    %v2682 = vunpack.c.h.b16 %v1119
    %v2683 = vunpack.c.l.b16 %v1120
    %v2684 = vunpack.c.h.b16 %v1120
    %v2685 = vunpack.c.l.b16 %v1121
    %v2686 = vunpack.c.h.b16 %v1121
    %v2687 = vunpack.c.l.b16 %v1122
    %v2688 = vunpack.c.h.b16 %v1122
    %v2689 = vunpack.c.l.b16 %v1123
    %v2690 = vunpack.c.h.b16 %v1123
    %v2691 = vunpack.c.l.b16 %v1124
    %v2692 = vunpack.c.h.b16 %v1124
    %v2693 = vunpack.c.l.b16 %v1125
    %v2694 = vunpack.c.h.b16 %v1125
    %v2695 = vunpack.c.l.b16 %v1126
    %v2696 = vunpack.c.h.b16 %v1126
    %v2697 = vunpack.c.l.b16 %v1127
    %v2698 = vunpack.c.h.b16 %v1127
    %v2699 = vunpack.c.l.b16 %v1128
    %v2700 = vunpack.c.h.b16 %v1128
    %v2701 = vunpack.c.l.b16 %v1129
    %v2702 = vunpack.c.h.b16 %v1129
    %v2703 = vunpack.c.l.b16 %v1130
    %v2704 = vunpack.c.h.b16 %v1130
    %v2705 = vunpack.c.l.b16 %v1131
    %v2706 = vunpack.c.h.b16 %v1131
    %v2707 = vunpack.c.l.b16 %v1132
    %v2708 = vunpack.c.h.b16 %v1132
    %v2709 = vunpack.c.l.b16 %v1133
    %v2710 = vunpack.c.h.b16 %v1133
    %v2711 = vunpack.c.l.b16 %v1134
    %v2712 = vunpack.c.h.b16 %v1134
    %v2713 = vpack.c.b16 %v1697, %v1689
    %v2714 = vpack.c.b16 %v1698, %v1690
    %v2715 = vpack.c.b16 %v1699, %v1691
    %v2716 = vpack.c.b16 %v1700, %v1692
    %v2717 = vpack.c.b16 %v1701, %v1693
    %v2718 = vpack.c.b16 %v1702, %v1694
    %v2719 = vpack.c.b16 %v1703, %v1695
    %v2720 = vpack.c.b16 %v1704, %v1696
    %v2721 = vpack.c.b16 %v1713, %v1705
    %v2722 = vpack.c.b16 %v1714, %v1706
    %v2723 = vpack.c.b16 %v1715, %v1707
    %v2724 = vpack.c.b16 %v1716, %v1708
    %v2725 = vpack.c.b16 %v1717, %v1709
    %v2726 = vpack.c.b16 %v1718, %v1710
    %v2727 = vpack.c.b16 %v1719, %v1711
    %v2728 = vpack.c.b16 %v1720, %v1712
    %v2729 = vpack.c.b16 %v1729, %v1721
    %v2730 = vpack.c.b16 %v1730, %v1722
    %v2731 = vpack.c.b16 %v1731, %v1723
    %v2732 = vpack.c.b16 %v1732, %v1724
    %v2733 = vpack.c.b16 %v1733, %v1725
    %v2734 = vpack.c.b16 %v1734, %v1726
    %v2735 = vpack.c.b16 %v1735, %v1727
    %v2736 = vpack.c.b16 %v1736, %v1728
    %v2737 = vpack.c.b16 %v1745, %v1737
    %v2738 = vpack.c.b16 %v1746, %v1738
    %v2739 = vpack.c.b16 %v1747, %v1739
    %v2740 = vpack.c.b16 %v1748, %v1740
    %v2741 = vpack.c.b16 %v1749, %v1741
    %v2742 = vpack.c.b16 %v1750, %v1742
    %v2743 = vpack.c.b16 %v1751, %v1743
    %v2744 = vpack.c.b16 %v1752, %v1744
    %v2745 = vpack.c.b16 %v1761, %v1753
    %v2746 = vpack.c.b16 %v1762, %v1754
    %v2747 = vpack.c.b16 %v1763, %v1755
    %v2748 = vpack.c.b16 %v1764, %v1756
    %v2749 = vpack.c.b16 %v1765, %v1757
    %v2750 = vpack.c.b16 %v1766, %v1758
    %v2751 = vpack.c.b16 %v1767, %v1759
    %v2752 = vpack.c.b16 %v1768, %v1760
    %v2753 = vpack.c.b16 %v1777, %v1769
    %v2754 = vpack.c.b16 %v1778, %v1770
    %v2755 = vpack.c.b16 %v1779, %v1771
    %v2756 = vpack.c.b16 %v1780, %v1772
    %v2757 = vpack.c.b16 %v1781, %v1773
    %v2758 = vpack.c.b16 %v1782, %v1774
    %v2759 = vpack.c.b16 %v1783, %v1775
    %v2760 = vpack.c.b16 %v1784, %v1776
    %v2761 = vpack.c.b16 %v1793, %v1785
    %v2762 = vpack.c.b16 %v1794, %v1786
    %v2763 = vpack.c.b16 %v1795, %v1787
    %v2764 = vpack.c.b16 %v1796, %v1788
    %v2765 = vpack.c.b16 %v1797, %v1789
    %v2766 = vpack.c.b16 %v1798, %v1790
    %v2767 = vpack.c.b16 %v1799, %v1791
    %v2768 = vpack.c.b16 %v1800, %v1792
    %v2769 = vpack.c.b16 %v1809, %v1801
    %v2770 = vpack.c.b16 %v1810, %v1802
    %v2771 = vpack.c.b16 %v1811, %v1803
    %v2772 = vpack.c.b16 %v1812, %v1804
    %v2773 = vpack.c.b16 %v1813, %v1805
    %v2774 = vpack.c.b16 %v1814, %v1806
    %v2775 = vpack.c.b16 %v1815, %v1807
    %v2776 = vpack.c.b16 %v1816, %v1808
    %v2777 = vpack.c.b16 %v1825, %v1817
    %v2778 = vpack.c.b16 %v1826, %v1818
    %v2779 = vpack.c.b16 %v1827, %v1819
    %v2780 = vpack.c.b16 %v1828, %v1820
    %v2781 = vpack.c.b16 %v1829, %v1821
    %v2782 = vpack.c.b16 %v1830, %v1822
    %v2783 = vpack.c.b16 %v1831, %v1823
    %v2784 = vpack.c.b16 %v1832, %v1824
    %v2785 = vpack.c.b16 %v1841, %v1833
    %v2786 = vpack.c.b16 %v1842, %v1834
    %v2787 = vpack.c.b16 %v1843, %v1835
    %v2788 = vpack.c.b16 %v1844, %v1836
    %v2789 = vpack.c.b16 %v1845, %v1837
    %v2790 = vpack.c.b16 %v1846, %v1838
    %v2791 = vpack.c.b16 %v1847, %v1839
    %v2792 = vpack.c.b16 %v1848, %v1840
    %v2793 = vpack.c.b16 %v1857, %v1849
    %v2794 = vpack.c.b16 %v1858, %v1850
    %v2795 = vpack.c.b16 %v1859, %v1851
    %v2796 = vpack.c.b16 %v1860, %v1852
    %v2797 = vpack.c.b16 %v1861, %v1853
    %v2798 = vpack.c.b16 %v1862, %v1854
    %v2799 = vpack.c.b16 %v1863, %v1855
    %v2800 = vpack.c.b16 %v1864, %v1856
    %v2801 = vpack.c.b16 %v1873, %v1865
    %v2802 = vpack.c.b16 %v1874, %v1866
    %v2803 = vpack.c.b16 %v1875, %v1867
    %v2804 = vpack.c.b16 %v1876, %v1868
    %v2805 = vpack.c.b16 %v1877, %v1869
    %v2806 = vpack.c.b16 %v1878, %v1870
    %v2807 = vpack.c.b16 %v1879, %v1871
    %v2808 = vpack.c.b16 %v1880, %v1872
    %v2809 = vpack.c.b16 %v1889, %v1881
    %v2810 = vpack.c.b16 %v1890, %v1882
    %v2811 = vpack.c.b16 %v1891, %v1883
    %v2812 = vpack.c.b16 %v1892, %v1884
    %v2813 = vpack.c.b16 %v1893, %v1885
    %v2814 = vpack.c.b16 %v1894, %v1886
    %v2815 = vpack.c.b16 %v1895, %v1887
    %v2816 = vpack.c.b16 %v1896, %v1888
    %v2817 = vpack.c.b16 %v1905, %v1897
    %v2818 = vpack.c.b16 %v1906, %v1898
    %v2819 = vpack.c.b16 %v1907, %v1899
    %v2820 = vpack.c.b16 %v1908, %v1900
    %v2821 = vpack.c.b16 %v1909, %v1901
    %v2822 = vpack.c.b16 %v1910, %v1902
    %v2823 = vpack.c.b16 %v1911, %v1903
    %v2824 = vpack.c.b16 %v1912, %v1904
    %v2825 = vpack.c.b16 %v1921, %v1913
    %v2826 = vpack.c.b16 %v1922, %v1914
    %v2827 = vpack.c.b16 %v1923, %v1915
    %v2828 = vpack.c.b16 %v1924, %v1916
    %v2829 = vpack.c.b16 %v1925, %v1917
    %v2830 = vpack.c.b16 %v1926, %v1918
    %v2831 = vpack.c.b16 %v1927, %v1919
    %v2832 = vpack.c.b16 %v1928, %v1920
    %v2833 = vpack.c.b16 %v1937, %v1929
    %v2834 = vpack.c.b16 %v1938, %v1930
    %v2835 = vpack.c.b16 %v1939, %v1931
    %v2836 = vpack.c.b16 %v1940, %v1932
    %v2837 = vpack.c.b16 %v1941, %v1933
    %v2838 = vpack.c.b16 %v1942, %v1934
    %v2839 = vpack.c.b16 %v1943, %v1935
    %v2840 = vpack.c.b16 %v1944, %v1936
    %v2841 = vpack.c.b16 %v1953, %v1945
    %v2842 = vpack.c.b16 %v1954, %v1946
    %v2843 = vpack.c.b16 %v1955, %v1947
    %v2844 = vpack.c.b16 %v1956, %v1948
    %v2845 = vpack.c.b16 %v1957, %v1949
    %v2846 = vpack.c.b16 %v1958, %v1950
    %v2847 = vpack.c.b16 %v1959, %v1951
    %v2848 = vpack.c.b16 %v1960, %v1952
    %v2849 = vpack.c.b16 %v1969, %v1961
    %v2850 = vpack.c.b16 %v1970, %v1962
    %v2851 = vpack.c.b16 %v1971, %v1963
    %v2852 = vpack.c.b16 %v1972, %v1964
    %v2853 = vpack.c.b16 %v1973, %v1965
    %v2854 = vpack.c.b16 %v1974, %v1966
    %v2855 = vpack.c.b16 %v1975, %v1967
    %v2856 = vpack.c.b16 %v1976, %v1968
    %v2857 = vpack.c.b16 %v1985, %v1977
    %v2858 = vpack.c.b16 %v1986, %v1978
    %v2859 = vpack.c.b16 %v1987, %v1979
    %v2860 = vpack.c.b16 %v1988, %v1980
    %v2861 = vpack.c.b16 %v1989, %v1981
    %v2862 = vpack.c.b16 %v1990, %v1982
    %v2863 = vpack.c.b16 %v1991, %v1983
    %v2864 = vpack.c.b16 %v1992, %v1984
    %v2865 = vpack.c.b16 %v2001, %v1993
    %v2866 = vpack.c.b16 %v2002, %v1994
    %v2867 = vpack.c.b16 %v2003, %v1995
    %v2868 = vpack.c.b16 %v2004, %v1996
    %v2869 = vpack.c.b16 %v2005, %v1997
    %v2870 = vpack.c.b16 %v2006, %v1998
    %v2871 = vpack.c.b16 %v2007, %v1999
    %v2872 = vpack.c.b16 %v2008, %v2000
    %v2873 = vpack.c.b16 %v2017, %v2009
    %v2874 = vpack.c.b16 %v2018, %v2010
    %v2875 = vpack.c.b16 %v2019, %v2011
    %v2876 = vpack.c.b16 %v2020, %v2012
    %v2877 = vpack.c.b16 %v2021, %v2013
    %v2878 = vpack.c.b16 %v2022, %v2014
    %v2879 = vpack.c.b16 %v2023, %v2015
    %v2880 = vpack.c.b16 %v2024, %v2016
    %v2881 = vpack.c.b16 %v2033, %v2025
    %v2882 = vpack.c.b16 %v2034, %v2026
    %v2883 = vpack.c.b16 %v2035, %v2027
    %v2884 = vpack.c.b16 %v2036, %v2028
    %v2885 = vpack.c.b16 %v2037, %v2029
    %v2886 = vpack.c.b16 %v2038, %v2030
    %v2887 = vpack.c.b16 %v2039, %v2031
    %v2888 = vpack.c.b16 %v2040, %v2032
    %v2889 = vpack.c.b16 %v2049, %v2041
    %v2890 = vpack.c.b16 %v2050, %v2042
    %v2891 = vpack.c.b16 %v2051, %v2043
    %v2892 = vpack.c.b16 %v2052, %v2044
    %v2893 = vpack.c.b16 %v2053, %v2045
    %v2894 = vpack.c.b16 %v2054, %v2046
    %v2895 = vpack.c.b16 %v2055, %v2047
    %v2896 = vpack.c.b16 %v2056, %v2048
    %v2897 = vpack.c.b16 %v2065, %v2057
    %v2898 = vpack.c.b16 %v2066, %v2058
    %v2899 = vpack.c.b16 %v2067, %v2059
    %v2900 = vpack.c.b16 %v2068, %v2060
    %v2901 = vpack.c.b16 %v2069, %v2061
    %v2902 = vpack.c.b16 %v2070, %v2062
    %v2903 = vpack.c.b16 %v2071, %v2063
    %v2904 = vpack.c.b16 %v2072, %v2064
    %v2905 = vpack.c.b16 %v2081, %v2073
    %v2906 = vpack.c.b16 %v2082, %v2074
    %v2907 = vpack.c.b16 %v2083, %v2075
    %v2908 = vpack.c.b16 %v2084, %v2076
    %v2909 = vpack.c.b16 %v2085, %v2077
    %v2910 = vpack.c.b16 %v2086, %v2078
    %v2911 = vpack.c.b16 %v2087, %v2079
    %v2912 = vpack.c.b16 %v2088, %v2080
    %v2913 = vpack.c.b16 %v2097, %v2089
    %v2914 = vpack.c.b16 %v2098, %v2090
    %v2915 = vpack.c.b16 %v2099, %v2091
    %v2916 = vpack.c.b16 %v2100, %v2092
    %v2917 = vpack.c.b16 %v2101, %v2093
    %v2918 = vpack.c.b16 %v2102, %v2094
    %v2919 = vpack.c.b16 %v2103, %v2095
    %v2920 = vpack.c.b16 %v2104, %v2096
    %v2921 = vpack.c.b16 %v2113, %v2105
    %v2922 = vpack.c.b16 %v2114, %v2106
    %v2923 = vpack.c.b16 %v2115, %v2107
    %v2924 = vpack.c.b16 %v2116, %v2108
    %v2925 = vpack.c.b16 %v2117, %v2109
    %v2926 = vpack.c.b16 %v2118, %v2110
    %v2927 = vpack.c.b16 %v2119, %v2111
    %v2928 = vpack.c.b16 %v2120, %v2112
    %v2929 = vpack.c.b16 %v2129, %v2121
    %v2930 = vpack.c.b16 %v2130, %v2122
    %v2931 = vpack.c.b16 %v2131, %v2123
    %v2932 = vpack.c.b16 %v2132, %v2124
    %v2933 = vpack.c.b16 %v2133, %v2125
    %v2934 = vpack.c.b16 %v2134, %v2126
    %v2935 = vpack.c.b16 %v2135, %v2127
    %v2936 = vpack.c.b16 %v2136, %v2128
    %v2937 = vpack.c.b16 %v2145, %v2137
    %v2938 = vpack.c.b16 %v2146, %v2138
    %v2939 = vpack.c.b16 %v2147, %v2139
    %v2940 = vpack.c.b16 %v2148, %v2140
    %v2941 = vpack.c.b16 %v2149, %v2141
    %v2942 = vpack.c.b16 %v2150, %v2142
    %v2943 = vpack.c.b16 %v2151, %v2143
    %v2944 = vpack.c.b16 %v2152, %v2144
    %v2945 = vpack.c.b16 %v2161, %v2153
    %v2946 = vpack.c.b16 %v2162, %v2154
    %v2947 = vpack.c.b16 %v2163, %v2155
    %v2948 = vpack.c.b16 %v2164, %v2156
    %v2949 = vpack.c.b16 %v2165, %v2157
    %v2950 = vpack.c.b16 %v2166, %v2158
    %v2951 = vpack.c.b16 %v2167, %v2159
    %v2952 = vpack.c.b16 %v2168, %v2160
    %v2953 = vpack.c.b16 %v2177, %v2169
    %v2954 = vpack.c.b16 %v2178, %v2170
    %v2955 = vpack.c.b16 %v2179, %v2171
    %v2956 = vpack.c.b16 %v2180, %v2172
    %v2957 = vpack.c.b16 %v2181, %v2173
    %v2958 = vpack.c.b16 %v2182, %v2174
    %v2959 = vpack.c.b16 %v2183, %v2175
    %v2960 = vpack.c.b16 %v2184, %v2176
    %v2961 = vpack.c.b16 %v2193, %v2185
    %v2962 = vpack.c.b16 %v2194, %v2186
    %v2963 = vpack.c.b16 %v2195, %v2187
    %v2964 = vpack.c.b16 %v2196, %v2188
    %v2965 = vpack.c.b16 %v2197, %v2189
    %v2966 = vpack.c.b16 %v2198, %v2190
    %v2967 = vpack.c.b16 %v2199, %v2191
    %v2968 = vpack.c.b16 %v2200, %v2192
    %v2969 = vpack.c.b16 %v2209, %v2201
    %v2970 = vpack.c.b16 %v2210, %v2202
    %v2971 = vpack.c.b16 %v2211, %v2203
    %v2972 = vpack.c.b16 %v2212, %v2204
    %v2973 = vpack.c.b16 %v2213, %v2205
    %v2974 = vpack.c.b16 %v2214, %v2206
    %v2975 = vpack.c.b16 %v2215, %v2207
    %v2976 = vpack.c.b16 %v2216, %v2208
    %v2977 = vpack.c.b16 %v2225, %v2217
    %v2978 = vpack.c.b16 %v2226, %v2218
    %v2979 = vpack.c.b16 %v2227, %v2219
    %v2980 = vpack.c.b16 %v2228, %v2220
    %v2981 = vpack.c.b16 %v2229, %v2221
    %v2982 = vpack.c.b16 %v2230, %v2222
    %v2983 = vpack.c.b16 %v2231, %v2223
    %v2984 = vpack.c.b16 %v2232, %v2224
    %v2985 = vpack.c.b16 %v2241, %v2233
    %v2986 = vpack.c.b16 %v2242, %v2234
    %v2987 = vpack.c.b16 %v2243, %v2235
    %v2988 = vpack.c.b16 %v2244, %v2236
    %v2989 = vpack.c.b16 %v2245, %v2237
    %v2990 = vpack.c.b16 %v2246, %v2238
    %v2991 = vpack.c.b16 %v2247, %v2239
    %v2992 = vpack.c.b16 %v2248, %v2240
    %v2993 = vpack.c.b16 %v2257, %v2249
    %v2994 = vpack.c.b16 %v2258, %v2250
    %v2995 = vpack.c.b16 %v2259, %v2251
    %v2996 = vpack.c.b16 %v2260, %v2252
    %v2997 = vpack.c.b16 %v2261, %v2253
    %v2998 = vpack.c.b16 %v2262, %v2254
    %v2999 = vpack.c.b16 %v2263, %v2255
    %v3000 = vpack.c.b16 %v2264, %v2256
    %v3001 = vpack.c.b16 %v2273, %v2265
    %v3002 = vpack.c.b16 %v2274, %v2266
    %v3003 = vpack.c.b16 %v2275, %v2267
    %v3004 = vpack.c.b16 %v2276, %v2268
    %v3005 = vpack.c.b16 %v2277, %v2269
    %v3006 = vpack.c.b16 %v2278, %v2270
    %v3007 = vpack.c.b16 %v2279, %v2271
    %v3008 = vpack.c.b16 %v2280, %v2272
    %v3009 = vpack.c.b16 %v2289, %v2281
    %v3010 = vpack.c.b16 %v2290, %v2282
    %v3011 = vpack.c.b16 %v2291, %v2283
    %v3012 = vpack.c.b16 %v2292, %v2284
    %v3013 = vpack.c.b16 %v2293, %v2285
    %v3014 = vpack.c.b16 %v2294, %v2286
    %v3015 = vpack.c.b16 %v2295, %v2287
    %v3016 = vpack.c.b16 %v2296, %v2288
    %v3017 = vpack.c.b16 %v2305, %v2297
    %v3018 = vpack.c.b16 %v2306, %v2298
    %v3019 = vpack.c.b16 %v2307, %v2299
    %v3020 = vpack.c.b16 %v2308, %v2300
    %v3021 = vpack.c.b16 %v2309, %v2301
    %v3022 = vpack.c.b16 %v2310, %v2302
    %v3023 = vpack.c.b16 %v2311, %v2303
    %v3024 = vpack.c.b16 %v2312, %v2304
    %v3025 = vpack.c.b16 %v2321, %v2313
    %v3026 = vpack.c.b16 %v2322, %v2314
    %v3027 = vpack.c.b16 %v2323, %v2315
    %v3028 = vpack.c.b16 %v2324, %v2316
    %v3029 = vpack.c.b16 %v2325, %v2317
    %v3030 = vpack.c.b16 %v2326, %v2318
    %v3031 = vpack.c.b16 %v2327, %v2319
    %v3032 = vpack.c.b16 %v2328, %v2320
    %v3033 = vpack.c.b16 %v2337, %v2329
    %v3034 = vpack.c.b16 %v2338, %v2330
    %v3035 = vpack.c.b16 %v2339, %v2331
    %v3036 = vpack.c.b16 %v2340, %v2332
    %v3037 = vpack.c.b16 %v2341, %v2333
    %v3038 = vpack.c.b16 %v2342, %v2334
    %v3039 = vpack.c.b16 %v2343, %v2335
    %v3040 = vpack.c.b16 %v2344, %v2336
    %v3041 = vpack.c.b16 %v2353, %v2345
    %v3042 = vpack.c.b16 %v2354, %v2346
    %v3043 = vpack.c.b16 %v2355, %v2347
    %v3044 = vpack.c.b16 %v2356, %v2348
    %v3045 = vpack.c.b16 %v2357, %v2349
    %v3046 = vpack.c.b16 %v2358, %v2350
    %v3047 = vpack.c.b16 %v2359, %v2351
    %v3048 = vpack.c.b16 %v2360, %v2352
    %v3049 = vpack.c.b16 %v2369, %v2361
    %v3050 = vpack.c.b16 %v2370, %v2362
    %v3051 = vpack.c.b16 %v2371, %v2363
    %v3052 = vpack.c.b16 %v2372, %v2364
    %v3053 = vpack.c.b16 %v2373, %v2365
    %v3054 = vpack.c.b16 %v2374, %v2366
    %v3055 = vpack.c.b16 %v2375, %v2367
    %v3056 = vpack.c.b16 %v2376, %v2368
    %v3057 = vpack.c.b16 %v2385, %v2377
    %v3058 = vpack.c.b16 %v2386, %v2378
    %v3059 = vpack.c.b16 %v2387, %v2379
    %v3060 = vpack.c.b16 %v2388, %v2380
    %v3061 = vpack.c.b16 %v2389, %v2381
    %v3062 = vpack.c.b16 %v2390, %v2382
    %v3063 = vpack.c.b16 %v2391, %v2383
    %v3064 = vpack.c.b16 %v2392, %v2384
    %v3065 = vpack.c.b16 %v2401, %v2393
    %v3066 = vpack.c.b16 %v2402, %v2394
    %v3067 = vpack.c.b16 %v2403, %v2395
    %v3068 = vpack.c.b16 %v2404, %v2396
    %v3069 = vpack.c.b16 %v2405, %v2397
    %v3070 = vpack.c.b16 %v2406, %v2398
    %v3071 = vpack.c.b16 %v2407, %v2399
    %v3072 = vpack.c.b16 %v2408, %v2400
    %v3073 = vpack.c.b16 %v2417, %v2409
    %v3074 = vpack.c.b16 %v2418, %v2410
    %v3075 = vpack.c.b16 %v2419, %v2411
    %v3076 = vpack.c.b16 %v2420, %v2412
    %v3077 = vpack.c.b16 %v2421, %v2413
    %v3078 = vpack.c.b16 %v2422, %v2414
    %v3079 = vpack.c.b16 %v2423, %v2415
    %v3080 = vpack.c.b16 %v2424, %v2416
    %v3081 = vpack.c.b16 %v2433, %v2425
    %v3082 = vpack.c.b16 %v2434, %v2426
    %v3083 = vpack.c.b16 %v2435, %v2427
    %v3084 = vpack.c.b16 %v2436, %v2428
    %v3085 = vpack.c.b16 %v2437, %v2429
    %v3086 = vpack.c.b16 %v2438, %v2430
    %v3087 = vpack.c.b16 %v2439, %v2431
    %v3088 = vpack.c.b16 %v2440, %v2432
    %v3089 = vpack.c.b16 %v2449, %v2441
    %v3090 = vpack.c.b16 %v2450, %v2442
    %v3091 = vpack.c.b16 %v2451, %v2443
    %v3092 = vpack.c.b16 %v2452, %v2444
    %v3093 = vpack.c.b16 %v2453, %v2445
    %v3094 = vpack.c.b16 %v2454, %v2446
    %v3095 = vpack.c.b16 %v2455, %v2447
    %v3096 = vpack.c.b16 %v2456, %v2448
    %v3097 = vpack.c.b16 %v2465, %v2457
    %v3098 = vpack.c.b16 %v2466, %v2458
    %v3099 = vpack.c.b16 %v2467, %v2459
    %v3100 = vpack.c.b16 %v2468, %v2460
    %v3101 = vpack.c.b16 %v2469, %v2461
    %v3102 = vpack.c.b16 %v2470, %v2462
    %v3103 = vpack.c.b16 %v2471, %v2463
    %v3104 = vpack.c.b16 %v2472, %v2464
    %v3105 = vpack.c.b16 %v2481, %v2473
    %v3106 = vpack.c.b16 %v2482, %v2474
    %v3107 = vpack.c.b16 %v2483, %v2475
    %v3108 = vpack.c.b16 %v2484, %v2476
    %v3109 = vpack.c.b16 %v2485, %v2477
    %v3110 = vpack.c.b16 %v2486, %v2478
    %v3111 = vpack.c.b16 %v2487, %v2479
    %v3112 = vpack.c.b16 %v2488, %v2480
    %v3113 = vpack.c.b16 %v2497, %v2489
    %v3114 = vpack.c.b16 %v2498, %v2490
    %v3115 = vpack.c.b16 %v2499, %v2491
    %v3116 = vpack.c.b16 %v2500, %v2492
    %v3117 = vpack.c.b16 %v2501, %v2493
    %v3118 = vpack.c.b16 %v2502, %v2494
    %v3119 = vpack.c.b16 %v2503, %v2495
    %v3120 = vpack.c.b16 %v2504, %v2496
    %v3121 = vpack.c.b16 %v2513, %v2505
    %v3122 = vpack.c.b16 %v2514, %v2506
    %v3123 = vpack.c.b16 %v2515, %v2507
    %v3124 = vpack.c.b16 %v2516, %v2508
    %v3125 = vpack.c.b16 %v2517, %v2509
    %v3126 = vpack.c.b16 %v2518, %v2510
    %v3127 = vpack.c.b16 %v2519, %v2511
    %v3128 = vpack.c.b16 %v2520, %v2512
    %v3129 = vpack.c.b16 %v2529, %v2521
    %v3130 = vpack.c.b16 %v2530, %v2522
    %v3131 = vpack.c.b16 %v2531, %v2523
    %v3132 = vpack.c.b16 %v2532, %v2524
    %v3133 = vpack.c.b16 %v2533, %v2525
    %v3134 = vpack.c.b16 %v2534, %v2526
    %v3135 = vpack.c.b16 %v2535, %v2527
    %v3136 = vpack.c.b16 %v2536, %v2528
    %v3137 = vpack.c.b16 %v2545, %v2537
    %v3138 = vpack.c.b16 %v2546, %v2538
    %v3139 = vpack.c.b16 %v2547, %v2539
    %v3140 = vpack.c.b16 %v2548, %v2540
    %v3141 = vpack.c.b16 %v2549, %v2541
    %v3142 = vpack.c.b16 %v2550, %v2542
    %v3143 = vpack.c.b16 %v2551, %v2543
    %v3144 = vpack.c.b16 %v2552, %v2544
    %v3145 = vpack.c.b16 %v2561, %v2553
    %v3146 = vpack.c.b16 %v2562, %v2554
    %v3147 = vpack.c.b16 %v2563, %v2555
    %v3148 = vpack.c.b16 %v2564, %v2556
    %v3149 = vpack.c.b16 %v2565, %v2557
    %v3150 = vpack.c.b16 %v2566, %v2558
    %v3151 = vpack.c.b16 %v2567, %v2559
    %v3152 = vpack.c.b16 %v2568, %v2560
    %v3153 = vpack.c.b16 %v2577, %v2569
    %v3154 = vpack.c.b16 %v2578, %v2570
    %v3155 = vpack.c.b16 %v2579, %v2571
    %v3156 = vpack.c.b16 %v2580, %v2572
    %v3157 = vpack.c.b16 %v2581, %v2573
    %v3158 = vpack.c.b16 %v2582, %v2574
    %v3159 = vpack.c.b16 %v2583, %v2575
    %v3160 = vpack.c.b16 %v2584, %v2576
    %v3161 = vpack.c.b16 %v2593, %v2585
    %v3162 = vpack.c.b16 %v2594, %v2586
    %v3163 = vpack.c.b16 %v2595, %v2587
    %v3164 = vpack.c.b16 %v2596, %v2588
    %v3165 = vpack.c.b16 %v2597, %v2589
    %v3166 = vpack.c.b16 %v2598, %v2590
    %v3167 = vpack.c.b16 %v2599, %v2591
    %v3168 = vpack.c.b16 %v2600, %v2592
    %v3169 = vpack.c.b16 %v2609, %v2601
    %v3170 = vpack.c.b16 %v2610, %v2602
    %v3171 = vpack.c.b16 %v2611, %v2603
    %v3172 = vpack.c.b16 %v2612, %v2604
    %v3173 = vpack.c.b16 %v2613, %v2605
    %v3174 = vpack.c.b16 %v2614, %v2606
    %v3175 = vpack.c.b16 %v2615, %v2607
    %v3176 = vpack.c.b16 %v2616, %v2608
    %v3177 = vpack.c.b16 %v2625, %v2617
    %v3178 = vpack.c.b16 %v2626, %v2618
    %v3179 = vpack.c.b16 %v2627, %v2619
    %v3180 = vpack.c.b16 %v2628, %v2620
    %v3181 = vpack.c.b16 %v2629, %v2621
    %v3182 = vpack.c.b16 %v2630, %v2622
    %v3183 = vpack.c.b16 %v2631, %v2623
    %v3184 = vpack.c.b16 %v2632, %v2624
    %v3185 = vpack.c.b16 %v2641, %v2633
    %v3186 = vpack.c.b16 %v2642, %v2634
    %v3187 = vpack.c.b16 %v2643, %v2635
    %v3188 = vpack.c.b16 %v2644, %v2636
    %v3189 = vpack.c.b16 %v2645, %v2637
    %v3190 = vpack.c.b16 %v2646, %v2638
    %v3191 = vpack.c.b16 %v2647, %v2639
    %v3192 = vpack.c.b16 %v2648, %v2640
    %v3193 = vpack.c.b16 %v2657, %v2649
    %v3194 = vpack.c.b16 %v2658, %v2650
    %v3195 = vpack.c.b16 %v2659, %v2651
    %v3196 = vpack.c.b16 %v2660, %v2652
    %v3197 = vpack.c.b16 %v2661, %v2653
    %v3198 = vpack.c.b16 %v2662, %v2654
    %v3199 = vpack.c.b16 %v2663, %v2655
    %v3200 = vpack.c.b16 %v2664, %v2656
    %v3201 = vpack.c.b16 %v2673, %v2665
    %v3202 = vpack.c.b16 %v2674, %v2666
    %v3203 = vpack.c.b16 %v2675, %v2667
    %v3204 = vpack.c.b16 %v2676, %v2668
    %v3205 = vpack.c.b16 %v2677, %v2669
    %v3206 = vpack.c.b16 %v2678, %v2670
    %v3207 = vpack.c.b16 %v2679, %v2671
    %v3208 = vpack.c.b16 %v2680, %v2672
    %v3209 = vpack.c.b16 %v2689, %v2681
    %v3210 = vpack.c.b16 %v2690, %v2682
    %v3211 = vpack.c.b16 %v2691, %v2683
    %v3212 = vpack.c.b16 %v2692, %v2684
    %v3213 = vpack.c.b16 %v2693, %v2685
    %v3214 = vpack.c.b16 %v2694, %v2686
    %v3215 = vpack.c.b16 %v2695, %v2687
    %v3216 = vpack.c.b16 %v2696, %v2688
    %v3217 = vpack.c.b16 %v2705, %v2697
    %v3218 = vpack.c.b16 %v2706, %v2698
    %v3219 = vpack.c.b16 %v2707, %v2699
    %v3220 = vpack.c.b16 %v2708, %v2700
    %v3221 = vpack.c.b16 %v2709, %v2701
    %v3222 = vpack.c.b16 %v2710, %v2702
    %v3223 = vpack.c.b16 %v2711, %v2703
    %v3224 = vpack.c.b16 %v2712, %v2704
    %3737 = vmatprep.subr.bf16.mxu0 %v2770
    %3738 = vmatpush1.bf16.msra.mxu0 %v2769
    %3739 = vmatprep.subr.bf16.mxu0 %v2762
    %3740 = vmatpush1.bf16.msra.mxu0 %v2761
    %3741 = vmatprep.subr.bf16.mxu0 %v2754
    %3742 = vmatpush1.bf16.msra.mxu0 %v2753
    %3743 = vmatprep.subr.bf16.mxu0 %v2746
    %3744 = vmatpush1.bf16.msra.mxu0 %v2745
    %3745 = vmatprep.subr.bf16.mxu0 %v2738
    %3746 = vmatpush1.bf16.msra.mxu0 %v2737
    %3747 = vmatprep.subr.bf16.mxu0 %v2730
    %3748 = vmatpush1.bf16.msra.mxu0 %v2729
    %3749 = vmatprep.subr.bf16.mxu0 %v2722
    %3750 = vmatpush1.bf16.msra.mxu0 %v2721
    %3751 = vmatprep.subr.bf16.mxu0 %v2714
    %3752 = vmatpush1.bf16.msra.mxu0 %v2713
    %3753 = vmatprep.subr.bf16.mxu0 %v2834
    %3754 = vmatpush2.bf16.msra.mxu0 %v2833
    %3755 = vmatprep.subr.bf16.mxu0 %v2826
    %3756 = vmatpush2.bf16.msra.mxu0 %v2825
    %3757 = vmatprep.subr.bf16.mxu0 %v2818
    %3758 = vmatpush2.bf16.msra.mxu0 %v2817
    %3759 = vmatprep.subr.bf16.mxu0 %v2810
    %3760 = vmatpush2.bf16.msra.mxu0 %v2809
    %3761 = vmatprep.subr.bf16.mxu0 %v2802
    %3762 = vmatpush2.bf16.msra.mxu0 %v2801
    %3763 = vmatprep.subr.bf16.mxu0 %v2794
    %3764 = vmatpush2.bf16.msra.mxu0 %v2793
    %3765 = vmatprep.subr.bf16.mxu0 %v2786
    %3766 = vmatpush2.bf16.msra.mxu0 %v2785
    %3767 = vmatprep.subr.bf16.mxu0 %v2778
    %3768 = vmatpush2.bf16.msra.mxu0 %v2777
    %3769 = vmatprep.mubr.bf16.mxu0 %v616
    %3770 = vmatmul.mubr.bf16.gmra.mxu0 %v615
    %v3771 = vpop.f32.mrf.mxu0
    %v3772 = vadd.f32 %v1140, %v3771
    %v3773 = vpop.f32.mrf.mxu0
    %v3774 = vadd.f32 %v1144, %v3773
    %v3775 = vpop.f32.mrf.mxu0
    %v3776 = vpop.f32.mrf.mxu0
    %3777 = vdwg.mxu0
    %3778 = vmatprep.subr.bf16.mxu0 %v2898
    %3779 = vmatpush1.bf16.msra.mxu0 %v2897
    %3780 = vmatprep.subr.bf16.mxu0 %v2890
    %3781 = vmatpush1.bf16.msra.mxu0 %v2889
    %3782 = vmatprep.subr.bf16.mxu0 %v2882
    %3783 = vmatpush1.bf16.msra.mxu0 %v2881
    %3784 = vmatprep.subr.bf16.mxu0 %v2874
    %3785 = vmatpush1.bf16.msra.mxu0 %v2873
    %3786 = vmatprep.subr.bf16.mxu0 %v2866
    %3787 = vmatpush1.bf16.msra.mxu0 %v2865
    %3788 = vmatprep.subr.bf16.mxu0 %v2858
    %3789 = vmatpush1.bf16.msra.mxu0 %v2857
    %3790 = vmatprep.subr.bf16.mxu0 %v2850
    %3791 = vmatpush1.bf16.msra.mxu0 %v2849
    %3792 = vmatprep.subr.bf16.mxu0 %v2842
    %3793 = vmatpush1.bf16.msra.mxu0 %v2841
    %3794 = vmatprep.subr.bf16.mxu0 %v2962
    %3795 = vmatpush2.bf16.msra.mxu0 %v2961
    %3796 = vmatprep.subr.bf16.mxu0 %v2954
    %3797 = vmatpush2.bf16.msra.mxu0 %v2953
    %3798 = vmatprep.subr.bf16.mxu0 %v2946
    %3799 = vmatpush2.bf16.msra.mxu0 %v2945
    %3800 = vmatprep.subr.bf16.mxu0 %v2938
    %3801 = vmatpush2.bf16.msra.mxu0 %v2937
    %3802 = vmatprep.subr.bf16.mxu0 %v2930
    %3803 = vmatpush2.bf16.msra.mxu0 %v2929
    %3804 = vmatprep.subr.bf16.mxu0 %v2922
    %3805 = vmatpush2.bf16.msra.mxu0 %v2921
    %3806 = vmatprep.subr.bf16.mxu0 %v2914
    %3807 = vmatpush2.bf16.msra.mxu0 %v2913
    %3808 = vmatprep.subr.bf16.mxu0 %v2906
    %3809 = vmatpush2.bf16.msra.mxu0 %v2905
    %3810 = vmatprep.mubr.bf16.mxu0 %v618
    %3811 = vmatmul.mubr.bf16.gmra.mxu0 %v617
    %v3812 = vpop.f32.mrf.mxu0
    %v3813 = vadd.f32 %v3772, %v3812
    %v3814 = vpop.f32.mrf.mxu0
    %v3815 = vadd.f32 %v3774, %v3814
    %v3816 = vpop.f32.mrf.mxu0
    %v3817 = vpop.f32.mrf.mxu0
    %3818 = vdwg.mxu0
    %3819 = vmatprep.subr.bf16.mxu0 %v3026
    %3820 = vmatpush1.bf16.msra.mxu0 %v3025
    %3821 = vmatprep.subr.bf16.mxu0 %v3018
    %3822 = vmatpush1.bf16.msra.mxu0 %v3017
    %3823 = vmatprep.subr.bf16.mxu0 %v3010
    %3824 = vmatpush1.bf16.msra.mxu0 %v3009
    %3825 = vmatprep.subr.bf16.mxu0 %v3002
    %3826 = vmatpush1.bf16.msra.mxu0 %v3001
    %3827 = vmatprep.subr.bf16.mxu0 %v2994
    %3828 = vmatpush1.bf16.msra.mxu0 %v2993
    %3829 = vmatprep.subr.bf16.mxu0 %v2986
    %3830 = vmatpush1.bf16.msra.mxu0 %v2985
    %3831 = vmatprep.subr.bf16.mxu0 %v2978
    %3832 = vmatpush1.bf16.msra.mxu0 %v2977
    %3833 = vmatprep.subr.bf16.mxu0 %v2970
    %3834 = vmatpush1.bf16.msra.mxu0 %v2969
    %3835 = vmatprep.subr.bf16.mxu0 %v3090
    %3836 = vmatpush2.bf16.msra.mxu0 %v3089
    %3837 = vmatprep.subr.bf16.mxu0 %v3082
    %3838 = vmatpush2.bf16.msra.mxu0 %v3081
    %3839 = vmatprep.subr.bf16.mxu0 %v3074
    %3840 = vmatpush2.bf16.msra.mxu0 %v3073
    %3841 = vmatprep.subr.bf16.mxu0 %v3066
    %3842 = vmatpush2.bf16.msra.mxu0 %v3065
    %3843 = vmatprep.subr.bf16.mxu0 %v3058
    %3844 = vmatpush2.bf16.msra.mxu0 %v3057
    %3845 = vmatprep.subr.bf16.mxu0 %v3050
    %3846 = vmatpush2.bf16.msra.mxu0 %v3049
    %3847 = vmatprep.subr.bf16.mxu0 %v3042
    %3848 = vmatpush2.bf16.msra.mxu0 %v3041
    %3849 = vmatprep.subr.bf16.mxu0 %v3034
    %3850 = vmatpush2.bf16.msra.mxu0 %v3033
    %3851 = vmatprep.mubr.bf16.mxu0 %v620
    %3852 = vmatmul.mubr.bf16.gmra.mxu0 %v619
    %v3853 = vpop.f32.mrf.mxu0
    %v3854 = vadd.f32 %v3813, %v3853
    %v3855 = vpop.f32.mrf.mxu0
    %v3856 = vadd.f32 %v3815, %v3855
    %v3857 = vpop.f32.mrf.mxu0
    %v3858 = vpop.f32.mrf.mxu0
    %3859 = vdwg.mxu0
    %3860 = vmatprep.subr.bf16.mxu0 %v3154
    %3861 = vmatpush1.bf16.msra.mxu0 %v3153
    %3862 = vmatprep.subr.bf16.mxu0 %v3146
    %3863 = vmatpush1.bf16.msra.mxu0 %v3145
    %3864 = vmatprep.subr.bf16.mxu0 %v3138
    %3865 = vmatpush1.bf16.msra.mxu0 %v3137
    %3866 = vmatprep.subr.bf16.mxu0 %v3130
    %3867 = vmatpush1.bf16.msra.mxu0 %v3129
    %3868 = vmatprep.subr.bf16.mxu0 %v3122
    %3869 = vmatpush1.bf16.msra.mxu0 %v3121
    %3870 = vmatprep.subr.bf16.mxu0 %v3114
    %3871 = vmatpush1.bf16.msra.mxu0 %v3113
    %3872 = vmatprep.subr.bf16.mxu0 %v3106
    %3873 = vmatpush1.bf16.msra.mxu0 %v3105
    %3874 = vmatprep.subr.bf16.mxu0 %v3098
    %3875 = vmatpush1.bf16.msra.mxu0 %v3097
    %3876 = vmatprep.subr.bf16.mxu0 %v3218
    %3877 = vmatpush2.bf16.msra.mxu0 %v3217
    %3878 = vmatprep.subr.bf16.mxu0 %v3210
    %3879 = vmatpush2.bf16.msra.mxu0 %v3209
    %3880 = vmatprep.subr.bf16.mxu0 %v3202
    %3881 = vmatpush2.bf16.msra.mxu0 %v3201
    %3882 = vmatprep.subr.bf16.mxu0 %v3194
    %3883 = vmatpush2.bf16.msra.mxu0 %v3193
    %3884 = vmatprep.subr.bf16.mxu0 %v3186
    %3885 = vmatpush2.bf16.msra.mxu0 %v3185
    %3886 = vmatprep.subr.bf16.mxu0 %v3178
    %3887 = vmatpush2.bf16.msra.mxu0 %v3177
    %3888 = vmatprep.subr.bf16.mxu0 %v3170
    %3889 = vmatpush2.bf16.msra.mxu0 %v3169
    %3890 = vmatprep.subr.bf16.mxu0 %v3162
    %3891 = vmatpush2.bf16.msra.mxu0 %v3161
    %3892 = vmatprep.mubr.bf16.mxu0 %v622
    %3893 = vmatmul.mubr.bf16.gmra.mxu0 %v621
    %v3894 = vpop.f32.mrf.mxu0
    %v3895 = vadd.f32 %v3854, %v3894
    %v3896 = vpop.f32.mrf.mxu0
    %v3897 = vadd.f32 %v3856, %v3896
    %v3898 = vpop.f32.mrf.mxu0
    %v3899 = vpop.f32.mrf.mxu0
    %3900 = vdwg.mxu0
    %3901 = vmatprep.subr.bf16.mxu0 %v2772
    %3902 = vmatpush1.bf16.msra.mxu0 %v2771
    %3903 = vmatprep.subr.bf16.mxu0 %v2764
    %3904 = vmatpush1.bf16.msra.mxu0 %v2763
    %3905 = vmatprep.subr.bf16.mxu0 %v2756
    %3906 = vmatpush1.bf16.msra.mxu0 %v2755
    %3907 = vmatprep.subr.bf16.mxu0 %v2748
    %3908 = vmatpush1.bf16.msra.mxu0 %v2747
    %3909 = vmatprep.subr.bf16.mxu0 %v2740
    %3910 = vmatpush1.bf16.msra.mxu0 %v2739
    %3911 = vmatprep.subr.bf16.mxu0 %v2732
    %3912 = vmatpush1.bf16.msra.mxu0 %v2731
    %3913 = vmatprep.subr.bf16.mxu0 %v2724
    %3914 = vmatpush1.bf16.msra.mxu0 %v2723
    %3915 = vmatprep.subr.bf16.mxu0 %v2716
    %3916 = vmatpush1.bf16.msra.mxu0 %v2715
    %3917 = vmatprep.subr.bf16.mxu0 %v2836
    %3918 = vmatpush2.bf16.msra.mxu0 %v2835
    %3919 = vmatprep.subr.bf16.mxu0 %v2828
    %3920 = vmatpush2.bf16.msra.mxu0 %v2827
    %3921 = vmatprep.subr.bf16.mxu0 %v2820
    %3922 = vmatpush2.bf16.msra.mxu0 %v2819
    %3923 = vmatprep.subr.bf16.mxu0 %v2812
    %3924 = vmatpush2.bf16.msra.mxu0 %v2811
    %3925 = vmatprep.subr.bf16.mxu0 %v2804
    %3926 = vmatpush2.bf16.msra.mxu0 %v2803
    %3927 = vmatprep.subr.bf16.mxu0 %v2796
    %3928 = vmatpush2.bf16.msra.mxu0 %v2795
    %3929 = vmatprep.subr.bf16.mxu0 %v2788
    %3930 = vmatpush2.bf16.msra.mxu0 %v2787
    %3931 = vmatprep.subr.bf16.mxu0 %v2780
    %3932 = vmatpush2.bf16.msra.mxu0 %v2779
    %3933 = vmatprep.mubr.bf16.mxu0 %v616
    %3934 = vmatmul.mubr.bf16.gmra.mxu0 %v615
    %v3935 = vpop.f32.mrf.mxu0
    %v3936 = vadd.f32 %v1148, %v3935
    %v3937 = vpop.f32.mrf.mxu0
    %v3938 = vadd.f32 %v1152, %v3937
    %v3939 = vpop.f32.mrf.mxu0
    %v3940 = vpop.f32.mrf.mxu0
    %3941 = vdwg.mxu0
    %3942 = vmatprep.subr.bf16.mxu0 %v2900
    %3943 = vmatpush1.bf16.msra.mxu0 %v2899
    %3944 = vmatprep.subr.bf16.mxu0 %v2892
    %3945 = vmatpush1.bf16.msra.mxu0 %v2891
    %3946 = vmatprep.subr.bf16.mxu0 %v2884
    %3947 = vmatpush1.bf16.msra.mxu0 %v2883
    %3948 = vmatprep.subr.bf16.mxu0 %v2876
    %3949 = vmatpush1.bf16.msra.mxu0 %v2875
    %3950 = vmatprep.subr.bf16.mxu0 %v2868
    %3951 = vmatpush1.bf16.msra.mxu0 %v2867
    %3952 = vmatprep.subr.bf16.mxu0 %v2860
    %3953 = vmatpush1.bf16.msra.mxu0 %v2859
    %3954 = vmatprep.subr.bf16.mxu0 %v2852
    %3955 = vmatpush1.bf16.msra.mxu0 %v2851
    %3956 = vmatprep.subr.bf16.mxu0 %v2844
    %3957 = vmatpush1.bf16.msra.mxu0 %v2843
    %3958 = vmatprep.subr.bf16.mxu0 %v2964
    %3959 = vmatpush2.bf16.msra.mxu0 %v2963
    %3960 = vmatprep.subr.bf16.mxu0 %v2956
    %3961 = vmatpush2.bf16.msra.mxu0 %v2955
    %3962 = vmatprep.subr.bf16.mxu0 %v2948
    %3963 = vmatpush2.bf16.msra.mxu0 %v2947
    %3964 = vmatprep.subr.bf16.mxu0 %v2940
    %3965 = vmatpush2.bf16.msra.mxu0 %v2939
    %3966 = vmatprep.subr.bf16.mxu0 %v2932
    %3967 = vmatpush2.bf16.msra.mxu0 %v2931
    %3968 = vmatprep.subr.bf16.mxu0 %v2924
    %3969 = vmatpush2.bf16.msra.mxu0 %v2923
    %3970 = vmatprep.subr.bf16.mxu0 %v2916
    %3971 = vmatpush2.bf16.msra.mxu0 %v2915
    %3972 = vmatprep.subr.bf16.mxu0 %v2908
    %3973 = vmatpush2.bf16.msra.mxu0 %v2907
    %3974 = vmatprep.mubr.bf16.mxu0 %v618
    %3975 = vmatmul.mubr.bf16.gmra.mxu0 %v617
    %v3976 = vpop.f32.mrf.mxu0
    %v3977 = vadd.f32 %v3936, %v3976
    %v3978 = vpop.f32.mrf.mxu0
    %v3979 = vadd.f32 %v3938, %v3978
    %v3980 = vpop.f32.mrf.mxu0
    %v3981 = vpop.f32.mrf.mxu0
    %3982 = vdwg.mxu0
    %3983 = vmatprep.subr.bf16.mxu0 %v3028
    %3984 = vmatpush1.bf16.msra.mxu0 %v3027
    %3985 = vmatprep.subr.bf16.mxu0 %v3020
    %3986 = vmatpush1.bf16.msra.mxu0 %v3019
    %3987 = vmatprep.subr.bf16.mxu0 %v3012
    %3988 = vmatpush1.bf16.msra.mxu0 %v3011
    %3989 = vmatprep.subr.bf16.mxu0 %v3004
    %3990 = vmatpush1.bf16.msra.mxu0 %v3003
    %3991 = vmatprep.subr.bf16.mxu0 %v2996
    %3992 = vmatpush1.bf16.msra.mxu0 %v2995
    %3993 = vmatprep.subr.bf16.mxu0 %v2988
    %3994 = vmatpush1.bf16.msra.mxu0 %v2987
    %3995 = vmatprep.subr.bf16.mxu0 %v2980
    %3996 = vmatpush1.bf16.msra.mxu0 %v2979
    %3997 = vmatprep.subr.bf16.mxu0 %v2972
    %3998 = vmatpush1.bf16.msra.mxu0 %v2971
    %3999 = vmatprep.subr.bf16.mxu0 %v3092
    %4000 = vmatpush2.bf16.msra.mxu0 %v3091
    %4001 = vmatprep.subr.bf16.mxu0 %v3084
    %4002 = vmatpush2.bf16.msra.mxu0 %v3083
    %4003 = vmatprep.subr.bf16.mxu0 %v3076
    %4004 = vmatpush2.bf16.msra.mxu0 %v3075
    %4005 = vmatprep.subr.bf16.mxu0 %v3068
    %4006 = vmatpush2.bf16.msra.mxu0 %v3067
    %4007 = vmatprep.subr.bf16.mxu0 %v3060
    %4008 = vmatpush2.bf16.msra.mxu0 %v3059
    %4009 = vmatprep.subr.bf16.mxu0 %v3052
    %4010 = vmatpush2.bf16.msra.mxu0 %v3051
    %4011 = vmatprep.subr.bf16.mxu0 %v3044
    %4012 = vmatpush2.bf16.msra.mxu0 %v3043
    %4013 = vmatprep.subr.bf16.mxu0 %v3036
    %4014 = vmatpush2.bf16.msra.mxu0 %v3035
    %4015 = vmatprep.mubr.bf16.mxu0 %v620
    %4016 = vmatmul.mubr.bf16.gmra.mxu0 %v619
    %v4017 = vpop.f32.mrf.mxu0
    %v4018 = vadd.f32 %v3977, %v4017
    %v4019 = vpop.f32.mrf.mxu0
    %v4020 = vadd.f32 %v3979, %v4019
    %v4021 = vpop.f32.mrf.mxu0
    %v4022 = vpop.f32.mrf.mxu0
    %4023 = vdwg.mxu0
    %4024 = vmatprep.subr.bf16.mxu0 %v3156
    %4025 = vmatpush1.bf16.msra.mxu0 %v3155
    %4026 = vmatprep.subr.bf16.mxu0 %v3148
    %4027 = vmatpush1.bf16.msra.mxu0 %v3147
    %4028 = vmatprep.subr.bf16.mxu0 %v3140
    %4029 = vmatpush1.bf16.msra.mxu0 %v3139
    %4030 = vmatprep.subr.bf16.mxu0 %v3132
    %4031 = vmatpush1.bf16.msra.mxu0 %v3131
    %4032 = vmatprep.subr.bf16.mxu0 %v3124
    %4033 = vmatpush1.bf16.msra.mxu0 %v3123
    %4034 = vmatprep.subr.bf16.mxu0 %v3116
    %4035 = vmatpush1.bf16.msra.mxu0 %v3115
    %4036 = vmatprep.subr.bf16.mxu0 %v3108
    %4037 = vmatpush1.bf16.msra.mxu0 %v3107
    %4038 = vmatprep.subr.bf16.mxu0 %v3100
    %4039 = vmatpush1.bf16.msra.mxu0 %v3099
    %4040 = vmatprep.subr.bf16.mxu0 %v3220
    %4041 = vmatpush2.bf16.msra.mxu0 %v3219
    %4042 = vmatprep.subr.bf16.mxu0 %v3212
    %4043 = vmatpush2.bf16.msra.mxu0 %v3211
    %4044 = vmatprep.subr.bf16.mxu0 %v3204
    %4045 = vmatpush2.bf16.msra.mxu0 %v3203
    %4046 = vmatprep.subr.bf16.mxu0 %v3196
    %4047 = vmatpush2.bf16.msra.mxu0 %v3195
    %4048 = vmatprep.subr.bf16.mxu0 %v3188
    %4049 = vmatpush2.bf16.msra.mxu0 %v3187
    %4050 = vmatprep.subr.bf16.mxu0 %v3180
    %4051 = vmatpush2.bf16.msra.mxu0 %v3179
    %4052 = vmatprep.subr.bf16.mxu0 %v3172
    %4053 = vmatpush2.bf16.msra.mxu0 %v3171
    %4054 = vmatprep.subr.bf16.mxu0 %v3164
    %4055 = vmatpush2.bf16.msra.mxu0 %v3163
    %4056 = vmatprep.mubr.bf16.mxu0 %v622
    %4057 = vmatmul.mubr.bf16.gmra.mxu0 %v621
    %v4058 = vpop.f32.mrf.mxu0
    %v4059 = vadd.f32 %v4018, %v4058
    %v4060 = vpop.f32.mrf.mxu0
    %v4061 = vadd.f32 %v4020, %v4060
    %v4062 = vpop.f32.mrf.mxu0
    %v4063 = vpop.f32.mrf.mxu0
    %4064 = vdwg.mxu0
    %4065 = vmatprep.subr.bf16.mxu0 %v2774
    %4066 = vmatpush1.bf16.msra.mxu0 %v2773
    %4067 = vmatprep.subr.bf16.mxu0 %v2766
    %4068 = vmatpush1.bf16.msra.mxu0 %v2765
    %4069 = vmatprep.subr.bf16.mxu0 %v2758
    %4070 = vmatpush1.bf16.msra.mxu0 %v2757
    %4071 = vmatprep.subr.bf16.mxu0 %v2750
    %4072 = vmatpush1.bf16.msra.mxu0 %v2749
    %4073 = vmatprep.subr.bf16.mxu0 %v2742
    %4074 = vmatpush1.bf16.msra.mxu0 %v2741
    %4075 = vmatprep.subr.bf16.mxu0 %v2734
    %4076 = vmatpush1.bf16.msra.mxu0 %v2733
    %4077 = vmatprep.subr.bf16.mxu0 %v2726
    %4078 = vmatpush1.bf16.msra.mxu0 %v2725
    %4079 = vmatprep.subr.bf16.mxu0 %v2718
    %4080 = vmatpush1.bf16.msra.mxu0 %v2717
    %4081 = vmatprep.subr.bf16.mxu0 %v2838
    %4082 = vmatpush2.bf16.msra.mxu0 %v2837
    %4083 = vmatprep.subr.bf16.mxu0 %v2830
    %4084 = vmatpush2.bf16.msra.mxu0 %v2829
    %4085 = vmatprep.subr.bf16.mxu0 %v2822
    %4086 = vmatpush2.bf16.msra.mxu0 %v2821
    %4087 = vmatprep.subr.bf16.mxu0 %v2814
    %4088 = vmatpush2.bf16.msra.mxu0 %v2813
    %4089 = vmatprep.subr.bf16.mxu0 %v2806
    %4090 = vmatpush2.bf16.msra.mxu0 %v2805
    %4091 = vmatprep.subr.bf16.mxu0 %v2798
    %4092 = vmatpush2.bf16.msra.mxu0 %v2797
    %4093 = vmatprep.subr.bf16.mxu0 %v2790
    %4094 = vmatpush2.bf16.msra.mxu0 %v2789
    %4095 = vmatprep.subr.bf16.mxu0 %v2782
    %4096 = vmatpush2.bf16.msra.mxu0 %v2781
    %4097 = vmatprep.mubr.bf16.mxu0 %v616
    %4098 = vmatmul.mubr.bf16.gmra.mxu0 %v615
    %v4099 = vpop.f32.mrf.mxu0
    %v4100 = vadd.f32 %v1156, %v4099
    %v4101 = vpop.f32.mrf.mxu0
    %v4102 = vadd.f32 %v1160, %v4101
    %v4103 = vpop.f32.mrf.mxu0
    %v4104 = vpop.f32.mrf.mxu0
    %4105 = vdwg.mxu0
    %4106 = vmatprep.subr.bf16.mxu0 %v2902
    %4107 = vmatpush1.bf16.msra.mxu0 %v2901
    %4108 = vmatprep.subr.bf16.mxu0 %v2894
    %4109 = vmatpush1.bf16.msra.mxu0 %v2893
    %4110 = vmatprep.subr.bf16.mxu0 %v2886
    %4111 = vmatpush1.bf16.msra.mxu0 %v2885
    %4112 = vmatprep.subr.bf16.mxu0 %v2878
    %4113 = vmatpush1.bf16.msra.mxu0 %v2877
    %4114 = vmatprep.subr.bf16.mxu0 %v2870
    %4115 = vmatpush1.bf16.msra.mxu0 %v2869
    %4116 = vmatprep.subr.bf16.mxu0 %v2862
    %4117 = vmatpush1.bf16.msra.mxu0 %v2861
    %4118 = vmatprep.subr.bf16.mxu0 %v2854
    %4119 = vmatpush1.bf16.msra.mxu0 %v2853
    %4120 = vmatprep.subr.bf16.mxu0 %v2846
    %4121 = vmatpush1.bf16.msra.mxu0 %v2845
    %4122 = vmatprep.subr.bf16.mxu0 %v2966
    %4123 = vmatpush2.bf16.msra.mxu0 %v2965
    %4124 = vmatprep.subr.bf16.mxu0 %v2958
    %4125 = vmatpush2.bf16.msra.mxu0 %v2957
    %4126 = vmatprep.subr.bf16.mxu0 %v2950
    %4127 = vmatpush2.bf16.msra.mxu0 %v2949
    %4128 = vmatprep.subr.bf16.mxu0 %v2942
    %4129 = vmatpush2.bf16.msra.mxu0 %v2941
    %4130 = vmatprep.subr.bf16.mxu0 %v2934
    %4131 = vmatpush2.bf16.msra.mxu0 %v2933
    %4132 = vmatprep.subr.bf16.mxu0 %v2926
    %4133 = vmatpush2.bf16.msra.mxu0 %v2925
    %4134 = vmatprep.subr.bf16.mxu0 %v2918
    %4135 = vmatpush2.bf16.msra.mxu0 %v2917
    %4136 = vmatprep.subr.bf16.mxu0 %v2910
    %4137 = vmatpush2.bf16.msra.mxu0 %v2909
    %4138 = vmatprep.mubr.bf16.mxu0 %v618
    %4139 = vmatmul.mubr.bf16.gmra.mxu0 %v617
    %v4140 = vpop.f32.mrf.mxu0
    %v4141 = vadd.f32 %v4100, %v4140
    %v4142 = vpop.f32.mrf.mxu0
    %v4143 = vadd.f32 %v4102, %v4142
    %v4144 = vpop.f32.mrf.mxu0
    %v4145 = vpop.f32.mrf.mxu0
    %4146 = vdwg.mxu0
    %4147 = vmatprep.subr.bf16.mxu0 %v3030
    %4148 = vmatpush1.bf16.msra.mxu0 %v3029
    %4149 = vmatprep.subr.bf16.mxu0 %v3022
    %4150 = vmatpush1.bf16.msra.mxu0 %v3021
    %4151 = vmatprep.subr.bf16.mxu0 %v3014
    %4152 = vmatpush1.bf16.msra.mxu0 %v3013
    %4153 = vmatprep.subr.bf16.mxu0 %v3006
    %4154 = vmatpush1.bf16.msra.mxu0 %v3005
    %4155 = vmatprep.subr.bf16.mxu0 %v2998
    %4156 = vmatpush1.bf16.msra.mxu0 %v2997
    %4157 = vmatprep.subr.bf16.mxu0 %v2990
    %4158 = vmatpush1.bf16.msra.mxu0 %v2989
    %4159 = vmatprep.subr.bf16.mxu0 %v2982
    %4160 = vmatpush1.bf16.msra.mxu0 %v2981
    %4161 = vmatprep.subr.bf16.mxu0 %v2974
    %4162 = vmatpush1.bf16.msra.mxu0 %v2973
    %4163 = vmatprep.subr.bf16.mxu0 %v3094
    %4164 = vmatpush2.bf16.msra.mxu0 %v3093
    %4165 = vmatprep.subr.bf16.mxu0 %v3086
    %4166 = vmatpush2.bf16.msra.mxu0 %v3085
    %4167 = vmatprep.subr.bf16.mxu0 %v3078
    %4168 = vmatpush2.bf16.msra.mxu0 %v3077
    %4169 = vmatprep.subr.bf16.mxu0 %v3070
    %4170 = vmatpush2.bf16.msra.mxu0 %v3069
    %4171 = vmatprep.subr.bf16.mxu0 %v3062
    %4172 = vmatpush2.bf16.msra.mxu0 %v3061
    %4173 = vmatprep.subr.bf16.mxu0 %v3054
    %4174 = vmatpush2.bf16.msra.mxu0 %v3053
    %4175 = vmatprep.subr.bf16.mxu0 %v3046
    %4176 = vmatpush2.bf16.msra.mxu0 %v3045
    %4177 = vmatprep.subr.bf16.mxu0 %v3038
    %4178 = vmatpush2.bf16.msra.mxu0 %v3037
    %4179 = vmatprep.mubr.bf16.mxu0 %v620
    %4180 = vmatmul.mubr.bf16.gmra.mxu0 %v619
    %v4181 = vpop.f32.mrf.mxu0
    %v4182 = vadd.f32 %v4141, %v4181
    %v4183 = vpop.f32.mrf.mxu0
    %v4184 = vadd.f32 %v4143, %v4183
    %v4185 = vpop.f32.mrf.mxu0
    %v4186 = vpop.f32.mrf.mxu0
    %4187 = vdwg.mxu0
    %4188 = vmatprep.subr.bf16.mxu0 %v3158
    %4189 = vmatpush1.bf16.msra.mxu0 %v3157
    %4190 = vmatprep.subr.bf16.mxu0 %v3150
    %4191 = vmatpush1.bf16.msra.mxu0 %v3149
    %4192 = vmatprep.subr.bf16.mxu0 %v3142
    %4193 = vmatpush1.bf16.msra.mxu0 %v3141
    %4194 = vmatprep.subr.bf16.mxu0 %v3134
    %4195 = vmatpush1.bf16.msra.mxu0 %v3133
    %4196 = vmatprep.subr.bf16.mxu0 %v3126
    %4197 = vmatpush1.bf16.msra.mxu0 %v3125
    %4198 = vmatprep.subr.bf16.mxu0 %v3118
    %4199 = vmatpush1.bf16.msra.mxu0 %v3117
    %4200 = vmatprep.subr.bf16.mxu0 %v3110
    %4201 = vmatpush1.bf16.msra.mxu0 %v3109
    %4202 = vmatprep.subr.bf16.mxu0 %v3102
    %4203 = vmatpush1.bf16.msra.mxu0 %v3101
    %4204 = vmatprep.subr.bf16.mxu0 %v3222
    %4205 = vmatpush2.bf16.msra.mxu0 %v3221
    %4206 = vmatprep.subr.bf16.mxu0 %v3214
    %4207 = vmatpush2.bf16.msra.mxu0 %v3213
    %4208 = vmatprep.subr.bf16.mxu0 %v3206
    %4209 = vmatpush2.bf16.msra.mxu0 %v3205
    %4210 = vmatprep.subr.bf16.mxu0 %v3198
    %4211 = vmatpush2.bf16.msra.mxu0 %v3197
    %4212 = vmatprep.subr.bf16.mxu0 %v3190
    %4213 = vmatpush2.bf16.msra.mxu0 %v3189
    %4214 = vmatprep.subr.bf16.mxu0 %v3182
    %4215 = vmatpush2.bf16.msra.mxu0 %v3181
    %4216 = vmatprep.subr.bf16.mxu0 %v3174
    %4217 = vmatpush2.bf16.msra.mxu0 %v3173
    %4218 = vmatprep.subr.bf16.mxu0 %v3166
    %4219 = vmatpush2.bf16.msra.mxu0 %v3165
    %4220 = vmatprep.mubr.bf16.mxu0 %v622
    %4221 = vmatmul.mubr.bf16.gmra.mxu0 %v621
    %v4222 = vpop.f32.mrf.mxu0
    %v4223 = vadd.f32 %v4182, %v4222
    %v4224 = vpop.f32.mrf.mxu0
    %v4225 = vadd.f32 %v4184, %v4224
    %v4226 = vpop.f32.mrf.mxu0
    %v4227 = vpop.f32.mrf.mxu0
    %4228 = vdwg.mxu0
    %4229 = vmatprep.subr.bf16.mxu0 %v2776
    %4230 = vmatpush1.bf16.msra.mxu0 %v2775
    %4231 = vmatprep.subr.bf16.mxu0 %v2768
    %4232 = vmatpush1.bf16.msra.mxu0 %v2767
    %4233 = vmatprep.subr.bf16.mxu0 %v2760
    %4234 = vmatpush1.bf16.msra.mxu0 %v2759
    %4235 = vmatprep.subr.bf16.mxu0 %v2752
    %4236 = vmatpush1.bf16.msra.mxu0 %v2751
    %4237 = vmatprep.subr.bf16.mxu0 %v2744
    %4238 = vmatpush1.bf16.msra.mxu0 %v2743
    %4239 = vmatprep.subr.bf16.mxu0 %v2736
    %4240 = vmatpush1.bf16.msra.mxu0 %v2735
    %4241 = vmatprep.subr.bf16.mxu0 %v2728
    %4242 = vmatpush1.bf16.msra.mxu0 %v2727
    %4243 = vmatprep.subr.bf16.mxu0 %v2720
    %4244 = vmatpush1.bf16.msra.mxu0 %v2719
    %4245 = vmatprep.subr.bf16.mxu0 %v2840
    %4246 = vmatpush2.bf16.msra.mxu0 %v2839
    %4247 = vmatprep.subr.bf16.mxu0 %v2832
    %4248 = vmatpush2.bf16.msra.mxu0 %v2831
    %4249 = vmatprep.subr.bf16.mxu0 %v2824
    %4250 = vmatpush2.bf16.msra.mxu0 %v2823
    %4251 = vmatprep.subr.bf16.mxu0 %v2816
    %4252 = vmatpush2.bf16.msra.mxu0 %v2815
    %4253 = vmatprep.subr.bf16.mxu0 %v2808
    %4254 = vmatpush2.bf16.msra.mxu0 %v2807
    %4255 = vmatprep.subr.bf16.mxu0 %v2800
    %4256 = vmatpush2.bf16.msra.mxu0 %v2799
    %4257 = vmatprep.subr.bf16.mxu0 %v2792
    %4258 = vmatpush2.bf16.msra.mxu0 %v2791
    %4259 = vmatprep.subr.bf16.mxu0 %v2784
    %4260 = vmatpush2.bf16.msra.mxu0 %v2783
    %4261 = vmatprep.mubr.bf16.mxu0 %v616
    %4262 = vmatmul.mubr.bf16.gmra.mxu0 %v615
    %v4263 = vpop.f32.mrf.mxu0
    %v4264 = vadd.f32 %v1164, %v4263
    %v4265 = vpop.f32.mrf.mxu0
    %v4266 = vadd.f32 %v1168, %v4265
    %v4267 = vpop.f32.mrf.mxu0
    %v4268 = vpop.f32.mrf.mxu0
    %4269 = vdwg.mxu0
    %4270 = vmatprep.subr.bf16.mxu0 %v2904
    %4271 = vmatpush1.bf16.msra.mxu0 %v2903
    %4272 = vmatprep.subr.bf16.mxu0 %v2896
    %4273 = vmatpush1.bf16.msra.mxu0 %v2895
    %4274 = vmatprep.subr.bf16.mxu0 %v2888
    %4275 = vmatpush1.bf16.msra.mxu0 %v2887
    %4276 = vmatprep.subr.bf16.mxu0 %v2880
    %4277 = vmatpush1.bf16.msra.mxu0 %v2879
    %4278 = vmatprep.subr.bf16.mxu0 %v2872
    %4279 = vmatpush1.bf16.msra.mxu0 %v2871
    %4280 = vmatprep.subr.bf16.mxu0 %v2864
    %4281 = vmatpush1.bf16.msra.mxu0 %v2863
    %4282 = vmatprep.subr.bf16.mxu0 %v2856
    %4283 = vmatpush1.bf16.msra.mxu0 %v2855
    %4284 = vmatprep.subr.bf16.mxu0 %v2848
    %4285 = vmatpush1.bf16.msra.mxu0 %v2847
    %4286 = vmatprep.subr.bf16.mxu0 %v2968
    %4287 = vmatpush2.bf16.msra.mxu0 %v2967
    %4288 = vmatprep.subr.bf16.mxu0 %v2960
    %4289 = vmatpush2.bf16.msra.mxu0 %v2959
    %4290 = vmatprep.subr.bf16.mxu0 %v2952
    %4291 = vmatpush2.bf16.msra.mxu0 %v2951
    %4292 = vmatprep.subr.bf16.mxu0 %v2944
    %4293 = vmatpush2.bf16.msra.mxu0 %v2943
    %4294 = vmatprep.subr.bf16.mxu0 %v2936
    %4295 = vmatpush2.bf16.msra.mxu0 %v2935
    %4296 = vmatprep.subr.bf16.mxu0 %v2928
    %4297 = vmatpush2.bf16.msra.mxu0 %v2927
    %4298 = vmatprep.subr.bf16.mxu0 %v2920
    %4299 = vmatpush2.bf16.msra.mxu0 %v2919
    %4300 = vmatprep.subr.bf16.mxu0 %v2912
    %4301 = vmatpush2.bf16.msra.mxu0 %v2911
    %4302 = vmatprep.mubr.bf16.mxu0 %v618
    %4303 = vmatmul.mubr.bf16.gmra.mxu0 %v617
    %v4304 = vpop.f32.mrf.mxu0
    %v4305 = vadd.f32 %v4264, %v4304
    %v4306 = vpop.f32.mrf.mxu0
    %v4307 = vadd.f32 %v4266, %v4306
    %v4308 = vpop.f32.mrf.mxu0
    %v4309 = vpop.f32.mrf.mxu0
    %4310 = vdwg.mxu0
    %4311 = vmatprep.subr.bf16.mxu0 %v3032
    %4312 = vmatpush1.bf16.msra.mxu0 %v3031
    %4313 = vmatprep.subr.bf16.mxu0 %v3024
    %4314 = vmatpush1.bf16.msra.mxu0 %v3023
    %4315 = vmatprep.subr.bf16.mxu0 %v3016
    %4316 = vmatpush1.bf16.msra.mxu0 %v3015
    %4317 = vmatprep.subr.bf16.mxu0 %v3008
    %4318 = vmatpush1.bf16.msra.mxu0 %v3007
    %4319 = vmatprep.subr.bf16.mxu0 %v3000
    %4320 = vmatpush1.bf16.msra.mxu0 %v2999
    %4321 = vmatprep.subr.bf16.mxu0 %v2992
    %4322 = vmatpush1.bf16.msra.mxu0 %v2991
    %4323 = vmatprep.subr.bf16.mxu0 %v2984
    %4324 = vmatpush1.bf16.msra.mxu0 %v2983
    %4325 = vmatprep.subr.bf16.mxu0 %v2976
    %4326 = vmatpush1.bf16.msra.mxu0 %v2975
    %4327 = vmatprep.subr.bf16.mxu0 %v3096
    %4328 = vmatpush2.bf16.msra.mxu0 %v3095
    %4329 = vmatprep.subr.bf16.mxu0 %v3088
    %4330 = vmatpush2.bf16.msra.mxu0 %v3087
    %4331 = vmatprep.subr.bf16.mxu0 %v3080
    %4332 = vmatpush2.bf16.msra.mxu0 %v3079
    %4333 = vmatprep.subr.bf16.mxu0 %v3072
    %4334 = vmatpush2.bf16.msra.mxu0 %v3071
    %4335 = vmatprep.subr.bf16.mxu0 %v3064
    %4336 = vmatpush2.bf16.msra.mxu0 %v3063
    %4337 = vmatprep.subr.bf16.mxu0 %v3056
    %4338 = vmatpush2.bf16.msra.mxu0 %v3055
    %4339 = vmatprep.subr.bf16.mxu0 %v3048
    %4340 = vmatpush2.bf16.msra.mxu0 %v3047
    %4341 = vmatprep.subr.bf16.mxu0 %v3040
    %4342 = vmatpush2.bf16.msra.mxu0 %v3039
    %4343 = vmatprep.mubr.bf16.mxu0 %v620
    %4344 = vmatmul.mubr.bf16.gmra.mxu0 %v619
    %v4345 = vpop.f32.mrf.mxu0
    %v4346 = vadd.f32 %v4305, %v4345
    %v4347 = vpop.f32.mrf.mxu0
    %v4348 = vadd.f32 %v4307, %v4347
    %v4349 = vpop.f32.mrf.mxu0
    %v4350 = vpop.f32.mrf.mxu0
    %4351 = vdwg.mxu0
    %4352 = vmatprep.subr.bf16.mxu0 %v3160
    %4353 = vmatpush1.bf16.msra.mxu0 %v3159
    %4354 = vmatprep.subr.bf16.mxu0 %v3152
    %4355 = vmatpush1.bf16.msra.mxu0 %v3151
    %4356 = vmatprep.subr.bf16.mxu0 %v3144
    %4357 = vmatpush1.bf16.msra.mxu0 %v3143
    %4358 = vmatprep.subr.bf16.mxu0 %v3136
    %4359 = vmatpush1.bf16.msra.mxu0 %v3135
    %4360 = vmatprep.subr.bf16.mxu0 %v3128
    %4361 = vmatpush1.bf16.msra.mxu0 %v3127
    %4362 = vmatprep.subr.bf16.mxu0 %v3120
    %4363 = vmatpush1.bf16.msra.mxu0 %v3119
    %4364 = vmatprep.subr.bf16.mxu0 %v3112
    %4365 = vmatpush1.bf16.msra.mxu0 %v3111
    %4366 = vmatprep.subr.bf16.mxu0 %v3104
    %4367 = vmatpush1.bf16.msra.mxu0 %v3103
    %4368 = vmatprep.subr.bf16.mxu0 %v3224
    %4369 = vmatpush2.bf16.msra.mxu0 %v3223
    %4370 = vmatprep.subr.bf16.mxu0 %v3216
    %4371 = vmatpush2.bf16.msra.mxu0 %v3215
    %4372 = vmatprep.subr.bf16.mxu0 %v3208
    %4373 = vmatpush2.bf16.msra.mxu0 %v3207
    %4374 = vmatprep.subr.bf16.mxu0 %v3200
    %4375 = vmatpush2.bf16.msra.mxu0 %v3199
    %4376 = vmatprep.subr.bf16.mxu0 %v3192
    %4377 = vmatpush2.bf16.msra.mxu0 %v3191
    %4378 = vmatprep.subr.bf16.mxu0 %v3184
    %4379 = vmatpush2.bf16.msra.mxu0 %v3183
    %4380 = vmatprep.subr.bf16.mxu0 %v3176
    %4381 = vmatpush2.bf16.msra.mxu0 %v3175
    %4382 = vmatprep.subr.bf16.mxu0 %v3168
    %4383 = vmatpush2.bf16.msra.mxu0 %v3167
    %4384 = vmatprep.mubr.bf16.mxu0 %v622
    %4385 = vmatmul.mubr.bf16.gmra.mxu0 %v621
    %v4386 = vpop.f32.mrf.mxu0
    %v4387 = vadd.f32 %v4346, %v4386
    %v4388 = vpop.f32.mrf.mxu0
    %v4389 = vadd.f32 %v4348, %v4388
    %v4390 = vpop.f32.mrf.mxu0
    %v4391 = vpop.f32.mrf.mxu0
    %4392 = vdwg.mxu0
    %v4393 = vmul.f32 %v3895, %v3895
    %v4394 = vmul.f32 %v3897, %v3897
    %v4395 = vmul.f32 %v4059, %v4059
    %v4396 = vmul.f32 %v4061, %v4061
    %v4397 = vmul.f32 %v4223, %v4223
    %v4398 = vmul.f32 %v4225, %v4225
    %v4399 = vmul.f32 %v4387, %v4387
    %v4400 = vmul.f32 %v4389, %v4389
    %vm4401 = vcmask 1041408
    %v4402 = vsel %vm4401, %v4393, 0.0
    %v4403 = vsel %vm4401, %v4394, 0.0
    %v4404 = vadd.f32 %v4402, %v4403
    %v4405 = vsel %vm4401, %v4395, 0.0
    %v4406 = vadd.f32 %v4404, %v4405
    %v4407 = vsel %vm4401, %v4396, 0.0
    %v4408 = vadd.f32 %v4406, %v4407
    %v4409 = vsel %vm4401, %v4397, 0.0
    %v4410 = vadd.f32 %v4408, %v4409
    %v4411 = vsel %vm4401, %v4398, 0.0
    %v4412 = vadd.f32 %v4410, %v4411
    %v4413 = vsel %vm4401, %v4399, 0.0
    %v4414 = vadd.f32 %v4412, %v4413
    %v4415 = vsel %vm4401, %v4400, 0.0
    %v4416 = vadd.f32 %v4414, %v4415
    %4417 = vadd.xlane.f32.xlu0 %v4416
    %v4418 = vpop.xlane.xlu0 %4417
    %v4419 = vmax.f32 %v4418, 1e-24
    %v4420 = vrsqrt.pop %v4419
    %v4421 = vmul.f32 %v3895, %v4420
    %v4422 = vmul.f32 %v3897, %v4420
    %v4423 = vmul.f32 %v4059, %v4420
    %v4424 = vmul.f32 %v4061, %v4420
    %v4425 = vmul.f32 %v4223, %v4420
    %v4426 = vmul.f32 %v4225, %v4420
    %v4427 = vmul.f32 %v4387, %v4420
    %v4428 = vmul.f32 %v4389, %v4420
    %v4437 = vcombine.low %v4421, %v4422
    %v4438 = vcombine.low %v4423, %v4424
    %v4440 = vunpack.c.l.s4 1983009808
    %v4441 = vunpack.c.0.s8 %v4440
    %v4442 = vlaneseq
    %v4443 = vshrl.u32 %v4442, 7
    %v4444 = vsub.s32 %v4441, %v4443
    %v4445 = vrot.slane %v4437, %v4444
    %v4447 = vunpack.c.l.s4 1983009808
    %v4448 = vunpack.c.0.s8 %v4447
    %v4449 = vlaneseq
    %v4450 = vshrl.u32 %v4449, 7
    %v4451 = vsub.s32 %v4448, %v4450
    %v4452 = vrot.slane %v4438, %v4451
    %v4453 = vcombine.low %v4445, %v4452
    %v4454 = vcombine.low %v4425, %v4426
    %v4455 = vcombine.low %v4427, %v4428
    %v4457 = vunpack.c.l.s4 1983009808
    %v4458 = vunpack.c.0.s8 %v4457
    %v4459 = vlaneseq
    %v4460 = vshrl.u32 %v4459, 7
    %v4461 = vsub.s32 %v4458, %v4460
    %v4462 = vrot.slane %v4454, %v4461
    %v4464 = vunpack.c.l.s4 1983009808
    %v4465 = vunpack.c.0.s8 %v4464
    %v4466 = vlaneseq
    %v4467 = vshrl.u32 %v4466, 7
    %v4468 = vsub.s32 %v4465, %v4467
    %v4469 = vrot.slane %v4455, %v4468
    %v4470 = vcombine.low %v4462, %v4469
    %4473 = vst [vmem:[#allocation2] sm:$0xff] %v4453
    %4474 = vst [vmem:[#allocation2 + $0x8] sm:$0xff] %v4470
    // Predicated region
    $region22: #{forward.5} parent=1 // pred_check
      _
    $region23: #{forward.5} parent=1 // pred_check_branch
      %4476 = sbr.rel (0) target = $region25
    $region24: #{forward.5} parent=1 // pred_region
      %s4478 = ssub.s32 256, 256
      %4479 = vsyncadd [#allocation3], %s4478
      %s4481 = sshll.u32 [#allocation2], 4
      %s4482 = int_to_ptr.vmem [resolvable:$true] %s4481
      %4484 = dma.vmem_to_hbm [thread:$0]  %s4482, 256, %s5, [#allocation3]
    $region25: #{forward.5} parent=1 // pred_fallthru
      _
    // Predicated region
    $region26: #{forward.5} parent=1 // pred_check
      _
    $region27: #{forward.5} parent=1 // pred_check_branch
      %4486 = sbr.rel (0) target = $region29
    $region28: #{forward.5} parent=1 // pred_region
      %4487 = dma.done [#allocation3], 256
    $region29: #{forward.5} parent=1 // pred_fallthru
      _
    %4488 = vsyncpa [#allocation3], 1

// kernel: forward.7
$region0: #{forward.7}
  #allocation0 [shape = 'u32[]', space=smem, size = 0x4, offset = 0x4, fixed_abs, tag = 'smem constant byte address 0x4 - core index']
  #allocation1 [shape = 'u32[144,128]{1,0:T(1,128)}', space=vmem, size = 0x12000, scoped, tag = 'internal scratch']
  %s0 = inlined_call_operand.vmem [shape: f32[2,128], index: 0, kind: input, shape index: {}]
  %s1 = inlined_call_operand.vmem [shape: bf16[128,1024], index: 1, kind: input, shape index: {}]
  %s2 = inlined_call_operand.vmem [shape: f32[1,1024], index: 2, kind: input, shape index: {}]
  %s3 = inlined_call_operand.hbm [shape: f32[2,1024], index: 3, kind: output, shape index: {}]
  %s4 = sld [smem:[#allocation0]]
  $region22: #{forward.7} parent=0
    _
  %s6 = ssub.s32 1, %s4
  %s7 = scalar_select 0, %s6, %s4
  $region1: #{forward.7} parent=0
    #allocation2 [shape = 'u8[8192]{0}', space=vmem, size = 0x2000, scoped, tag = 'output window, operand 0, single buffered']
    #allocation3 [shape = 's32[1]{0}', space=sflag, size = 0x4, scoped, tag = 'scoped memory for forward.7']
    %8 = vsyncpa [#allocation3], 0
    // Predicated region
    $region2: #{forward.7} parent=1 // pred_check
      _
    $region3: #{forward.7} parent=1 // pred_check_branch
      %10 = sbr.rel (0) target = $region5
    $region4: #{forward.7} parent=1 // pred_region
      _
    $region5: #{forward.7} parent=1 // pred_fallthru
      _
    // Predicated region
    $region6: #{forward.7} parent=1 // pred_check
      _
    $region7: #{forward.7} parent=1 // pred_check_branch
      %12 = sbr.rel (0) target = $region9
    $region8: #{forward.7} parent=1 // pred_region
      _
    $region9: #{forward.7} parent=1 // pred_fallthru
      _
    // Predicated region
    $region10: #{forward.7} parent=1 // pred_check
      _
    $region11: #{forward.7} parent=1 // pred_check_branch
      %14 = sbr.rel (0) target = $region13
    $region12: #{forward.7} parent=1 // pred_region
      _
    $region13: #{forward.7} parent=1 // pred_fallthru
      _
    %v16 = vld [vmem:[%s0] sm:$0x3]
    %v17 = vmul.f32 %v16, 0.015625
    %v18 = vpack.c.bf16 %v17, %v17
    %v19 = vld [vmem:[%s1] sm:$0xff]
    %v20 = vld [vmem:[%s1 + $0x8] sm:$0xff]
    %v21 = vld [vmem:[%s1 + $0x10] sm:$0xff]
    %v22 = vld [vmem:[%s1 + $0x18] sm:$0xff]
    %v23 = vld [vmem:[%s1 + $0x20] sm:$0xff]
    %v24 = vld [vmem:[%s1 + $0x28] sm:$0xff]
    %v25 = vld [vmem:[%s1 + $0x30] sm:$0xff]
    %v26 = vld [vmem:[%s1 + $0x38] sm:$0xff]
    %v27 = vld [vmem:[%s1 + $0x40] sm:$0xff]
    %v28 = vld [vmem:[%s1 + $0x48] sm:$0xff]
    %v29 = vld [vmem:[%s1 + $0x50] sm:$0xff]
    %v30 = vld [vmem:[%s1 + $0x58] sm:$0xff]
    %v31 = vld [vmem:[%s1 + $0x60] sm:$0xff]
    %v32 = vld [vmem:[%s1 + $0x68] sm:$0xff]
    %v33 = vld [vmem:[%s1 + $0x70] sm:$0xff]
    %v34 = vld [vmem:[%s1 + $0x78] sm:$0xff]
    %v35 = vld [vmem:[%s1 + $0x80] sm:$0xff]
    %v36 = vld [vmem:[%s1 + $0x88] sm:$0xff]
    %v37 = vld [vmem:[%s1 + $0x90] sm:$0xff]
    %v38 = vld [vmem:[%s1 + $0x98] sm:$0xff]
    %v39 = vld [vmem:[%s1 + $0xa0] sm:$0xff]
    %v40 = vld [vmem:[%s1 + $0xa8] sm:$0xff]
    %v41 = vld [vmem:[%s1 + $0xb0] sm:$0xff]
    %v42 = vld [vmem:[%s1 + $0xb8] sm:$0xff]
    %v43 = vld [vmem:[%s1 + $0xc0] sm:$0xff]
    %v44 = vld [vmem:[%s1 + $0xc8] sm:$0xff]
    %v45 = vld [vmem:[%s1 + $0xd0] sm:$0xff]
    %v46 = vld [vmem:[%s1 + $0xd8] sm:$0xff]
    %v47 = vld [vmem:[%s1 + $0xe0] sm:$0xff]
    %v48 = vld [vmem:[%s1 + $0xe8] sm:$0xff]
    %v49 = vld [vmem:[%s1 + $0xf0] sm:$0xff]
    %v50 = vld [vmem:[%s1 + $0xf8] sm:$0xff]
    %v51 = vld [vmem:[%s1 + $0x100] sm:$0xff]
    %v52 = vld [vmem:[%s1 + $0x108] sm:$0xff]
    %v53 = vld [vmem:[%s1 + $0x110] sm:$0xff]
    %v54 = vld [vmem:[%s1 + $0x118] sm:$0xff]
    %v55 = vld [vmem:[%s1 + $0x120] sm:$0xff]
    %v56 = vld [vmem:[%s1 + $0x128] sm:$0xff]
    %v57 = vld [vmem:[%s1 + $0x130] sm:$0xff]
    %v58 = vld [vmem:[%s1 + $0x138] sm:$0xff]
    %v59 = vld [vmem:[%s1 + $0x140] sm:$0xff]
    %v60 = vld [vmem:[%s1 + $0x148] sm:$0xff]
    %v61 = vld [vmem:[%s1 + $0x150] sm:$0xff]
    %v62 = vld [vmem:[%s1 + $0x158] sm:$0xff]
    %v63 = vld [vmem:[%s1 + $0x160] sm:$0xff]
    %v64 = vld [vmem:[%s1 + $0x168] sm:$0xff]
    %v65 = vld [vmem:[%s1 + $0x170] sm:$0xff]
    %v66 = vld [vmem:[%s1 + $0x178] sm:$0xff]
    %v67 = vld [vmem:[%s1 + $0x180] sm:$0xff]
    %v68 = vld [vmem:[%s1 + $0x188] sm:$0xff]
    %v69 = vld [vmem:[%s1 + $0x190] sm:$0xff]
    %v70 = vld [vmem:[%s1 + $0x198] sm:$0xff]
    %v71 = vld [vmem:[%s1 + $0x1a0] sm:$0xff]
    %v72 = vld [vmem:[%s1 + $0x1a8] sm:$0xff]
    %v73 = vld [vmem:[%s1 + $0x1b0] sm:$0xff]
    %v74 = vld [vmem:[%s1 + $0x1b8] sm:$0xff]
    %v75 = vld [vmem:[%s1 + $0x1c0] sm:$0xff]
    %v76 = vld [vmem:[%s1 + $0x1c8] sm:$0xff]
    %v77 = vld [vmem:[%s1 + $0x1d0] sm:$0xff]
    %v78 = vld [vmem:[%s1 + $0x1d8] sm:$0xff]
    %v79 = vld [vmem:[%s1 + $0x1e0] sm:$0xff]
    %v80 = vld [vmem:[%s1 + $0x1e8] sm:$0xff]
    %v81 = vld [vmem:[%s1 + $0x1f0] sm:$0xff]
    %v82 = vld [vmem:[%s1 + $0x1f8] sm:$0xff]
    %v83 = vld [vmem:[%s2] sm:$0xff]
    %v85 = vlaneseq
    %v86 = vshrl.u32 %v85, 7
    %v87 = vsub.s32 0, %v86
    %v88 = vrot.slane %v83, %v87
    %v89 = vlaneseq
    %v90 = vshrl.u32 %v89, 7
    %v91 = vsub.s32 1, %v90
    %v92 = vrot.slane %v83, %v91
    %v93 = vlaneseq
    %v94 = vshrl.u32 %v93, 7
    %v95 = vsub.s32 2, %v94
    %v96 = vrot.slane %v83, %v95
    %v97 = vlaneseq
    %v98 = vshrl.u32 %v97, 7
    %v99 = vsub.s32 3, %v98
    %v100 = vrot.slane %v83, %v99
    %v101 = vlaneseq
    %v102 = vshrl.u32 %v101, 7
    %v103 = vsub.s32 4, %v102
    %v104 = vrot.slane %v83, %v103
    %v105 = vlaneseq
    %v106 = vshrl.u32 %v105, 7
    %v107 = vsub.s32 5, %v106
    %v108 = vrot.slane %v83, %v107
    %v109 = vlaneseq
    %v110 = vshrl.u32 %v109, 7
    %v111 = vsub.s32 6, %v110
    %v112 = vrot.slane %v83, %v111
    %v113 = vlaneseq
    %v114 = vshrl.u32 %v113, 7
    %v115 = vsub.s32 7, %v114
    %v116 = vrot.slane %v83, %v115
    %v189 = vunpack.c.l.b16 %v19
    %v190 = vunpack.c.h.b16 %v19
    %v191 = vunpack.c.l.b16 %v20
    %v192 = vunpack.c.h.b16 %v20
    %v193 = vunpack.c.l.b16 %v21
    %v194 = vunpack.c.h.b16 %v21
    %v195 = vunpack.c.l.b16 %v22
    %v196 = vunpack.c.h.b16 %v22
    %v197 = vunpack.c.l.b16 %v23
    %v198 = vunpack.c.h.b16 %v23
    %v199 = vunpack.c.l.b16 %v24
    %v200 = vunpack.c.h.b16 %v24
    %v201 = vunpack.c.l.b16 %v25
    %v202 = vunpack.c.h.b16 %v25
    %v203 = vunpack.c.l.b16 %v26
    %v204 = vunpack.c.h.b16 %v26
    %v205 = vunpack.c.l.b16 %v27
    %v206 = vunpack.c.h.b16 %v27
    %v207 = vunpack.c.l.b16 %v28
    %v208 = vunpack.c.h.b16 %v28
    %v209 = vunpack.c.l.b16 %v29
    %v210 = vunpack.c.h.b16 %v29
    %v211 = vunpack.c.l.b16 %v30
    %v212 = vunpack.c.h.b16 %v30
    %v213 = vunpack.c.l.b16 %v31
    %v214 = vunpack.c.h.b16 %v31
    %v215 = vunpack.c.l.b16 %v32
    %v216 = vunpack.c.h.b16 %v32
    %v217 = vunpack.c.l.b16 %v33
    %v218 = vunpack.c.h.b16 %v33
    %v219 = vunpack.c.l.b16 %v34
    %v220 = vunpack.c.h.b16 %v34
    %v221 = vunpack.c.l.b16 %v35
    %v222 = vunpack.c.h.b16 %v35
    %v223 = vunpack.c.l.b16 %v36
    %v224 = vunpack.c.h.b16 %v36
    %v225 = vunpack.c.l.b16 %v37
    %v226 = vunpack.c.h.b16 %v37
    %v227 = vunpack.c.l.b16 %v38
    %v228 = vunpack.c.h.b16 %v38
    %v229 = vunpack.c.l.b16 %v39
    %v230 = vunpack.c.h.b16 %v39
    %v231 = vunpack.c.l.b16 %v40
    %v232 = vunpack.c.h.b16 %v40
    %v233 = vunpack.c.l.b16 %v41
    %v234 = vunpack.c.h.b16 %v41
    %v235 = vunpack.c.l.b16 %v42
    %v236 = vunpack.c.h.b16 %v42
    %v237 = vunpack.c.l.b16 %v43
    %v238 = vunpack.c.h.b16 %v43
    %v239 = vunpack.c.l.b16 %v44
    %v240 = vunpack.c.h.b16 %v44
    %v241 = vunpack.c.l.b16 %v45
    %v242 = vunpack.c.h.b16 %v45
    %v243 = vunpack.c.l.b16 %v46
    %v244 = vunpack.c.h.b16 %v46
    %v245 = vunpack.c.l.b16 %v47
    %v246 = vunpack.c.h.b16 %v47
    %v247 = vunpack.c.l.b16 %v48
    %v248 = vunpack.c.h.b16 %v48
    %v249 = vunpack.c.l.b16 %v49
    %v250 = vunpack.c.h.b16 %v49
    %v251 = vunpack.c.l.b16 %v50
    %v252 = vunpack.c.h.b16 %v50
    %v253 = vunpack.c.l.b16 %v51
    %v254 = vunpack.c.h.b16 %v51
    %v255 = vunpack.c.l.b16 %v52
    %v256 = vunpack.c.h.b16 %v52
    %v257 = vunpack.c.l.b16 %v53
    %v258 = vunpack.c.h.b16 %v53
    %v259 = vunpack.c.l.b16 %v54
    %v260 = vunpack.c.h.b16 %v54
    %v261 = vunpack.c.l.b16 %v55
    %v262 = vunpack.c.h.b16 %v55
    %v263 = vunpack.c.l.b16 %v56
    %v264 = vunpack.c.h.b16 %v56
    %v265 = vunpack.c.l.b16 %v57
    %v266 = vunpack.c.h.b16 %v57
    %v267 = vunpack.c.l.b16 %v58
    %v268 = vunpack.c.h.b16 %v58
    %v269 = vunpack.c.l.b16 %v59
    %v270 = vunpack.c.h.b16 %v59
    %v271 = vunpack.c.l.b16 %v60
    %v272 = vunpack.c.h.b16 %v60
    %v273 = vunpack.c.l.b16 %v61
    %v274 = vunpack.c.h.b16 %v61
    %v275 = vunpack.c.l.b16 %v62
    %v276 = vunpack.c.h.b16 %v62
    %v277 = vunpack.c.l.b16 %v63
    %v278 = vunpack.c.h.b16 %v63
    %v279 = vunpack.c.l.b16 %v64
    %v280 = vunpack.c.h.b16 %v64
    %v281 = vunpack.c.l.b16 %v65
    %v282 = vunpack.c.h.b16 %v65
    %v283 = vunpack.c.l.b16 %v66
    %v284 = vunpack.c.h.b16 %v66
    %v285 = vunpack.c.l.b16 %v67
    %v286 = vunpack.c.h.b16 %v67
    %v287 = vunpack.c.l.b16 %v68
    %v288 = vunpack.c.h.b16 %v68
    %v289 = vunpack.c.l.b16 %v69
    %v290 = vunpack.c.h.b16 %v69
    %v291 = vunpack.c.l.b16 %v70
    %v292 = vunpack.c.h.b16 %v70
    %v293 = vunpack.c.l.b16 %v71
    %v294 = vunpack.c.h.b16 %v71
    %v295 = vunpack.c.l.b16 %v72
    %v296 = vunpack.c.h.b16 %v72
    %v297 = vunpack.c.l.b16 %v73
    %v298 = vunpack.c.h.b16 %v73
    %v299 = vunpack.c.l.b16 %v74
    %v300 = vunpack.c.h.b16 %v74
    %v301 = vunpack.c.l.b16 %v75
    %v302 = vunpack.c.h.b16 %v75
    %v303 = vunpack.c.l.b16 %v76
    %v304 = vunpack.c.h.b16 %v76
    %v305 = vunpack.c.l.b16 %v77
    %v306 = vunpack.c.h.b16 %v77
    %v307 = vunpack.c.l.b16 %v78
    %v308 = vunpack.c.h.b16 %v78
    %v309 = vunpack.c.l.b16 %v79
    %v310 = vunpack.c.h.b16 %v79
    %v311 = vunpack.c.l.b16 %v80
    %v312 = vunpack.c.h.b16 %v80
    %v313 = vunpack.c.l.b16 %v81
    %v314 = vunpack.c.h.b16 %v81
    %v315 = vunpack.c.l.b16 %v82
    %v316 = vunpack.c.h.b16 %v82
    %v317 = vpack.c.b16 %v197, %v189
    %v318 = vpack.c.b16 %v198, %v190
    %v319 = vpack.c.b16 %v199, %v191
    %v320 = vpack.c.b16 %v200, %v192
    %v321 = vpack.c.b16 %v201, %v193
    %v322 = vpack.c.b16 %v202, %v194
    %v323 = vpack.c.b16 %v203, %v195
    %v324 = vpack.c.b16 %v204, %v196
    %v325 = vpack.c.b16 %v213, %v205
    %v326 = vpack.c.b16 %v214, %v206
    %v327 = vpack.c.b16 %v215, %v207
    %v328 = vpack.c.b16 %v216, %v208
    %v329 = vpack.c.b16 %v217, %v209
    %v330 = vpack.c.b16 %v218, %v210
    %v331 = vpack.c.b16 %v219, %v211
    %v332 = vpack.c.b16 %v220, %v212
    %v333 = vpack.c.b16 %v229, %v221
    %v334 = vpack.c.b16 %v230, %v222
    %v335 = vpack.c.b16 %v231, %v223
    %v336 = vpack.c.b16 %v232, %v224
    %v337 = vpack.c.b16 %v233, %v225
    %v338 = vpack.c.b16 %v234, %v226
    %v339 = vpack.c.b16 %v235, %v227
    %v340 = vpack.c.b16 %v236, %v228
    %v341 = vpack.c.b16 %v245, %v237
    %v342 = vpack.c.b16 %v246, %v238
    %v343 = vpack.c.b16 %v247, %v239
    %v344 = vpack.c.b16 %v248, %v240
    %v345 = vpack.c.b16 %v249, %v241
    %v346 = vpack.c.b16 %v250, %v242
    %v347 = vpack.c.b16 %v251, %v243
    %v348 = vpack.c.b16 %v252, %v244
    %v349 = vpack.c.b16 %v261, %v253
    %v350 = vpack.c.b16 %v262, %v254
    %v351 = vpack.c.b16 %v263, %v255
    %v352 = vpack.c.b16 %v264, %v256
    %v353 = vpack.c.b16 %v265, %v257
    %v354 = vpack.c.b16 %v266, %v258
    %v355 = vpack.c.b16 %v267, %v259
    %v356 = vpack.c.b16 %v268, %v260
    %v357 = vpack.c.b16 %v277, %v269
    %v358 = vpack.c.b16 %v278, %v270
    %v359 = vpack.c.b16 %v279, %v271
    %v360 = vpack.c.b16 %v280, %v272
    %v361 = vpack.c.b16 %v281, %v273
    %v362 = vpack.c.b16 %v282, %v274
    %v363 = vpack.c.b16 %v283, %v275
    %v364 = vpack.c.b16 %v284, %v276
    %v365 = vpack.c.b16 %v293, %v285
    %v366 = vpack.c.b16 %v294, %v286
    %v367 = vpack.c.b16 %v295, %v287
    %v368 = vpack.c.b16 %v296, %v288
    %v369 = vpack.c.b16 %v297, %v289
    %v370 = vpack.c.b16 %v298, %v290
    %v371 = vpack.c.b16 %v299, %v291
    %v372 = vpack.c.b16 %v300, %v292
    %v373 = vpack.c.b16 %v309, %v301
    %v374 = vpack.c.b16 %v310, %v302
    %v375 = vpack.c.b16 %v311, %v303
    %v376 = vpack.c.b16 %v312, %v304
    %v377 = vpack.c.b16 %v313, %v305
    %v378 = vpack.c.b16 %v314, %v306
    %v379 = vpack.c.b16 %v315, %v307
    %v380 = vpack.c.b16 %v316, %v308
    %445 = vmatprep.subr.bf16.mxu0 %v374
    %446 = vmatpush1.bf16.msra.mxu0 %v373
    %447 = vmatprep.subr.bf16.mxu0 %v366
    %448 = vmatpush1.bf16.msra.mxu0 %v365
    %449 = vmatprep.subr.bf16.mxu0 %v358
    %450 = vmatpush1.bf16.msra.mxu0 %v357
    %451 = vmatprep.subr.bf16.mxu0 %v350
    %452 = vmatpush1.bf16.msra.mxu0 %v349
    %453 = vmatprep.subr.bf16.mxu0 %v342
    %454 = vmatpush1.bf16.msra.mxu0 %v341
    %455 = vmatprep.subr.bf16.mxu0 %v334
    %456 = vmatpush1.bf16.msra.mxu0 %v333
    %457 = vmatprep.subr.bf16.mxu0 %v326
    %458 = vmatpush1.bf16.msra.mxu0 %v325
    %459 = vmatprep.subr.bf16.mxu0 %v318
    %460 = vmatpush1.bf16.msra.mxu0 %v317
    %461 = vmatprep.subr.bf16.mxu0 0
    %462 = vmatpush2.bf16.msra.mxu0 0
    %463 = vmatprep.subr.bf16.mxu0 0
    %464 = vmatpush2.bf16.msra.mxu0 0
    %465 = vmatprep.subr.bf16.mxu0 0
    %466 = vmatpush2.bf16.msra.mxu0 0
    %467 = vmatprep.subr.bf16.mxu0 0
    %468 = vmatpush2.bf16.msra.mxu0 0
    %469 = vmatprep.subr.bf16.mxu0 0
    %470 = vmatpush2.bf16.msra.mxu0 0
    %471 = vmatprep.subr.bf16.mxu0 0
    %472 = vmatpush2.bf16.msra.mxu0 0
    %473 = vmatprep.subr.bf16.mxu0 0
    %474 = vmatpush2.bf16.msra.mxu0 0
    %475 = vmatprep.subr.bf16.mxu0 0
    %476 = vmatpush2.bf16.msra.mxu0 0
    %477 = vmatprep.mubr.bf16.mxu0 0
    %478 = vmatmul.mubr.bf16.gmra.mxu0 %v18
    %v479 = vpop.f32.mrf.mxu0
    %v480 = vadd.f32 %v88, %v479
    %v481 = vpop.f32.mrf.mxu0
    %v482 = vadd.f32 %v92, %v481
    %v483 = vpop.f32.mrf.mxu0
    %v484 = vpop.f32.mrf.mxu0
    %485 = vdwg.mxu0
    %486 = vmatprep.subr.bf16.mxu0 %v376
    %487 = vmatpush1.bf16.msra.mxu0 %v375
    %488 = vmatprep.subr.bf16.mxu0 %v368
    %489 = vmatpush1.bf16.msra.mxu0 %v367
    %490 = vmatprep.subr.bf16.mxu0 %v360
    %491 = vmatpush1.bf16.msra.mxu0 %v359
    %492 = vmatprep.subr.bf16.mxu0 %v352
    %493 = vmatpush1.bf16.msra.mxu0 %v351
    %494 = vmatprep.subr.bf16.mxu0 %v344
    %495 = vmatpush1.bf16.msra.mxu0 %v343
    %496 = vmatprep.subr.bf16.mxu0 %v336
    %497 = vmatpush1.bf16.msra.mxu0 %v335
    %498 = vmatprep.subr.bf16.mxu0 %v328
    %499 = vmatpush1.bf16.msra.mxu0 %v327
    %500 = vmatprep.subr.bf16.mxu0 %v320
    %501 = vmatpush1.bf16.msra.mxu0 %v319
    %502 = vmatprep.subr.bf16.mxu0 0
    %503 = vmatpush2.bf16.msra.mxu0 0
    %504 = vmatprep.subr.bf16.mxu0 0
    %505 = vmatpush2.bf16.msra.mxu0 0
    %506 = vmatprep.subr.bf16.mxu0 0
    %507 = vmatpush2.bf16.msra.mxu0 0
    %508 = vmatprep.subr.bf16.mxu0 0
    %509 = vmatpush2.bf16.msra.mxu0 0
    %510 = vmatprep.subr.bf16.mxu0 0
    %511 = vmatpush2.bf16.msra.mxu0 0
    %512 = vmatprep.subr.bf16.mxu0 0
    %513 = vmatpush2.bf16.msra.mxu0 0
    %514 = vmatprep.subr.bf16.mxu0 0
    %515 = vmatpush2.bf16.msra.mxu0 0
    %516 = vmatprep.subr.bf16.mxu0 0
    %517 = vmatpush2.bf16.msra.mxu0 0
    %518 = vmatprep.mubr.bf16.mxu0 0
    %519 = vmatmul.mubr.bf16.gmra.mxu0 %v18
    %v520 = vpop.f32.mrf.mxu0
    %v521 = vadd.f32 %v96, %v520
    %v522 = vpop.f32.mrf.mxu0
    %v523 = vadd.f32 %v100, %v522
    %v524 = vpop.f32.mrf.mxu0
    %v525 = vpop.f32.mrf.mxu0
    %526 = vdwg.mxu0
    %527 = vmatprep.subr.bf16.mxu0 %v378
    %528 = vmatpush1.bf16.msra.mxu0 %v377
    %529 = vmatprep.subr.bf16.mxu0 %v370
    %530 = vmatpush1.bf16.msra.mxu0 %v369
    %531 = vmatprep.subr.bf16.mxu0 %v362
    %532 = vmatpush1.bf16.msra.mxu0 %v361
    %533 = vmatprep.subr.bf16.mxu0 %v354
    %534 = vmatpush1.bf16.msra.mxu0 %v353
    %535 = vmatprep.subr.bf16.mxu0 %v346
    %536 = vmatpush1.bf16.msra.mxu0 %v345
    %537 = vmatprep.subr.bf16.mxu0 %v338
    %538 = vmatpush1.bf16.msra.mxu0 %v337
    %539 = vmatprep.subr.bf16.mxu0 %v330
    %540 = vmatpush1.bf16.msra.mxu0 %v329
    %541 = vmatprep.subr.bf16.mxu0 %v322
    %542 = vmatpush1.bf16.msra.mxu0 %v321
    %543 = vmatprep.subr.bf16.mxu0 0
    %544 = vmatpush2.bf16.msra.mxu0 0
    %545 = vmatprep.subr.bf16.mxu0 0
    %546 = vmatpush2.bf16.msra.mxu0 0
    %547 = vmatprep.subr.bf16.mxu0 0
    %548 = vmatpush2.bf16.msra.mxu0 0
    %549 = vmatprep.subr.bf16.mxu0 0
    %550 = vmatpush2.bf16.msra.mxu0 0
    %551 = vmatprep.subr.bf16.mxu0 0
    %552 = vmatpush2.bf16.msra.mxu0 0
    %553 = vmatprep.subr.bf16.mxu0 0
    %554 = vmatpush2.bf16.msra.mxu0 0
    %555 = vmatprep.subr.bf16.mxu0 0
    %556 = vmatpush2.bf16.msra.mxu0 0
    %557 = vmatprep.subr.bf16.mxu0 0
    %558 = vmatpush2.bf16.msra.mxu0 0
    %559 = vmatprep.mubr.bf16.mxu0 0
    %560 = vmatmul.mubr.bf16.gmra.mxu0 %v18
    %v561 = vpop.f32.mrf.mxu0
    %v562 = vadd.f32 %v104, %v561
    %v563 = vpop.f32.mrf.mxu0
    %v564 = vadd.f32 %v108, %v563
    %v565 = vpop.f32.mrf.mxu0
    %v566 = vpop.f32.mrf.mxu0
    %567 = vdwg.mxu0
    %568 = vmatprep.subr.bf16.mxu0 %v380
    %569 = vmatpush1.bf16.msra.mxu0 %v379
    %570 = vmatprep.subr.bf16.mxu0 %v372
    %571 = vmatpush1.bf16.msra.mxu0 %v371
    %572 = vmatprep.subr.bf16.mxu0 %v364
    %573 = vmatpush1.bf16.msra.mxu0 %v363
    %574 = vmatprep.subr.bf16.mxu0 %v356
    %575 = vmatpush1.bf16.msra.mxu0 %v355
    %576 = vmatprep.subr.bf16.mxu0 %v348
    %577 = vmatpush1.bf16.msra.mxu0 %v347
    %578 = vmatprep.subr.bf16.mxu0 %v340
    %579 = vmatpush1.bf16.msra.mxu0 %v339
    %580 = vmatprep.subr.bf16.mxu0 %v332
    %581 = vmatpush1.bf16.msra.mxu0 %v331
    %582 = vmatprep.subr.bf16.mxu0 %v324
    %583 = vmatpush1.bf16.msra.mxu0 %v323
    %584 = vmatprep.subr.bf16.mxu0 0
    %585 = vmatpush2.bf16.msra.mxu0 0
    %586 = vmatprep.subr.bf16.mxu0 0
    %587 = vmatpush2.bf16.msra.mxu0 0
    %588 = vmatprep.subr.bf16.mxu0 0
    %589 = vmatpush2.bf16.msra.mxu0 0
    %590 = vmatprep.subr.bf16.mxu0 0
    %591 = vmatpush2.bf16.msra.mxu0 0
    %592 = vmatprep.subr.bf16.mxu0 0
    %593 = vmatpush2.bf16.msra.mxu0 0
    %594 = vmatprep.subr.bf16.mxu0 0
    %595 = vmatpush2.bf16.msra.mxu0 0
    %596 = vmatprep.subr.bf16.mxu0 0
    %597 = vmatpush2.bf16.msra.mxu0 0
    %598 = vmatprep.subr.bf16.mxu0 0
    %599 = vmatpush2.bf16.msra.mxu0 0
    %600 = vmatprep.mubr.bf16.mxu0 0
    %601 = vmatmul.mubr.bf16.gmra.mxu0 %v18
    %v602 = vpop.f32.mrf.mxu0
    %v603 = vadd.f32 %v112, %v602
    %v604 = vpop.f32.mrf.mxu0
    %v605 = vadd.f32 %v116, %v604
    %v606 = vpop.f32.mrf.mxu0
    %v607 = vpop.f32.mrf.mxu0
    %608 = vdwg.mxu0
    %v609 = vmul.f32 %v480, %v480
    %v610 = vmul.f32 %v482, %v482
    %v611 = vmul.f32 %v521, %v521
    %v612 = vmul.f32 %v523, %v523
    %v613 = vmul.f32 %v562, %v562
    %v614 = vmul.f32 %v564, %v564
    %v615 = vmul.f32 %v603, %v603
    %v616 = vmul.f32 %v605, %v605
    %vm617 = vcmask 1041408
    %v618 = vsel %vm617, %v609, 0.0
    %v619 = vsel %vm617, %v610, 0.0
    %v620 = vadd.f32 %v618, %v619
    %v621 = vsel %vm617, %v611, 0.0
    %v622 = vadd.f32 %v620, %v621
    %v623 = vsel %vm617, %v612, 0.0
    %v624 = vadd.f32 %v622, %v623
    %v625 = vsel %vm617, %v613, 0.0
    %v626 = vadd.f32 %v624, %v625
    %v627 = vsel %vm617, %v614, 0.0
    %v628 = vadd.f32 %v626, %v627
    %v629 = vsel %vm617, %v615, 0.0
    %v630 = vadd.f32 %v628, %v629
    %v631 = vsel %vm617, %v616, 0.0
    %v632 = vadd.f32 %v630, %v631
    %633 = vadd.xlane.f32.xlu0 %v632
    %v634 = vpop.xlane.xlu0 %633
    %v635 = vmax.f32 %v634, 1e-24
    %v636 = vrsqrt.pop %v635
    %v637 = vmul.f32 %v480, %v636
    %v638 = vmul.f32 %v482, %v636
    %v639 = vmul.f32 %v521, %v636
    %v640 = vmul.f32 %v523, %v636
    %v641 = vmul.f32 %v562, %v636
    %v642 = vmul.f32 %v564, %v636
    %v643 = vmul.f32 %v603, %v636
    %v644 = vmul.f32 %v605, %v636
    %v653 = vcombine.low %v637, %v638
    %v654 = vcombine.low %v639, %v640
    %v656 = vunpack.c.l.s4 1983009808
    %v657 = vunpack.c.0.s8 %v656
    %v658 = vlaneseq
    %v659 = vshrl.u32 %v658, 7
    %v660 = vsub.s32 %v657, %v659
    %v661 = vrot.slane %v653, %v660
    %v663 = vunpack.c.l.s4 1983009808
    %v664 = vunpack.c.0.s8 %v663
    %v665 = vlaneseq
    %v666 = vshrl.u32 %v665, 7
    %v667 = vsub.s32 %v664, %v666
    %v668 = vrot.slane %v654, %v667
    %v669 = vcombine.low %v661, %v668
    %v670 = vcombine.low %v641, %v642
    %v671 = vcombine.low %v643, %v644
    %v673 = vunpack.c.l.s4 1983009808
    %v674 = vunpack.c.0.s8 %v673
    %v675 = vlaneseq
    %v676 = vshrl.u32 %v675, 7
    %v677 = vsub.s32 %v674, %v676
    %v678 = vrot.slane %v670, %v677
    %v680 = vunpack.c.l.s4 1983009808
    %v681 = vunpack.c.0.s8 %v680
    %v682 = vlaneseq
    %v683 = vshrl.u32 %v682, 7
    %v684 = vsub.s32 %v681, %v683
    %v685 = vrot.slane %v671, %v684
    %v686 = vcombine.low %v678, %v685
    %689 = vst [vmem:[#allocation2] sm:$0xff] %v669
    %690 = vst [vmem:[#allocation2 + $0x8] sm:$0xff] %v686
    // Predicated region
    $region14: #{forward.7} parent=1 // pred_check
      _
    $region15: #{forward.7} parent=1 // pred_check_branch
      %692 = sbr.rel (0) target = $region17
    $region16: #{forward.7} parent=1 // pred_region
      %s694 = ssub.s32 256, 256
      %695 = vsyncadd [#allocation3], %s694
      %s697 = sshll.u32 [#allocation2], 4
      %s698 = int_to_ptr.vmem [resolvable:$true] %s697
      %700 = dma.vmem_to_hbm [thread:$0]  %s698, 256, %s3, [#allocation3]
    $region17: #{forward.7} parent=1 // pred_fallthru
      _
    // Predicated region
    $region18: #{forward.7} parent=1 // pred_check
      _
    $region19: #{forward.7} parent=1 // pred_check_branch
      %702 = sbr.rel (0) target = $region21
    $region20: #{forward.7} parent=1 // pred_region
      %703 = dma.done [#allocation3], 256
    $region21: #{forward.7} parent=1 // pred_fallthru
      _
    %704 = vsyncpa [#allocation3], 1

</llo_original>
